<compile_context>
chip_gen: v6e
topology: v6e:2x2x1
jax: 0.10.0
libtpu: 0.0.40
codegen_flags: <defaults>
</compile_context>

<pallas_src>
import jax
import jax.numpy as jnp
from jax import lax
from jax.experimental import pallas as pl
from jax.experimental.pallas import tpu as pltpu


# -----------------------------------------------------------------------------
# Laplacian (plain JAX, one-off preprocessing)
# -----------------------------------------------------------------------------
def adj_to_laplace(adj):
    """Row-normalized adjacency with self-loops.  adj:(T,N,N)."""
    eye = jnp.eye(adj.shape[-1], dtype=adj.dtype)
    a_hat = adj + eye
    deg = jnp.sum(a_hat, axis=-1, keepdims=True)
    return a_hat / deg


# -----------------------------------------------------------------------------
# Recurrent Pallas kernel: one grid step = one batch element; time loop
# in-kernel (serial GRU recurrence), everything else precomputed.
# -----------------------------------------------------------------------------
def _make_recurrent_kernel(H, n_steps, init_length):
    def kernel(gi_ref, lf_ref, lb_ref, h0_ref, xnext_ref, invm_ref,
               wf_ref, wb_ref, bsp_ref, whh_ref, bhh_ref, ow_ref, ob_ref,
               o_ref):
        # Hoist all weight / bias loads & broadcasts above the time loop.
        wf = wf_ref[...]          # (H, H)   fwd_gnn folded into sptial_merge
        wb = wb_ref[...]          # (H, H)   bwd_gnn folded into sptial_merge
        bsp = bsp_ref[...]        # (1, H)   fused spatial bias
        whh = whh_ref[...]        # (H, 3H)  GRU hidden weights
        bhh = bhh_ref[...]        # (1, 3H)
        ow = ow_ref[...]          # (H, D)   output layer
        ob = ob_ref[...]          # (1, D)
        inv_m = invm_ref[...]     # (N, D)   1 on predict cells, 0 on input cells

        def mm(a, b):
            return jnp.dot(a, b, preferred_element_type=jnp.float32)

        def step(i, h):
            lf = lf_ref[i]                                     # (N, N)
            lb = lb_ref[i]                                     # (N, N)

            # ---- spatial GNN + sptial_merge (weight-fused) ------------------
            h_space = mm(mm(lf, h), wf) + mm(mm(lb, h), wb) + bsp   # (N, H)

            # ---- GRUCell: input path `gi` is precomputed outside -----------
            gh = mm(h_space, whh) + bhh                             # (N, 3H)
            gi = gi_ref[i]                                          # (N, 3H)
            r = jax.nn.sigmoid(gi[:, :H] + gh[:, :H])
            z = jax.nn.sigmoid(gi[:, H:2 * H] + gh[:, H:2 * H])
            n = jnp.tanh(gi[:, 2 * H:] + r * gh[:, 2 * H:])
            h_new = (1.0 - z) * n + z * h_space                     # (N, H)

            # ---- output layer + input-cell passthrough ----------------------
            # For i < init_length the write lands at slot 0 and is overwritten
            # by the correct value at i == init_length (loop is sequential),
            # so no conditional is needed and o_ref is fully initialized.
            pred = mm(h_new, ow) + ob                               # (N, D)
            j = jnp.maximum(i - init_length, 0)
            o_ref[j] = xnext_ref[j] + inv_m * pred
            return h_new

        lax.fori_loop(0, n_steps, step, h0_ref[...], unroll=True)

    return kernel


# -----------------------------------------------------------------------------
# Wrapper: XLA-batched non-recurrent precompute + single pallas_call (grid=(B,))
# -----------------------------------------------------------------------------
def st_node_encoder_forward(params, input_data, adj_list, input_cells,
                            dest_size, init_length):
    B, T, N, F = input_data.shape
    D = dest_size
    H = params['init_w'].shape[1]
    T_out = T - init_length - 1
    assert T - 1 > init_length

    input_data = input_data.astype(jnp.float32)
    laplace_f = adj_to_laplace(adj_list.astype(jnp.float32))                 # (T,N,N)
    laplace_b = adj_to_laplace(
        jnp.transpose(adj_list, (0, 2, 1)).astype(jnp.float32))             # (T,N,N)
    lf_t = laplace_f[:T - 1]
    lb_t = laplace_b[:T - 1]

    # ---- non-recurrent precompute, batched over all (B, T-1) ----------------
    x = input_data[:, :T - 1]                                    # (B, T-1, N, F)
    dyn = x[..., :D]
    struct = x[..., D:5 * D]
    stat = x[..., 5 * D:]

    dist_f = (jnp.einsum('tnm,btmf->btnf', lf_t, struct)
              @ params['fe_wf'] + params['fe_bf'])               # (B, T-1, N, D)
    dist_b = (jnp.einsum('tnm,btmf->btnf', lb_t, struct)
              @ params['fe_wb'] + params['fe_bb'])               # (B, T-1, N, D)
    stat_code = jax.nn.sigmoid(stat @ params['stat_w'] + params['stat_b'])
    tmp_f = dyn * dist_f * stat_code[..., :D]
    tmp_b = dyn * dist_b * stat_code[..., D:]
    gi = (tmp_f @ params['gru_wih_f'] + tmp_b @ params['gru_wih_b']
          + params['gru_bih'])                                   # (B, T-1, N, 3H)

    h0 = (jnp.einsum('nm,bmf->bnf', laplace_f[0], input_data[:, 0])
          @ params['init_w'] + params['init_b'])                 # (B, N, H)

    # ---- host-side weight fusion (fwd/bwd GNN folded into sptial_merge) -----
    wf_fused = params['fwd_w'] @ params['merge_wf']              # (H, H)
    wb_fused = params['bwd_w'] @ params['merge_wb']              # (H, H)
    b_space = (params['fwd_b'] @ params['merge_wf']
               + params['bwd_b'] @ params['merge_wb']
               + params['merge_b'])                              # (1, H)

    # ---- input-cell mask / masked next-step dynamic features ----------------
    mask = jnp.zeros((N, D), jnp.float32).at[jnp.asarray(input_cells), :].set(1.0)
    inv_mask = 1.0 - mask
    x_next_masked = mask * input_data[:, init_length + 1:, :, :D]  # (B,T_out,N,D)

    weights = [wf_fused, wb_fused, b_space,
               params['gru_whh'], params['gru_bhh'],
               params['out_w'], params['out_b']]

    def per_batch(shape):
        nd = len(shape)
        return pl.BlockSpec((None,) + tuple(shape[1:]),
                            lambda b: (b,) + (0,) * (nd - 1))

    def const_spec(a):
        nd = a.ndim
        return pl.BlockSpec(a.shape, lambda b: (0,) * nd)        # VMEM-resident

    in_specs = ([per_batch(gi.shape),
                 const_spec(lf_t),
                 const_spec(lb_t),
                 per_batch(h0.shape),
                 per_batch(x_next_masked.shape),
                 const_spec(inv_mask)]
                + [const_spec(w) for w in weights])

    # Whole per-batch output slab written back once per grid step.
    out_spec = pl.BlockSpec((None, T_out, N, D), lambda b: (b, 0, 0, 0))

    return pl.pallas_call(
        _make_recurrent_kernel(H, T - 1, init_length),
        out_shape=jax.ShapeDtypeStruct((B, T_out, N, D), jnp.float32),
        grid=(B,),
        in_specs=in_specs,
        out_specs=out_spec,
        compiler_params=pltpu.CompilerParams(
            dimension_semantics=("parallel",),
            vmem_limit_bytes=32 * 1024 * 1024),
    )(gi, lf_t, lb_t, h0, x_next_masked, inv_mask, *weights)


# -----------------------------------------------------------------------------
# Parameters (weights stored transposed: y = x @ W + b); concat weights pre-split
# -----------------------------------------------------------------------------
def init_params(key, dest_size, input_size, hidden_size):
    D, F, H = dest_size, input_size, hidden_size
    S = F - 5 * D

    def lin(key, fin, fout, scale=0.1):
        kw, kb = jax.random.split(key)
        return (scale * jax.random.normal(kw, (fin, fout), jnp.float32),
                scale * jax.random.normal(kb, (1, fout), jnp.float32))

    keys = jax.random.split(key, 12)
    p = {}
    p['fe_wf'], p['fe_bf'] = lin(keys[0], 4 * D, D)     # dest_encoder_forward
    p['fe_wb'], p['fe_bb'] = lin(keys[1], 4 * D, D)     # dest_encoder_backward
    p['stat_w'], p['stat_b'] = lin(keys[2], S, 2 * D)   # feature_embedding_layer
    p['init_w'], p['init_b'] = lin(keys[3], F, H)       # init_graph
    p['fwd_w'], p['fwd_b'] = lin(keys[4], H, H)         # forward_gnn
    p['bwd_w'], p['bwd_b'] = lin(keys[5], H, H)         # backward_gnn
    # sptial_merge: Linear(2H, H), stored pre-split (fwd half / bwd half)
    p['merge_wf'], p['merge_b'] = lin(keys[6], H, H)
    p['merge_wb'], _ = lin(keys[7], H, H)
    # GRUCell(2D, H): weight_ih stored pre-split (forward-code / backward-code)
    p['gru_wih_f'], p['gru_bih'] = lin(keys[8], D, 3 * H)
    p['gru_wih_b'], _ = lin(keys[9], D, 3 * H)
    p['gru_whh'], p['gru_bhh'] = lin(keys[10], H, 3 * H)
    p['out_w'], p['out_b'] = lin(keys[11], H, D)        # output_layer
    return p


# -----------------------------------------------------------------------------
# Pure-JAX reference (same math, no Pallas, no weight fusion) for sanity check
# -----------------------------------------------------------------------------
def st_node_encoder_reference(params, input_data, adj_list, input_cells,
                              dest_size, init_length):
    B, T, N, F = input_data.shape
    D = dest_size
    H = params['init_w'].shape[1]

    lf = adj_to_laplace(adj_list)
    lb = adj_to_laplace(jnp.transpose(adj_list, (0, 2, 1)))

    def gcn(x, L, w, b):                       # x:(B,N,fin)
        return jnp.einsum('nm,bmf->bnf', L, x) @ w + b

    hidden = gcn(input_data[:, 0], lf[0], params['init_w'], params['init_b'])
    mask = jnp.zeros((N, 1), jnp.float32).at[jnp.asarray(input_cells)].set(1.0)

    outs = []
    for i in range(T - 1):
        x = input_data[:, i]
        dyn, struct, stat = x[:, :, :D], x[:, :, D:5 * D], x[:, :, 5 * D:]
        dist_f = gcn(struct, lf[i], params['fe_wf'], params['fe_bf'])
        dist_b = gcn(struct, lb[i], params['fe_wb'], params['fe_bb'])
        stat_code = jax.nn.sigmoid(stat @ params['stat_w'] + params['stat_b'])
        tmp = jnp.concatenate([dyn * dist_f, dyn * dist_b], axis=-1) * stat_code

        fwd_h = gcn(hidden, lf[i], params['fwd_w'], params['fwd_b'])
        bwd_h = gcn(hidden, lb[i], params['bwd_w'], params['bwd_b'])
        h_space = (fwd_h @ params['merge_wf'] + bwd_h @ params['merge_wb']
                   + params['merge_b'])

        gi = (tmp[:, :, :D] @ params['gru_wih_f']
              + tmp[:, :, D:] @ params['gru_wih_b'] + params['gru_bih'])
        gh = h_space @ params['gru_whh'] + params['gru_bhh']
        r = jax.nn.sigmoid(gi[..., :H] + gh[..., :H])
        z = jax.nn.sigmoid(gi[..., H:2 * H] + gh[..., H:2 * H])
        n = jnp.tanh(gi[..., 2 * H:] + r * gh[..., 2 * H:])
        hidden = (1.0 - z) * n + z * h_space

        if i >= init_length:
            pred = hidden @ params['out_w'] + params['out_b']
            outs.append(mask * input_data[:, i + 1, :, :D] + (1.0 - mask) * pred)
    return jnp.stack(outs, axis=1)


# -----------------------------------------------------------------------------
# Driver
# -----------------------------------------------------------------------------
if __name__ == "__main__":
    # dest_size D = 4, static features = 6 -> input_size = 5*D + 6 = 26
    batch, temporal, cell = 2, 8, 8
    dest_size = 4
    input_size = 26
    hidden_size = 32
    init_length = 4
    input_cells = [0, 2]

    key = jax.random.PRNGKey(0)
    k_params, k_x, k_adj = jax.random.split(key, 3)

    params = init_params(k_params, dest_size, input_size, hidden_size)
    input_data = jax.random.normal(
        k_x, (batch, temporal, cell, input_size), jnp.float32)
    adj_list = jax.random.bernoulli(
        k_adj, p=0.3, shape=(temporal, cell, cell)).astype(jnp.float32)

    out = st_node_encoder_forward(params, input_data, adj_list, input_cells,
                                  dest_size, init_length)
    out = jax.block_until_ready(out)

    expected = (batch, temporal - init_length - 1, cell, dest_size)
    assert out.shape == expected, (out.shape, expected)
    assert bool(jnp.all(jnp.isfinite(out)))

    ref = st_node_encoder_reference(params, input_data, adj_list, input_cells,
                                    dest_size, init_length)
    err = float(jnp.max(jnp.abs(out - ref)))
    assert err < 3e-2, f"max abs err vs reference = {err}"
    print("KERNEL_OK")
</pallas_src>

<mosaic_0001>
module attributes {stable_mosaic.version = 11 : i64} {
  func.func @kernel(%arg0: i32, %arg1: memref<1x7x8x96xf32, #tpu.memory_space<vmem>>, %arg2: memref<7x8x8xf32, #tpu.memory_space<vmem>>, %arg3: memref<7x8x8xf32, #tpu.memory_space<vmem>>, %arg4: memref<1x8x32xf32, #tpu.memory_space<vmem>>, %arg5: memref<1x3x8x4xf32, #tpu.memory_space<vmem>>, %arg6: memref<8x4xf32, #tpu.memory_space<vmem>>, %arg7: memref<32x32xf32, #tpu.memory_space<vmem>>, %arg8: memref<32x32xf32, #tpu.memory_space<vmem>>, %arg9: memref<1x32xf32, #tpu.memory_space<vmem>>, %arg10: memref<32x96xf32, #tpu.memory_space<vmem>>, %arg11: memref<1x96xf32, #tpu.memory_space<vmem>>, %arg12: memref<32x4xf32, #tpu.memory_space<vmem>>, %arg13: memref<1x4xf32, #tpu.memory_space<vmem>>, %arg14: memref<1x3x8x4xf32, #tpu.memory_space<vmem>>) attributes {dimension_semantics = [#tpu.dimension_semantics<parallel>], iteration_bounds = array<i64: 2>, scalar_prefetch = 0 : i64, scratch_operands = 0 : i64, tpu.core_type = #tpu.core_type<tc>, window_params = [{transform_indices = @transform_0, window_bounds = array<i64: 1, 7, 8, 96>}, {pipeline_mode = #tpu.pipeline_mode<synchronous>, transform_indices = @transform_1, window_bounds = array<i64: 7, 8, 8>}, {pipeline_mode = #tpu.pipeline_mode<synchronous>, transform_indices = @transform_2, window_bounds = array<i64: 7, 8, 8>}, {transform_indices = @transform_3, window_bounds = array<i64: 1, 8, 32>}, {transform_indices = @transform_4, window_bounds = array<i64: 1, 3, 8, 4>}, {pipeline_mode = #tpu.pipeline_mode<synchronous>, transform_indices = @transform_5, window_bounds = array<i64: 8, 4>}, {pipeline_mode = #tpu.pipeline_mode<synchronous>, transform_indices = @transform_6, window_bounds = array<i64: 32, 32>}, {pipeline_mode = #tpu.pipeline_mode<synchronous>, transform_indices = @transform_7, window_bounds = array<i64: 32, 32>}, {pipeline_mode = #tpu.pipeline_mode<synchronous>, transform_indices = @transform_8, window_bounds = array<i64: 1, 32>}, {pipeline_mode = #tpu.pipeline_mode<synchronous>, transform_indices = @transform_9, window_bounds = array<i64: 32, 96>}, {pipeline_mode = #tpu.pipeline_mode<synchronous>, transform_indices = @transform_10, window_bounds = array<i64: 1, 96>}, {pipeline_mode = #tpu.pipeline_mode<synchronous>, transform_indices = @transform_11, window_bounds = array<i64: 32, 4>}, {pipeline_mode = #tpu.pipeline_mode<synchronous>, transform_indices = @transform_12, window_bounds = array<i64: 1, 4>}, {transform_indices = @transform_13, window_bounds = array<i64: 1, 3, 8, 4>}]} {
    %c0 = arith.constant 0 : index
    %c0_0 = arith.constant 0 : index
    %0 = vector.load %arg7[%c0, %c0_0] : memref<32x32xf32, #tpu.memory_space<vmem>>, vector<32x32xf32>
    %c0_1 = arith.constant 0 : index
    %c0_2 = arith.constant 0 : index
    %1 = vector.load %arg8[%c0_1, %c0_2] : memref<32x32xf32, #tpu.memory_space<vmem>>, vector<32x32xf32>
    %c0_3 = arith.constant 0 : index
    %c0_4 = arith.constant 0 : index
    %2 = vector.load %arg9[%c0_3, %c0_4] : memref<1x32xf32, #tpu.memory_space<vmem>>, vector<1x32xf32>
    %c0_5 = arith.constant 0 : index
    %c0_6 = arith.constant 0 : index
    %3 = vector.load %arg10[%c0_5, %c0_6] : memref<32x96xf32, #tpu.memory_space<vmem>>, vector<32x96xf32>
    %c0_7 = arith.constant 0 : index
    %c0_8 = arith.constant 0 : index
    %4 = vector.load %arg11[%c0_7, %c0_8] : memref<1x96xf32, #tpu.memory_space<vmem>>, vector<1x96xf32>
    %c0_9 = arith.constant 0 : index
    %c0_10 = arith.constant 0 : index
    %5 = vector.load %arg12[%c0_9, %c0_10] : memref<32x4xf32, #tpu.memory_space<vmem>>, vector<32x4xf32>
    %c0_11 = arith.constant 0 : index
    %c0_12 = arith.constant 0 : index
    %6 = vector.load %arg13[%c0_11, %c0_12] : memref<1x4xf32, #tpu.memory_space<vmem>>, vector<1x4xf32>
    %c0_13 = arith.constant 0 : index
    %c0_14 = arith.constant 0 : index
    %7 = vector.load %arg6[%c0_13, %c0_14] : memref<8x4xf32, #tpu.memory_space<vmem>>, vector<8x4xf32>
    %c0_15 = arith.constant 0 : index
    %c0_16 = arith.constant 0 : index
    %c0_17 = arith.constant 0 : index
    %8 = vector.load %arg4[%c0_15, %c0_16, %c0_17] : memref<1x8x32xf32, #tpu.memory_space<vmem>>, vector<1x8x32xf32>
    %9 = vector.shape_cast %8 : vector<1x8x32xf32> to vector<8x32xf32>
    %c0_i32 = arith.constant 0 : i32
    %10 = arith.index_cast %c0_i32 : i32 to index
    %c0_18 = arith.constant 0 : index
    %c0_19 = arith.constant 0 : index
    %11 = vector.load %arg2[%10, %c0_18, %c0_19] : memref<7x8x8xf32, #tpu.memory_space<vmem>>, vector<1x8x8xf32>
    %12 = vector.shape_cast %11 : vector<1x8x8xf32> to vector<8x8xf32>
    %13 = arith.index_cast %c0_i32 : i32 to index
    %c0_20 = arith.constant 0 : index
    %c0_21 = arith.constant 0 : index
    %14 = vector.load %arg3[%13, %c0_20, %c0_21] : memref<7x8x8xf32, #tpu.memory_space<vmem>>, vector<1x8x8xf32>
    %15 = vector.shape_cast %14 : vector<1x8x8xf32> to vector<8x8xf32>
    %cst = arith.constant dense<0.000000e+00> : vector<8x32xf32>
    %16 = tpu.matmul %12, %9, %cst {dimension_numbers = #tpu.dot_dimension_numbers<[1], [0], [0], [1], [0, 0, 1, 1], [], []>} : vector<8x8xf32>, vector<8x32xf32>, vector<8x32xf32> -> vector<8x32xf32>
    %cst_22 = arith.constant dense<0.000000e+00> : vector<8x32xf32>
    %17 = tpu.matmul %16, %0, %cst_22 {dimension_numbers = #tpu.dot_dimension_numbers<[1], [0], [0], [1], [0, 0, 1, 1], [], []>} : vector<8x32xf32>, vector<32x32xf32>, vector<8x32xf32> -> vector<8x32xf32>
    %cst_23 = arith.constant dense<0.000000e+00> : vector<8x32xf32>
    %18 = tpu.matmul %15, %9, %cst_23 {dimension_numbers = #tpu.dot_dimension_numbers<[1], [0], [0], [1], [0, 0, 1, 1], [], []>} : vector<8x8xf32>, vector<8x32xf32>, vector<8x32xf32> -> vector<8x32xf32>
    %cst_24 = arith.constant dense<0.000000e+00> : vector<8x32xf32>
    %19 = tpu.matmul %18, %1, %cst_24 {dimension_numbers = #tpu.dot_dimension_numbers<[1], [0], [0], [1], [0, 0, 1, 1], [], []>} : vector<8x32xf32>, vector<32x32xf32>, vector<8x32xf32> -> vector<8x32xf32>
    %20 = arith.addf %17, %19 : vector<8x32xf32>
    %21 = vector.broadcast %2 : vector<1x32xf32> to vector<8x32xf32>
    %22 = arith.addf %20, %21 : vector<8x32xf32>
    %cst_25 = arith.constant dense<0.000000e+00> : vector<8x96xf32>
    %23 = tpu.matmul %22, %3, %cst_25 {dimension_numbers = #tpu.dot_dimension_numbers<[1], [0], [0], [1], [0, 0, 1, 1], [], []>} : vector<8x32xf32>, vector<32x96xf32>, vector<8x96xf32> -> vector<8x96xf32>
    %24 = vector.broadcast %4 : vector<1x96xf32> to vector<8x96xf32>
    %25 = arith.addf %23, %24 : vector<8x96xf32>
    %c0_26 = arith.constant 0 : index
    %26 = arith.index_cast %c0_i32 : i32 to index
    %c0_27 = arith.constant 0 : index
    %c0_28 = arith.constant 0 : index
    %27 = vector.load %arg1[%c0_26, %26, %c0_27, %c0_28] : memref<1x7x8x96xf32, #tpu.memory_space<vmem>>, vector<1x1x8x96xf32>
    %28 = vector.shape_cast %27 : vector<1x1x8x96xf32> to vector<8x96xf32>
    %29 = vector.extract_strided_slice %28 {offsets = [0, 0], sizes = [8, 32], strides = [1, 1]} : vector<8x96xf32> to vector<8x32xf32>
    %30 = vector.extract_strided_slice %25 {offsets = [0, 0], sizes = [8, 32], strides = [1, 1]} : vector<8x96xf32> to vector<8x32xf32>
    %31 = arith.addf %29, %30 : vector<8x32xf32>
    %32 = arith.negf %31 : vector<8x32xf32>
    %33 = math.exp %32 : vector<8x32xf32>
    %cst_29 = arith.constant 1.000000e+00 : f32
    %34 = vector.broadcast %cst_29 : f32 to vector<8x32xf32>
    %35 = arith.addf %34, %33 : vector<8x32xf32>
    %36 = arith.divf %34, %35 : vector<8x32xf32>
    %37 = vector.extract_strided_slice %28 {offsets = [0, 32], sizes = [8, 32], strides = [1, 1]} : vector<8x96xf32> to vector<8x32xf32>
    %38 = vector.extract_strided_slice %25 {offsets = [0, 32], sizes = [8, 32], strides = [1, 1]} : vector<8x96xf32> to vector<8x32xf32>
    %39 = arith.addf %37, %38 : vector<8x32xf32>
    %40 = arith.negf %39 : vector<8x32xf32>
    %41 = math.exp %40 : vector<8x32xf32>
    %cst_30 = arith.constant 1.000000e+00 : f32
    %42 = vector.broadcast %cst_30 : f32 to vector<8x32xf32>
    %43 = arith.addf %42, %41 : vector<8x32xf32>
    %44 = arith.divf %42, %43 : vector<8x32xf32>
    %45 = vector.extract_strided_slice %28 {offsets = [0, 64], sizes = [8, 32], strides = [1, 1]} : vector<8x96xf32> to vector<8x32xf32>
    %46 = vector.extract_strided_slice %25 {offsets = [0, 64], sizes = [8, 32], strides = [1, 1]} : vector<8x96xf32> to vector<8x32xf32>
    %47 = arith.mulf %36, %46 : vector<8x32xf32>
    %48 = arith.addf %45, %47 : vector<8x32xf32>
    %49 = math.tanh %48 : vector<8x32xf32>
    %cst_31 = arith.constant 1.000000e+00 : f32
    %50 = vector.broadcast %cst_31 : f32 to vector<8x32xf32>
    %51 = arith.subf %50, %44 : vector<8x32xf32>
    %52 = arith.mulf %51, %49 : vector<8x32xf32>
    %53 = arith.mulf %44, %22 : vector<8x32xf32>
    %54 = arith.addf %52, %53 : vector<8x32xf32>
    %cst_32 = arith.constant dense<0.000000e+00> : vector<8x4xf32>
    %55 = tpu.matmul %54, %5, %cst_32 {dimension_numbers = #tpu.dot_dimension_numbers<[1], [0], [0], [1], [0, 0, 1, 1], [], []>} : vector<8x32xf32>, vector<32x4xf32>, vector<8x4xf32> -> vector<8x4xf32>
    %56 = vector.broadcast %6 : vector<1x4xf32> to vector<8x4xf32>
    %57 = arith.addf %55, %56 : vector<8x4xf32>
    %c4_i32 = arith.constant 4 : i32
    %58 = arith.subi %c0_i32, %c4_i32 : i32
    %c0_i32_33 = arith.constant 0 : i32
    %59 = arith.maxsi %58, %c0_i32_33 : i32
    %c0_34 = arith.constant 0 : index
    %60 = arith.index_cast %59 : i32 to index
    %c0_35 = arith.constant 0 : index
    %c0_36 = arith.constant 0 : index
    %61 = vector.load %arg5[%c0_34, %60, %c0_35, %c0_36] : memref<1x3x8x4xf32, #tpu.memory_space<vmem>>, vector<1x1x8x4xf32>
    %62 = vector.shape_cast %61 : vector<1x1x8x4xf32> to vector<8x4xf32>
    %63 = arith.mulf %7, %57 : vector<8x4xf32>
    %64 = arith.addf %62, %63 : vector<8x4xf32>
    %c0_37 = arith.constant 0 : index
    %65 = arith.index_cast %59 : i32 to index
    %c0_38 = arith.constant 0 : index
    %c0_39 = arith.constant 0 : index
    %66 = vector.load %arg14[%c0_37, %65, %c0_38, %c0_39] : memref<1x3x8x4xf32, #tpu.memory_space<vmem>>, vector<1x1x8x4xf32>
    %67 = vector.shape_cast %66 : vector<1x1x8x4xf32> to vector<8x4xf32>
    %68 = vector.shape_cast %64 : vector<8x4xf32> to vector<1x1x8x4xf32>
    tpu.vector_store %arg14[%c0_37, %65, %c0_38, %c0_39], %68 {strides = array<i32>} : memref<1x3x8x4xf32, #tpu.memory_space<vmem>>, vector<1x1x8x4xf32>,
    %c1_i32 = arith.constant 1 : i32
    %69 = arith.index_cast %c1_i32 : i32 to index
    %c0_40 = arith.constant 0 : index
    %c0_41 = arith.constant 0 : index
    %70 = vector.load %arg2[%69, %c0_40, %c0_41] : memref<7x8x8xf32, #tpu.memory_space<vmem>>, vector<1x8x8xf32>
    %71 = vector.shape_cast %70 : vector<1x8x8xf32> to vector<8x8xf32>
    %72 = arith.index_cast %c1_i32 : i32 to index
    %c0_42 = arith.constant 0 : index
    %c0_43 = arith.constant 0 : index
    %73 = vector.load %arg3[%72, %c0_42, %c0_43] : memref<7x8x8xf32, #tpu.memory_space<vmem>>, vector<1x8x8xf32>
    %74 = vector.shape_cast %73 : vector<1x8x8xf32> to vector<8x8xf32>
    %cst_44 = arith.constant dense<0.000000e+00> : vector<8x32xf32>
    %75 = tpu.matmul %71, %54, %cst_44 {dimension_numbers = #tpu.dot_dimension_numbers<[1], [0], [0], [1], [0, 0, 1, 1], [], []>} : vector<8x8xf32>, vector<8x32xf32>, vector<8x32xf32> -> vector<8x32xf32>
    %cst_45 = arith.constant dense<0.000000e+00> : vector<8x32xf32>
    %76 = tpu.matmul %75, %0, %cst_45 {dimension_numbers = #tpu.dot_dimension_numbers<[1], [0], [0], [1], [0, 0, 1, 1], [], []>} : vector<8x32xf32>, vector<32x32xf32>, vector<8x32xf32> -> vector<8x32xf32>
    %cst_46 = arith.constant dense<0.000000e+00> : vector<8x32xf32>
    %77 = tpu.matmul %74, %54, %cst_46 {dimension_numbers = #tpu.dot_dimension_numbers<[1], [0], [0], [1], [0, 0, 1, 1], [], []>} : vector<8x8xf32>, vector<8x32xf32>, vector<8x32xf32> -> vector<8x32xf32>
    %cst_47 = arith.constant dense<0.000000e+00> : vector<8x32xf32>
    %78 = tpu.matmul %77, %1, %cst_47 {dimension_numbers = #tpu.dot_dimension_numbers<[1], [0], [0], [1], [0, 0, 1, 1], [], []>} : vector<8x32xf32>, vector<32x32xf32>, vector<8x32xf32> -> vector<8x32xf32>
    %79 = arith.addf %76, %78 : vector<8x32xf32>
    %80 = vector.broadcast %2 : vector<1x32xf32> to vector<8x32xf32>
    %81 = arith.addf %79, %80 : vector<8x32xf32>
    %cst_48 = arith.constant dense<0.000000e+00> : vector<8x96xf32>
    %82 = tpu.matmul %81, %3, %cst_48 {dimension_numbers = #tpu.dot_dimension_numbers<[1], [0], [0], [1], [0, 0, 1, 1], [], []>} : vector<8x32xf32>, vector<32x96xf32>, vector<8x96xf32> -> vector<8x96xf32>
    %83 = vector.broadcast %4 : vector<1x96xf32> to vector<8x96xf32>
    %84 = arith.addf %82, %83 : vector<8x96xf32>
    %c0_49 = arith.constant 0 : index
    %85 = arith.index_cast %c1_i32 : i32 to index
    %c0_50 = arith.constant 0 : index
    %c0_51 = arith.constant 0 : index
    %86 = vector.load %arg1[%c0_49, %85, %c0_50, %c0_51] : memref<1x7x8x96xf32, #tpu.memory_space<vmem>>, vector<1x1x8x96xf32>
    %87 = vector.shape_cast %86 : vector<1x1x8x96xf32> to vector<8x96xf32>
    %88 = vector.extract_strided_slice %87 {offsets = [0, 0], sizes = [8, 32], strides = [1, 1]} : vector<8x96xf32> to vector<8x32xf32>
    %89 = vector.extract_strided_slice %84 {offsets = [0, 0], sizes = [8, 32], strides = [1, 1]} : vector<8x96xf32> to vector<8x32xf32>
    %90 = arith.addf %88, %89 : vector<8x32xf32>
    %91 = arith.negf %90 : vector<8x32xf32>
    %92 = math.exp %91 : vector<8x32xf32>
    %cst_52 = arith.constant 1.000000e+00 : f32
    %93 = vector.broadcast %cst_52 : f32 to vector<8x32xf32>
    %94 = arith.addf %93, %92 : vector<8x32xf32>
    %95 = arith.divf %93, %94 : vector<8x32xf32>
    %96 = vector.extract_strided_slice %87 {offsets = [0, 32], sizes = [8, 32], strides = [1, 1]} : vector<8x96xf32> to vector<8x32xf32>
    %97 = vector.extract_strided_slice %84 {offsets = [0, 32], sizes = [8, 32], strides = [1, 1]} : vector<8x96xf32> to vector<8x32xf32>
    %98 = arith.addf %96, %97 : vector<8x32xf32>
    %99 = arith.negf %98 : vector<8x32xf32>
    %100 = math.exp %99 : vector<8x32xf32>
    %cst_53 = arith.constant 1.000000e+00 : f32
    %101 = vector.broadcast %cst_53 : f32 to vector<8x32xf32>
    %102 = arith.addf %101, %100 : vector<8x32xf32>
    %103 = arith.divf %101, %102 : vector<8x32xf32>
    %104 = vector.extract_strided_slice %87 {offsets = [0, 64], sizes = [8, 32], strides = [1, 1]} : vector<8x96xf32> to vector<8x32xf32>
    %105 = vector.extract_strided_slice %84 {offsets = [0, 64], sizes = [8, 32], strides = [1, 1]} : vector<8x96xf32> to vector<8x32xf32>
    %106 = arith.mulf %95, %105 : vector<8x32xf32>
    %107 = arith.addf %104, %106 : vector<8x32xf32>
    %108 = math.tanh %107 : vector<8x32xf32>
    %cst_54 = arith.constant 1.000000e+00 : f32
    %109 = vector.broadcast %cst_54 : f32 to vector<8x32xf32>
    %110 = arith.subf %109, %103 : vector<8x32xf32>
    %111 = arith.mulf %110, %108 : vector<8x32xf32>
    %112 = arith.mulf %103, %81 : vector<8x32xf32>
    %113 = arith.addf %111, %112 : vector<8x32xf32>
    %cst_55 = arith.constant dense<0.000000e+00> : vector<8x4xf32>
    %114 = tpu.matmul %113, %5, %cst_55 {dimension_numbers = #tpu.dot_dimension_numbers<[1], [0], [0], [1], [0, 0, 1, 1], [], []>} : vector<8x32xf32>, vector<32x4xf32>, vector<8x4xf32> -> vector<8x4xf32>
    %115 = vector.broadcast %6 : vector<1x4xf32> to vector<8x4xf32>
    %116 = arith.addf %114, %115 : vector<8x4xf32>
    %c4_i32_56 = arith.constant 4 : i32
    %117 = arith.subi %c1_i32, %c4_i32_56 : i32
    %c0_i32_57 = arith.constant 0 : i32
    %118 = arith.maxsi %117, %c0_i32_57 : i32
    %c0_58 = arith.constant 0 : index
    %119 = arith.index_cast %118 : i32 to index
    %c0_59 = arith.constant 0 : index
    %c0_60 = arith.constant 0 : index
    %120 = vector.load %arg5[%c0_58, %119, %c0_59, %c0_60] : memref<1x3x8x4xf32, #tpu.memory_space<vmem>>, vector<1x1x8x4xf32>
    %121 = vector.shape_cast %120 : vector<1x1x8x4xf32> to vector<8x4xf32>
    %122 = arith.mulf %7, %116 : vector<8x4xf32>
    %123 = arith.addf %121, %122 : vector<8x4xf32>
    %c0_61 = arith.constant 0 : index
    %124 = arith.index_cast %118 : i32 to index
    %c0_62 = arith.constant 0 : index
    %c0_63 = arith.constant 0 : index
    %125 = vector.load %arg14[%c0_61, %124, %c0_62, %c0_63] : memref<1x3x8x4xf32, #tpu.memory_space<vmem>>, vector<1x1x8x4xf32>
    %126 = vector.shape_cast %125 : vector<1x1x8x4xf32> to vector<8x4xf32>
    %127 = vector.shape_cast %123 : vector<8x4xf32> to vector<1x1x8x4xf32>
    tpu.vector_store %arg14[%c0_61, %124, %c0_62, %c0_63], %127 {strides = array<i32>} : memref<1x3x8x4xf32, #tpu.memory_space<vmem>>, vector<1x1x8x4xf32>,
    %c2_i32 = arith.constant 2 : i32
    %128 = arith.index_cast %c2_i32 : i32 to index
    %c0_64 = arith.constant 0 : index
    %c0_65 = arith.constant 0 : index
    %129 = vector.load %arg2[%128, %c0_64, %c0_65] : memref<7x8x8xf32, #tpu.memory_space<vmem>>, vector<1x8x8xf32>
    %130 = vector.shape_cast %129 : vector<1x8x8xf32> to vector<8x8xf32>
    %131 = arith.index_cast %c2_i32 : i32 to index
    %c0_66 = arith.constant 0 : index
    %c0_67 = arith.constant 0 : index
    %132 = vector.load %arg3[%131, %c0_66, %c0_67] : memref<7x8x8xf32, #tpu.memory_space<vmem>>, vector<1x8x8xf32>
    %133 = vector.shape_cast %132 : vector<1x8x8xf32> to vector<8x8xf32>
    %cst_68 = arith.constant dense<0.000000e+00> : vector<8x32xf32>
    %134 = tpu.matmul %130, %113, %cst_68 {dimension_numbers = #tpu.dot_dimension_numbers<[1], [0], [0], [1], [0, 0, 1, 1], [], []>} : vector<8x8xf32>, vector<8x32xf32>, vector<8x32xf32> -> vector<8x32xf32>
    %cst_69 = arith.constant dense<0.000000e+00> : vector<8x32xf32>
    %135 = tpu.matmul %134, %0, %cst_69 {dimension_numbers = #tpu.dot_dimension_numbers<[1], [0], [0], [1], [0, 0, 1, 1], [], []>} : vector<8x32xf32>, vector<32x32xf32>, vector<8x32xf32> -> vector<8x32xf32>
    %cst_70 = arith.constant dense<0.000000e+00> : vector<8x32xf32>
    %136 = tpu.matmul %133, %113, %cst_70 {dimension_numbers = #tpu.dot_dimension_numbers<[1], [0], [0], [1], [0, 0, 1, 1], [], []>} : vector<8x8xf32>, vector<8x32xf32>, vector<8x32xf32> -> vector<8x32xf32>
    %cst_71 = arith.constant dense<0.000000e+00> : vector<8x32xf32>
    %137 = tpu.matmul %136, %1, %cst_71 {dimension_numbers = #tpu.dot_dimension_numbers<[1], [0], [0], [1], [0, 0, 1, 1], [], []>} : vector<8x32xf32>, vector<32x32xf32>, vector<8x32xf32> -> vector<8x32xf32>
    %138 = arith.addf %135, %137 : vector<8x32xf32>
    %139 = vector.broadcast %2 : vector<1x32xf32> to vector<8x32xf32>
    %140 = arith.addf %138, %139 : vector<8x32xf32>
    %cst_72 = arith.constant dense<0.000000e+00> : vector<8x96xf32>
    %141 = tpu.matmul %140, %3, %cst_72 {dimension_numbers = #tpu.dot_dimension_numbers<[1], [0], [0], [1], [0, 0, 1, 1], [], []>} : vector<8x32xf32>, vector<32x96xf32>, vector<8x96xf32> -> vector<8x96xf32>
    %142 = vector.broadcast %4 : vector<1x96xf32> to vector<8x96xf32>
    %143 = arith.addf %141, %142 : vector<8x96xf32>
    %c0_73 = arith.constant 0 : index
    %144 = arith.index_cast %c2_i32 : i32 to index
    %c0_74 = arith.constant 0 : index
    %c0_75 = arith.constant 0 : index
    %145 = vector.load %arg1[%c0_73, %144, %c0_74, %c0_75] : memref<1x7x8x96xf32, #tpu.memory_space<vmem>>, vector<1x1x8x96xf32>
    %146 = vector.shape_cast %145 : vector<1x1x8x96xf32> to vector<8x96xf32>
    %147 = vector.extract_strided_slice %146 {offsets = [0, 0], sizes = [8, 32], strides = [1, 1]} : vector<8x96xf32> to vector<8x32xf32>
    %148 = vector.extract_strided_slice %143 {offsets = [0, 0], sizes = [8, 32], strides = [1, 1]} : vector<8x96xf32> to vector<8x32xf32>
    %149 = arith.addf %147, %148 : vector<8x32xf32>
    %150 = arith.negf %149 : vector<8x32xf32>
    %151 = math.exp %150 : vector<8x32xf32>
    %cst_76 = arith.constant 1.000000e+00 : f32
    %152 = vector.broadcast %cst_76 : f32 to vector<8x32xf32>
    %153 = arith.addf %152, %151 : vector<8x32xf32>
    %154 = arith.divf %152, %153 : vector<8x32xf32>
    %155 = vector.extract_strided_slice %146 {offsets = [0, 32], sizes = [8, 32], strides = [1, 1]} : vector<8x96xf32> to vector<8x32xf32>
    %156 = vector.extract_strided_slice %143 {offsets = [0, 32], sizes = [8, 32], strides = [1, 1]} : vector<8x96xf32> to vector<8x32xf32>
    %157 = arith.addf %155, %156 : vector<8x32xf32>
    %158 = arith.negf %157 : vector<8x32xf32>
    %159 = math.exp %158 : vector<8x32xf32>
    %cst_77 = arith.constant 1.000000e+00 : f32
    %160 = vector.broadcast %cst_77 : f32 to vector<8x32xf32>
    %161 = arith.addf %160, %159 : vector<8x32xf32>
    %162 = arith.divf %160, %161 : vector<8x32xf32>
    %163 = vector.extract_strided_slice %146 {offsets = [0, 64], sizes = [8, 32], strides = [1, 1]} : vector<8x96xf32> to vector<8x32xf32>
    %164 = vector.extract_strided_slice %143 {offsets = [0, 64], sizes = [8, 32], strides = [1, 1]} : vector<8x96xf32> to vector<8x32xf32>
    %165 = arith.mulf %154, %164 : vector<8x32xf32>
    %166 = arith.addf %163, %165 : vector<8x32xf32>
    %167 = math.tanh %166 : vector<8x32xf32>
    %cst_78 = arith.constant 1.000000e+00 : f32
    %168 = vector.broadcast %cst_78 : f32 to vector<8x32xf32>
    %169 = arith.subf %168, %162 : vector<8x32xf32>
    %170 = arith.mulf %169, %167 : vector<8x32xf32>
    %171 = arith.mulf %162, %140 : vector<8x32xf32>
    %172 = arith.addf %170, %171 : vector<8x32xf32>
    %cst_79 = arith.constant dense<0.000000e+00> : vector<8x4xf32>
    %173 = tpu.matmul %172, %5, %cst_79 {dimension_numbers = #tpu.dot_dimension_numbers<[1], [0], [0], [1], [0, 0, 1, 1], [], []>} : vector<8x32xf32>, vector<32x4xf32>, vector<8x4xf32> -> vector<8x4xf32>
    %174 = vector.broadcast %6 : vector<1x4xf32> to vector<8x4xf32>
    %175 = arith.addf %173, %174 : vector<8x4xf32>
    %c4_i32_80 = arith.constant 4 : i32
    %176 = arith.subi %c2_i32, %c4_i32_80 : i32
    %c0_i32_81 = arith.constant 0 : i32
    %177 = arith.maxsi %176, %c0_i32_81 : i32
    %c0_82 = arith.constant 0 : index
    %178 = arith.index_cast %177 : i32 to index
    %c0_83 = arith.constant 0 : index
    %c0_84 = arith.constant 0 : index
    %179 = vector.load %arg5[%c0_82, %178, %c0_83, %c0_84] : memref<1x3x8x4xf32, #tpu.memory_space<vmem>>, vector<1x1x8x4xf32>
    %180 = vector.shape_cast %179 : vector<1x1x8x4xf32> to vector<8x4xf32>
    %181 = arith.mulf %7, %175 : vector<8x4xf32>
    %182 = arith.addf %180, %181 : vector<8x4xf32>
    %c0_85 = arith.constant 0 : index
    %183 = arith.index_cast %177 : i32 to index
    %c0_86 = arith.constant 0 : index
    %c0_87 = arith.constant 0 : index
    %184 = vector.load %arg14[%c0_85, %183, %c0_86, %c0_87] : memref<1x3x8x4xf32, #tpu.memory_space<vmem>>, vector<1x1x8x4xf32>
    %185 = vector.shape_cast %184 : vector<1x1x8x4xf32> to vector<8x4xf32>
    %186 = vector.shape_cast %182 : vector<8x4xf32> to vector<1x1x8x4xf32>
    tpu.vector_store %arg14[%c0_85, %183, %c0_86, %c0_87], %186 {strides = array<i32>} : memref<1x3x8x4xf32, #tpu.memory_space<vmem>>, vector<1x1x8x4xf32>,
    %c3_i32 = arith.constant 3 : i32
    %187 = arith.index_cast %c3_i32 : i32 to index
    %c0_88 = arith.constant 0 : index
    %c0_89 = arith.constant 0 : index
    %188 = vector.load %arg2[%187, %c0_88, %c0_89] : memref<7x8x8xf32, #tpu.memory_space<vmem>>, vector<1x8x8xf32>
    %189 = vector.shape_cast %188 : vector<1x8x8xf32> to vector<8x8xf32>
    %190 = arith.index_cast %c3_i32 : i32 to index
    %c0_90 = arith.constant 0 : index
    %c0_91 = arith.constant 0 : index
    %191 = vector.load %arg3[%190, %c0_90, %c0_91] : memref<7x8x8xf32, #tpu.memory_space<vmem>>, vector<1x8x8xf32>
    %192 = vector.shape_cast %191 : vector<1x8x8xf32> to vector<8x8xf32>
    %cst_92 = arith.constant dense<0.000000e+00> : vector<8x32xf32>
    %193 = tpu.matmul %189, %172, %cst_92 {dimension_numbers = #tpu.dot_dimension_numbers<[1], [0], [0], [1], [0, 0, 1, 1], [], []>} : vector<8x8xf32>, vector<8x32xf32>, vector<8x32xf32> -> vector<8x32xf32>
    %cst_93 = arith.constant dense<0.000000e+00> : vector<8x32xf32>
    %194 = tpu.matmul %193, %0, %cst_93 {dimension_numbers = #tpu.dot_dimension_numbers<[1], [0], [0], [1], [0, 0, 1, 1], [], []>} : vector<8x32xf32>, vector<32x32xf32>, vector<8x32xf32> -> vector<8x32xf32>
    %cst_94 = arith.constant dense<0.000000e+00> : vector<8x32xf32>
    %195 = tpu.matmul %192, %172, %cst_94 {dimension_numbers = #tpu.dot_dimension_numbers<[1], [0], [0], [1], [0, 0, 1, 1], [], []>} : vector<8x8xf32>, vector<8x32xf32>, vector<8x32xf32> -> vector<8x32xf32>
    %cst_95 = arith.constant dense<0.000000e+00> : vector<8x32xf32>
    %196 = tpu.matmul %195, %1, %cst_95 {dimension_numbers = #tpu.dot_dimension_numbers<[1], [0], [0], [1], [0, 0, 1, 1], [], []>} : vector<8x32xf32>, vector<32x32xf32>, vector<8x32xf32> -> vector<8x32xf32>
    %197 = arith.addf %194, %196 : vector<8x32xf32>
    %198 = vector.broadcast %2 : vector<1x32xf32> to vector<8x32xf32>
    %199 = arith.addf %197, %198 : vector<8x32xf32>
    %cst_96 = arith.constant dense<0.000000e+00> : vector<8x96xf32>
    %200 = tpu.matmul %199, %3, %cst_96 {dimension_numbers = #tpu.dot_dimension_numbers<[1], [0], [0], [1], [0, 0, 1, 1], [], []>} : vector<8x32xf32>, vector<32x96xf32>, vector<8x96xf32> -> vector<8x96xf32>
    %201 = vector.broadcast %4 : vector<1x96xf32> to vector<8x96xf32>
    %202 = arith.addf %200, %201 : vector<8x96xf32>
    %c0_97 = arith.constant 0 : index
    %203 = arith.index_cast %c3_i32 : i32 to index
    %c0_98 = arith.constant 0 : index
    %c0_99 = arith.constant 0 : index
    %204 = vector.load %arg1[%c0_97, %203, %c0_98, %c0_99] : memref<1x7x8x96xf32, #tpu.memory_space<vmem>>, vector<1x1x8x96xf32>
    %205 = vector.shape_cast %204 : vector<1x1x8x96xf32> to vector<8x96xf32>
    %206 = vector.extract_strided_slice %205 {offsets = [0, 0], sizes = [8, 32], strides = [1, 1]} : vector<8x96xf32> to vector<8x32xf32>
    %207 = vector.extract_strided_slice %202 {offsets = [0, 0], sizes = [8, 32], strides = [1, 1]} : vector<8x96xf32> to vector<8x32xf32>
    %208 = arith.addf %206, %207 : vector<8x32xf32>
    %209 = arith.negf %208 : vector<8x32xf32>
    %210 = math.exp %209 : vector<8x32xf32>
    %cst_100 = arith.constant 1.000000e+00 : f32
    %211 = vector.broadcast %cst_100 : f32 to vector<8x32xf32>
    %212 = arith.addf %211, %210 : vector<8x32xf32>
    %213 = arith.divf %211, %212 : vector<8x32xf32>
    %214 = vector.extract_strided_slice %205 {offsets = [0, 32], sizes = [8, 32], strides = [1, 1]} : vector<8x96xf32> to vector<8x32xf32>
    %215 = vector.extract_strided_slice %202 {offsets = [0, 32], sizes = [8, 32], strides = [1, 1]} : vector<8x96xf32> to vector<8x32xf32>
    %216 = arith.addf %214, %215 : vector<8x32xf32>
    %217 = arith.negf %216 : vector<8x32xf32>
    %218 = math.exp %217 : vector<8x32xf32>
    %cst_101 = arith.constant 1.000000e+00 : f32
    %219 = vector.broadcast %cst_101 : f32 to vector<8x32xf32>
    %220 = arith.addf %219, %218 : vector<8x32xf32>
    %221 = arith.divf %219, %220 : vector<8x32xf32>
    %222 = vector.extract_strided_slice %205 {offsets = [0, 64], sizes = [8, 32], strides = [1, 1]} : vector<8x96xf32> to vector<8x32xf32>
    %223 = vector.extract_strided_slice %202 {offsets = [0, 64], sizes = [8, 32], strides = [1, 1]} : vector<8x96xf32> to vector<8x32xf32>
    %224 = arith.mulf %213, %223 : vector<8x32xf32>
    %225 = arith.addf %222, %224 : vector<8x32xf32>
    %226 = math.tanh %225 : vector<8x32xf32>
    %cst_102 = arith.constant 1.000000e+00 : f32
    %227 = vector.broadcast %cst_102 : f32 to vector<8x32xf32>
    %228 = arith.subf %227, %221 : vector<8x32xf32>
    %229 = arith.mulf %228, %226 : vector<8x32xf32>
    %230 = arith.mulf %221, %199 : vector<8x32xf32>
    %231 = arith.addf %229, %230 : vector<8x32xf32>
    %cst_103 = arith.constant dense<0.000000e+00> : vector<8x4xf32>
    %232 = tpu.matmul %231, %5, %cst_103 {dimension_numbers = #tpu.dot_dimension_numbers<[1], [0], [0], [1], [0, 0, 1, 1], [], []>} : vector<8x32xf32>, vector<32x4xf32>, vector<8x4xf32> -> vector<8x4xf32>
    %233 = vector.broadcast %6 : vector<1x4xf32> to vector<8x4xf32>
    %234 = arith.addf %232, %233 : vector<8x4xf32>
    %c4_i32_104 = arith.constant 4 : i32
    %235 = arith.subi %c3_i32, %c4_i32_104 : i32
    %c0_i32_105 = arith.constant 0 : i32
    %236 = arith.maxsi %235, %c0_i32_105 : i32
    %c0_106 = arith.constant 0 : index
    %237 = arith.index_cast %236 : i32 to index
    %c0_107 = arith.constant 0 : index
    %c0_108 = arith.constant 0 : index
    %238 = vector.load %arg5[%c0_106, %237, %c0_107, %c0_108] : memref<1x3x8x4xf32, #tpu.memory_space<vmem>>, vector<1x1x8x4xf32>
    %239 = vector.shape_cast %238 : vector<1x1x8x4xf32> to vector<8x4xf32>
    %240 = arith.mulf %7, %234 : vector<8x4xf32>
    %241 = arith.addf %239, %240 : vector<8x4xf32>
    %c0_109 = arith.constant 0 : index
    %242 = arith.index_cast %236 : i32 to index
    %c0_110 = arith.constant 0 : index
    %c0_111 = arith.constant 0 : index
    %243 = vector.load %arg14[%c0_109, %242, %c0_110, %c0_111] : memref<1x3x8x4xf32, #tpu.memory_space<vmem>>, vector<1x1x8x4xf32>
    %244 = vector.shape_cast %243 : vector<1x1x8x4xf32> to vector<8x4xf32>
    %245 = vector.shape_cast %241 : vector<8x4xf32> to vector<1x1x8x4xf32>
    tpu.vector_store %arg14[%c0_109, %242, %c0_110, %c0_111], %245 {strides = array<i32>} : memref<1x3x8x4xf32, #tpu.memory_space<vmem>>, vector<1x1x8x4xf32>,
    %c4_i32_112 = arith.constant 4 : i32
    %246 = arith.index_cast %c4_i32_112 : i32 to index
    %c0_113 = arith.constant 0 : index
    %c0_114 = arith.constant 0 : index
    %247 = vector.load %arg2[%246, %c0_113, %c0_114] : memref<7x8x8xf32, #tpu.memory_space<vmem>>, vector<1x8x8xf32>
    %248 = vector.shape_cast %247 : vector<1x8x8xf32> to vector<8x8xf32>
    %249 = arith.index_cast %c4_i32_112 : i32 to index
    %c0_115 = arith.constant 0 : index
    %c0_116 = arith.constant 0 : index
    %250 = vector.load %arg3[%249, %c0_115, %c0_116] : memref<7x8x8xf32, #tpu.memory_space<vmem>>, vector<1x8x8xf32>
    %251 = vector.shape_cast %250 : vector<1x8x8xf32> to vector<8x8xf32>
    %cst_117 = arith.constant dense<0.000000e+00> : vector<8x32xf32>
    %252 = tpu.matmul %248, %231, %cst_117 {dimension_numbers = #tpu.dot_dimension_numbers<[1], [0], [0], [1], [0, 0, 1, 1], [], []>} : vector<8x8xf32>, vector<8x32xf32>, vector<8x32xf32> -> vector<8x32xf32>
    %cst_118 = arith.constant dense<0.000000e+00> : vector<8x32xf32>
    %253 = tpu.matmul %252, %0, %cst_118 {dimension_numbers = #tpu.dot_dimension_numbers<[1], [0], [0], [1], [0, 0, 1, 1], [], []>} : vector<8x32xf32>, vector<32x32xf32>, vector<8x32xf32> -> vector<8x32xf32>
    %cst_119 = arith.constant dense<0.000000e+00> : vector<8x32xf32>
    %254 = tpu.matmul %251, %231, %cst_119 {dimension_numbers = #tpu.dot_dimension_numbers<[1], [0], [0], [1], [0, 0, 1, 1], [], []>} : vector<8x8xf32>, vector<8x32xf32>, vector<8x32xf32> -> vector<8x32xf32>
    %cst_120 = arith.constant dense<0.000000e+00> : vector<8x32xf32>
    %255 = tpu.matmul %254, %1, %cst_120 {dimension_numbers = #tpu.dot_dimension_numbers<[1], [0], [0], [1], [0, 0, 1, 1], [], []>} : vector<8x32xf32>, vector<32x32xf32>, vector<8x32xf32> -> vector<8x32xf32>
    %256 = arith.addf %253, %255 : vector<8x32xf32>
    %257 = vector.broadcast %2 : vector<1x32xf32> to vector<8x32xf32>
    %258 = arith.addf %256, %257 : vector<8x32xf32>
    %cst_121 = arith.constant dense<0.000000e+00> : vector<8x96xf32>
    %259 = tpu.matmul %258, %3, %cst_121 {dimension_numbers = #tpu.dot_dimension_numbers<[1], [0], [0], [1], [0, 0, 1, 1], [], []>} : vector<8x32xf32>, vector<32x96xf32>, vector<8x96xf32> -> vector<8x96xf32>
    %260 = vector.broadcast %4 : vector<1x96xf32> to vector<8x96xf32>
    %261 = arith.addf %259, %260 : vector<8x96xf32>
    %c0_122 = arith.constant 0 : index
    %262 = arith.index_cast %c4_i32_112 : i32 to index
    %c0_123 = arith.constant 0 : index
    %c0_124 = arith.constant 0 : index
    %263 = vector.load %arg1[%c0_122, %262, %c0_123, %c0_124] : memref<1x7x8x96xf32, #tpu.memory_space<vmem>>, vector<1x1x8x96xf32>
    %264 = vector.shape_cast %263 : vector<1x1x8x96xf32> to vector<8x96xf32>
    %265 = vector.extract_strided_slice %264 {offsets = [0, 0], sizes = [8, 32], strides = [1, 1]} : vector<8x96xf32> to vector<8x32xf32>
    %266 = vector.extract_strided_slice %261 {offsets = [0, 0], sizes = [8, 32], strides = [1, 1]} : vector<8x96xf32> to vector<8x32xf32>
    %267 = arith.addf %265, %266 : vector<8x32xf32>
    %268 = arith.negf %267 : vector<8x32xf32>
    %269 = math.exp %268 : vector<8x32xf32>
    %cst_125 = arith.constant 1.000000e+00 : f32
    %270 = vector.broadcast %cst_125 : f32 to vector<8x32xf32>
    %271 = arith.addf %270, %269 : vector<8x32xf32>
    %272 = arith.divf %270, %271 : vector<8x32xf32>
    %273 = vector.extract_strided_slice %264 {offsets = [0, 32], sizes = [8, 32], strides = [1, 1]} : vector<8x96xf32> to vector<8x32xf32>
    %274 = vector.extract_strided_slice %261 {offsets = [0, 32], sizes = [8, 32], strides = [1, 1]} : vector<8x96xf32> to vector<8x32xf32>
    %275 = arith.addf %273, %274 : vector<8x32xf32>
    %276 = arith.negf %275 : vector<8x32xf32>
    %277 = math.exp %276 : vector<8x32xf32>
    %cst_126 = arith.constant 1.000000e+00 : f32
    %278 = vector.broadcast %cst_126 : f32 to vector<8x32xf32>
    %279 = arith.addf %278, %277 : vector<8x32xf32>
    %280 = arith.divf %278, %279 : vector<8x32xf32>
    %281 = vector.extract_strided_slice %264 {offsets = [0, 64], sizes = [8, 32], strides = [1, 1]} : vector<8x96xf32> to vector<8x32xf32>
    %282 = vector.extract_strided_slice %261 {offsets = [0, 64], sizes = [8, 32], strides = [1, 1]} : vector<8x96xf32> to vector<8x32xf32>
    %283 = arith.mulf %272, %282 : vector<8x32xf32>
    %284 = arith.addf %281, %283 : vector<8x32xf32>
    %285 = math.tanh %284 : vector<8x32xf32>
    %cst_127 = arith.constant 1.000000e+00 : f32
    %286 = vector.broadcast %cst_127 : f32 to vector<8x32xf32>
    %287 = arith.subf %286, %280 : vector<8x32xf32>
    %288 = arith.mulf %287, %285 : vector<8x32xf32>
    %289 = arith.mulf %280, %258 : vector<8x32xf32>
    %290 = arith.addf %288, %289 : vector<8x32xf32>
    %cst_128 = arith.constant dense<0.000000e+00> : vector<8x4xf32>
    %291 = tpu.matmul %290, %5, %cst_128 {dimension_numbers = #tpu.dot_dimension_numbers<[1], [0], [0], [1], [0, 0, 1, 1], [], []>} : vector<8x32xf32>, vector<32x4xf32>, vector<8x4xf32> -> vector<8x4xf32>
    %292 = vector.broadcast %6 : vector<1x4xf32> to vector<8x4xf32>
    %293 = arith.addf %291, %292 : vector<8x4xf32>
    %c4_i32_129 = arith.constant 4 : i32
    %294 = arith.subi %c4_i32_112, %c4_i32_129 : i32
    %c0_i32_130 = arith.constant 0 : i32
    %295 = arith.maxsi %294, %c0_i32_130 : i32
    %c0_131 = arith.constant 0 : index
    %296 = arith.index_cast %295 : i32 to index
    %c0_132 = arith.constant 0 : index
    %c0_133 = arith.constant 0 : index
    %297 = vector.load %arg5[%c0_131, %296, %c0_132, %c0_133] : memref<1x3x8x4xf32, #tpu.memory_space<vmem>>, vector<1x1x8x4xf32>
    %298 = vector.shape_cast %297 : vector<1x1x8x4xf32> to vector<8x4xf32>
    %299 = arith.mulf %7, %293 : vector<8x4xf32>
    %300 = arith.addf %298, %299 : vector<8x4xf32>
    %c0_134 = arith.constant 0 : index
    %301 = arith.index_cast %295 : i32 to index
    %c0_135 = arith.constant 0 : index
    %c0_136 = arith.constant 0 : index
    %302 = vector.load %arg14[%c0_134, %301, %c0_135, %c0_136] : memref<1x3x8x4xf32, #tpu.memory_space<vmem>>, vector<1x1x8x4xf32>
    %303 = vector.shape_cast %302 : vector<1x1x8x4xf32> to vector<8x4xf32>
    %304 = vector.shape_cast %300 : vector<8x4xf32> to vector<1x1x8x4xf32>
    tpu.vector_store %arg14[%c0_134, %301, %c0_135, %c0_136], %304 {strides = array<i32>} : memref<1x3x8x4xf32, #tpu.memory_space<vmem>>, vector<1x1x8x4xf32>,
    %c5_i32 = arith.constant 5 : i32
    %305 = arith.index_cast %c5_i32 : i32 to index
    %c0_137 = arith.constant 0 : index
    %c0_138 = arith.constant 0 : index
    %306 = vector.load %arg2[%305, %c0_137, %c0_138] : memref<7x8x8xf32, #tpu.memory_space<vmem>>, vector<1x8x8xf32>
    %307 = vector.shape_cast %306 : vector<1x8x8xf32> to vector<8x8xf32>
    %308 = arith.index_cast %c5_i32 : i32 to index
    %c0_139 = arith.constant 0 : index
    %c0_140 = arith.constant 0 : index
    %309 = vector.load %arg3[%308, %c0_139, %c0_140] : memref<7x8x8xf32, #tpu.memory_space<vmem>>, vector<1x8x8xf32>
    %310 = vector.shape_cast %309 : vector<1x8x8xf32> to vector<8x8xf32>
    %cst_141 = arith.constant dense<0.000000e+00> : vector<8x32xf32>
    %311 = tpu.matmul %307, %290, %cst_141 {dimension_numbers = #tpu.dot_dimension_numbers<[1], [0], [0], [1], [0, 0, 1, 1], [], []>} : vector<8x8xf32>, vector<8x32xf32>, vector<8x32xf32> -> vector<8x32xf32>
    %cst_142 = arith.constant dense<0.000000e+00> : vector<8x32xf32>
    %312 = tpu.matmul %311, %0, %cst_142 {dimension_numbers = #tpu.dot_dimension_numbers<[1], [0], [0], [1], [0, 0, 1, 1], [], []>} : vector<8x32xf32>, vector<32x32xf32>, vector<8x32xf32> -> vector<8x32xf32>
    %cst_143 = arith.constant dense<0.000000e+00> : vector<8x32xf32>
    %313 = tpu.matmul %310, %290, %cst_143 {dimension_numbers = #tpu.dot_dimension_numbers<[1], [0], [0], [1], [0, 0, 1, 1], [], []>} : vector<8x8xf32>, vector<8x32xf32>, vector<8x32xf32> -> vector<8x32xf32>
    %cst_144 = arith.constant dense<0.000000e+00> : vector<8x32xf32>
    %314 = tpu.matmul %313, %1, %cst_144 {dimension_numbers = #tpu.dot_dimension_numbers<[1], [0], [0], [1], [0, 0, 1, 1], [], []>} : vector<8x32xf32>, vector<32x32xf32>, vector<8x32xf32> -> vector<8x32xf32>
    %315 = arith.addf %312, %314 : vector<8x32xf32>
    %316 = vector.broadcast %2 : vector<1x32xf32> to vector<8x32xf32>
    %317 = arith.addf %315, %316 : vector<8x32xf32>
    %cst_145 = arith.constant dense<0.000000e+00> : vector<8x96xf32>
    %318 = tpu.matmul %317, %3, %cst_145 {dimension_numbers = #tpu.dot_dimension_numbers<[1], [0], [0], [1], [0, 0, 1, 1], [], []>} : vector<8x32xf32>, vector<32x96xf32>, vector<8x96xf32> -> vector<8x96xf32>
    %319 = vector.broadcast %4 : vector<1x96xf32> to vector<8x96xf32>
    %320 = arith.addf %318, %319 : vector<8x96xf32>
    %c0_146 = arith.constant 0 : index
    %321 = arith.index_cast %c5_i32 : i32 to index
    %c0_147 = arith.constant 0 : index
    %c0_148 = arith.constant 0 : index
    %322 = vector.load %arg1[%c0_146, %321, %c0_147, %c0_148] : memref<1x7x8x96xf32, #tpu.memory_space<vmem>>, vector<1x1x8x96xf32>
    %323 = vector.shape_cast %322 : vector<1x1x8x96xf32> to vector<8x96xf32>
    %324 = vector.extract_strided_slice %323 {offsets = [0, 0], sizes = [8, 32], strides = [1, 1]} : vector<8x96xf32> to vector<8x32xf32>
    %325 = vector.extract_strided_slice %320 {offsets = [0, 0], sizes = [8, 32], strides = [1, 1]} : vector<8x96xf32> to vector<8x32xf32>
    %326 = arith.addf %324, %325 : vector<8x32xf32>
    %327 = arith.negf %326 : vector<8x32xf32>
    %328 = math.exp %327 : vector<8x32xf32>
    %cst_149 = arith.constant 1.000000e+00 : f32
    %329 = vector.broadcast %cst_149 : f32 to vector<8x32xf32>
    %330 = arith.addf %329, %328 : vector<8x32xf32>
    %331 = arith.divf %329, %330 : vector<8x32xf32>
    %332 = vector.extract_strided_slice %323 {offsets = [0, 32], sizes = [8, 32], strides = [1, 1]} : vector<8x96xf32> to vector<8x32xf32>
    %333 = vector.extract_strided_slice %320 {offsets = [0, 32], sizes = [8, 32], strides = [1, 1]} : vector<8x96xf32> to vector<8x32xf32>
    %334 = arith.addf %332, %333 : vector<8x32xf32>
    %335 = arith.negf %334 : vector<8x32xf32>
    %336 = math.exp %335 : vector<8x32xf32>
    %cst_150 = arith.constant 1.000000e+00 : f32
    %337 = vector.broadcast %cst_150 : f32 to vector<8x32xf32>
    %338 = arith.addf %337, %336 : vector<8x32xf32>
    %339 = arith.divf %337, %338 : vector<8x32xf32>
    %340 = vector.extract_strided_slice %323 {offsets = [0, 64], sizes = [8, 32], strides = [1, 1]} : vector<8x96xf32> to vector<8x32xf32>
    %341 = vector.extract_strided_slice %320 {offsets = [0, 64], sizes = [8, 32], strides = [1, 1]} : vector<8x96xf32> to vector<8x32xf32>
    %342 = arith.mulf %331, %341 : vector<8x32xf32>
    %343 = arith.addf %340, %342 : vector<8x32xf32>
    %344 = math.tanh %343 : vector<8x32xf32>
    %cst_151 = arith.constant 1.000000e+00 : f32
    %345 = vector.broadcast %cst_151 : f32 to vector<8x32xf32>
    %346 = arith.subf %345, %339 : vector<8x32xf32>
    %347 = arith.mulf %346, %344 : vector<8x32xf32>
    %348 = arith.mulf %339, %317 : vector<8x32xf32>
    %349 = arith.addf %347, %348 : vector<8x32xf32>
    %cst_152 = arith.constant dense<0.000000e+00> : vector<8x4xf32>
    %350 = tpu.matmul %349, %5, %cst_152 {dimension_numbers = #tpu.dot_dimension_numbers<[1], [0], [0], [1], [0, 0, 1, 1], [], []>} : vector<8x32xf32>, vector<32x4xf32>, vector<8x4xf32> -> vector<8x4xf32>
    %351 = vector.broadcast %6 : vector<1x4xf32> to vector<8x4xf32>
    %352 = arith.addf %350, %351 : vector<8x4xf32>
    %c4_i32_153 = arith.constant 4 : i32
    %353 = arith.subi %c5_i32, %c4_i32_153 : i32
    %c0_i32_154 = arith.constant 0 : i32
    %354 = arith.maxsi %353, %c0_i32_154 : i32
    %c0_155 = arith.constant 0 : index
    %355 = arith.index_cast %354 : i32 to index
    %c0_156 = arith.constant 0 : index
    %c0_157 = arith.constant 0 : index
    %356 = vector.load %arg5[%c0_155, %355, %c0_156, %c0_157] : memref<1x3x8x4xf32, #tpu.memory_space<vmem>>, vector<1x1x8x4xf32>
    %357 = vector.shape_cast %356 : vector<1x1x8x4xf32> to vector<8x4xf32>
    %358 = arith.mulf %7, %352 : vector<8x4xf32>
    %359 = arith.addf %357, %358 : vector<8x4xf32>
    %c0_158 = arith.constant 0 : index
    %360 = arith.index_cast %354 : i32 to index
    %c0_159 = arith.constant 0 : index
    %c0_160 = arith.constant 0 : index
    %361 = vector.load %arg14[%c0_158, %360, %c0_159, %c0_160] : memref<1x3x8x4xf32, #tpu.memory_space<vmem>>, vector<1x1x8x4xf32>
    %362 = vector.shape_cast %361 : vector<1x1x8x4xf32> to vector<8x4xf32>
    %363 = vector.shape_cast %359 : vector<8x4xf32> to vector<1x1x8x4xf32>
    tpu.vector_store %arg14[%c0_158, %360, %c0_159, %c0_160], %363 {strides = array<i32>} : memref<1x3x8x4xf32, #tpu.memory_space<vmem>>, vector<1x1x8x4xf32>,
    %c6_i32 = arith.constant 6 : i32
    %364 = arith.index_cast %c6_i32 : i32 to index
    %c0_161 = arith.constant 0 : index
    %c0_162 = arith.constant 0 : index
    %365 = vector.load %arg2[%364, %c0_161, %c0_162] : memref<7x8x8xf32, #tpu.memory_space<vmem>>, vector<1x8x8xf32>
    %366 = vector.shape_cast %365 : vector<1x8x8xf32> to vector<8x8xf32>
    %367 = arith.index_cast %c6_i32 : i32 to index
    %c0_163 = arith.constant 0 : index
    %c0_164 = arith.constant 0 : index
    %368 = vector.load %arg3[%367, %c0_163, %c0_164] : memref<7x8x8xf32, #tpu.memory_space<vmem>>, vector<1x8x8xf32>
    %369 = vector.shape_cast %368 : vector<1x8x8xf32> to vector<8x8xf32>
    %cst_165 = arith.constant dense<0.000000e+00> : vector<8x32xf32>
    %370 = tpu.matmul %366, %349, %cst_165 {dimension_numbers = #tpu.dot_dimension_numbers<[1], [0], [0], [1], [0, 0, 1, 1], [], []>} : vector<8x8xf32>, vector<8x32xf32>, vector<8x32xf32> -> vector<8x32xf32>
    %cst_166 = arith.constant dense<0.000000e+00> : vector<8x32xf32>
    %371 = tpu.matmul %370, %0, %cst_166 {dimension_numbers = #tpu.dot_dimension_numbers<[1], [0], [0], [1], [0, 0, 1, 1], [], []>} : vector<8x32xf32>, vector<32x32xf32>, vector<8x32xf32> -> vector<8x32xf32>
    %cst_167 = arith.constant dense<0.000000e+00> : vector<8x32xf32>
    %372 = tpu.matmul %369, %349, %cst_167 {dimension_numbers = #tpu.dot_dimension_numbers<[1], [0], [0], [1], [0, 0, 1, 1], [], []>} : vector<8x8xf32>, vector<8x32xf32>, vector<8x32xf32> -> vector<8x32xf32>
    %cst_168 = arith.constant dense<0.000000e+00> : vector<8x32xf32>
    %373 = tpu.matmul %372, %1, %cst_168 {dimension_numbers = #tpu.dot_dimension_numbers<[1], [0], [0], [1], [0, 0, 1, 1], [], []>} : vector<8x32xf32>, vector<32x32xf32>, vector<8x32xf32> -> vector<8x32xf32>
    %374 = arith.addf %371, %373 : vector<8x32xf32>
    %375 = vector.broadcast %2 : vector<1x32xf32> to vector<8x32xf32>
    %376 = arith.addf %374, %375 : vector<8x32xf32>
    %cst_169 = arith.constant dense<0.000000e+00> : vector<8x96xf32>
    %377 = tpu.matmul %376, %3, %cst_169 {dimension_numbers = #tpu.dot_dimension_numbers<[1], [0], [0], [1], [0, 0, 1, 1], [], []>} : vector<8x32xf32>, vector<32x96xf32>, vector<8x96xf32> -> vector<8x96xf32>
    %378 = vector.broadcast %4 : vector<1x96xf32> to vector<8x96xf32>
    %379 = arith.addf %377, %378 : vector<8x96xf32>
    %c0_170 = arith.constant 0 : index
    %380 = arith.index_cast %c6_i32 : i32 to index
    %c0_171 = arith.constant 0 : index
    %c0_172 = arith.constant 0 : index
    %381 = vector.load %arg1[%c0_170, %380, %c0_171, %c0_172] : memref<1x7x8x96xf32, #tpu.memory_space<vmem>>, vector<1x1x8x96xf32>
    %382 = vector.shape_cast %381 : vector<1x1x8x96xf32> to vector<8x96xf32>
    %383 = vector.extract_strided_slice %382 {offsets = [0, 0], sizes = [8, 32], strides = [1, 1]} : vector<8x96xf32> to vector<8x32xf32>
    %384 = vector.extract_strided_slice %379 {offsets = [0, 0], sizes = [8, 32], strides = [1, 1]} : vector<8x96xf32> to vector<8x32xf32>
    %385 = arith.addf %383, %384 : vector<8x32xf32>
    %386 = arith.negf %385 : vector<8x32xf32>
    %387 = math.exp %386 : vector<8x32xf32>
    %cst_173 = arith.constant 1.000000e+00 : f32
    %388 = vector.broadcast %cst_173 : f32 to vector<8x32xf32>
    %389 = arith.addf %388, %387 : vector<8x32xf32>
    %390 = arith.divf %388, %389 : vector<8x32xf32>
    %391 = vector.extract_strided_slice %382 {offsets = [0, 32], sizes = [8, 32], strides = [1, 1]} : vector<8x96xf32> to vector<8x32xf32>
    %392 = vector.extract_strided_slice %379 {offsets = [0, 32], sizes = [8, 32], strides = [1, 1]} : vector<8x96xf32> to vector<8x32xf32>
    %393 = arith.addf %391, %392 : vector<8x32xf32>
    %394 = arith.negf %393 : vector<8x32xf32>
    %395 = math.exp %394 : vector<8x32xf32>
    %cst_174 = arith.constant 1.000000e+00 : f32
    %396 = vector.broadcast %cst_174 : f32 to vector<8x32xf32>
    %397 = arith.addf %396, %395 : vector<8x32xf32>
    %398 = arith.divf %396, %397 : vector<8x32xf32>
    %399 = vector.extract_strided_slice %382 {offsets = [0, 64], sizes = [8, 32], strides = [1, 1]} : vector<8x96xf32> to vector<8x32xf32>
    %400 = vector.extract_strided_slice %379 {offsets = [0, 64], sizes = [8, 32], strides = [1, 1]} : vector<8x96xf32> to vector<8x32xf32>
    %401 = arith.mulf %390, %400 : vector<8x32xf32>
    %402 = arith.addf %399, %401 : vector<8x32xf32>
    %403 = math.tanh %402 : vector<8x32xf32>
    %cst_175 = arith.constant 1.000000e+00 : f32
    %404 = vector.broadcast %cst_175 : f32 to vector<8x32xf32>
    %405 = arith.subf %404, %398 : vector<8x32xf32>
    %406 = arith.mulf %405, %403 : vector<8x32xf32>
    %407 = arith.mulf %398, %376 : vector<8x32xf32>
    %408 = arith.addf %406, %407 : vector<8x32xf32>
    %cst_176 = arith.constant dense<0.000000e+00> : vector<8x4xf32>
    %409 = tpu.matmul %408, %5, %cst_176 {dimension_numbers = #tpu.dot_dimension_numbers<[1], [0], [0], [1], [0, 0, 1, 1], [], []>} : vector<8x32xf32>, vector<32x4xf32>, vector<8x4xf32> -> vector<8x4xf32>
    %410 = vector.broadcast %6 : vector<1x4xf32> to vector<8x4xf32>
    %411 = arith.addf %409, %410 : vector<8x4xf32>
    %c4_i32_177 = arith.constant 4 : i32
    %412 = arith.subi %c6_i32, %c4_i32_177 : i32
    %c0_i32_178 = arith.constant 0 : i32
    %413 = arith.maxsi %412, %c0_i32_178 : i32
    %c0_179 = arith.constant 0 : index
    %414 = arith.index_cast %413 : i32 to index
    %c0_180 = arith.constant 0 : index
    %c0_181 = arith.constant 0 : index
    %415 = vector.load %arg5[%c0_179, %414, %c0_180, %c0_181] : memref<1x3x8x4xf32, #tpu.memory_space<vmem>>, vector<1x1x8x4xf32>
    %416 = vector.shape_cast %415 : vector<1x1x8x4xf32> to vector<8x4xf32>
    %417 = arith.mulf %7, %411 : vector<8x4xf32>
    %418 = arith.addf %416, %417 : vector<8x4xf32>
    %c0_182 = arith.constant 0 : index
    %419 = arith.index_cast %413 : i32 to index
    %c0_183 = arith.constant 0 : index
    %c0_184 = arith.constant 0 : index
    %420 = vector.load %arg14[%c0_182, %419, %c0_183, %c0_184] : memref<1x3x8x4xf32, #tpu.memory_space<vmem>>, vector<1x1x8x4xf32>
    %421 = vector.shape_cast %420 : vector<1x1x8x4xf32> to vector<8x4xf32>
    %422 = vector.shape_cast %418 : vector<8x4xf32> to vector<1x1x8x4xf32>
    tpu.vector_store %arg14[%c0_182, %419, %c0_183, %c0_184], %422 {strides = array<i32>} : memref<1x3x8x4xf32, #tpu.memory_space<vmem>>, vector<1x1x8x4xf32>,
    %c7_i32 = arith.constant 7 : i32
    return
  }
  func.func @transform_0(%arg0: i32) -> (i32, i32, i32, i32) {
    %c0_i32 = arith.constant 0 : i32
    %c0_i32_0 = arith.constant 0 : i32
    %c0_i32_1 = arith.constant 0 : i32
    %c0_i32_2 = arith.constant 0 : i32
    return %arg0, %c0_i32, %c0_i32_0, %c0_i32_1 : i32, i32, i32, i32
  }
  func.func @transform_1(%arg0: i32) -> (i32, i32, i32) {
    %c0_i32 = arith.constant 0 : i32
    %c0_i32_0 = arith.constant 0 : i32
    %c0_i32_1 = arith.constant 0 : i32
    %c0_i32_2 = arith.constant 0 : i32
    return %c0_i32, %c0_i32_0, %c0_i32_1 : i32, i32, i32
  }
  func.func @transform_2(%arg0: i32) -> (i32, i32, i32) {
    %c0_i32 = arith.constant 0 : i32
    %c0_i32_0 = arith.constant 0 : i32
    %c0_i32_1 = arith.constant 0 : i32
    %c0_i32_2 = arith.constant 0 : i32
    return %c0_i32, %c0_i32_0, %c0_i32_1 : i32, i32, i32
  }
  func.func @transform_3(%arg0: i32) -> (i32, i32, i32) {
    %c0_i32 = arith.constant 0 : i32
    %c0_i32_0 = arith.constant 0 : i32
    %c0_i32_1 = arith.constant 0 : i32
    return %arg0, %c0_i32, %c0_i32_0 : i32, i32, i32
  }
  func.func @transform_4(%arg0: i32) -> (i32, i32, i32, i32) {
    %c0_i32 = arith.constant 0 : i32
    %c0_i32_0 = arith.constant 0 : i32
    %c0_i32_1 = arith.constant 0 : i32
    %c0_i32_2 = arith.constant 0 : i32
    return %arg0, %c0_i32, %c0_i32_0, %c0_i32_1 : i32, i32, i32, i32
  }
  func.func @transform_5(%arg0: i32) -> (i32, i32) {
    %c0_i32 = arith.constant 0 : i32
    %c0_i32_0 = arith.constant 0 : i32
    %c0_i32_1 = arith.constant 0 : i32
    return %c0_i32, %c0_i32_0 : i32, i32
  }
  func.func @transform_6(%arg0: i32) -> (i32, i32) {
    %c0_i32 = arith.constant 0 : i32
    %c0_i32_0 = arith.constant 0 : i32
    %c0_i32_1 = arith.constant 0 : i32
    return %c0_i32, %c0_i32_0 : i32, i32
  }
  func.func @transform_7(%arg0: i32) -> (i32, i32) {
    %c0_i32 = arith.constant 0 : i32
    %c0_i32_0 = arith.constant 0 : i32
    %c0_i32_1 = arith.constant 0 : i32
    return %c0_i32, %c0_i32_0 : i32, i32
  }
  func.func @transform_8(%arg0: i32) -> (i32, i32) {
    %c0_i32 = arith.constant 0 : i32
    %c0_i32_0 = arith.constant 0 : i32
    %c0_i32_1 = arith.constant 0 : i32
    return %c0_i32, %c0_i32_0 : i32, i32
  }
  func.func @transform_9(%arg0: i32) -> (i32, i32) {
    %c0_i32 = arith.constant 0 : i32
    %c0_i32_0 = arith.constant 0 : i32
    %c0_i32_1 = arith.constant 0 : i32
    return %c0_i32, %c0_i32_0 : i32, i32
  }
  func.func @transform_10(%arg0: i32) -> (i32, i32) {
    %c0_i32 = arith.constant 0 : i32
    %c0_i32_0 = arith.constant 0 : i32
    %c0_i32_1 = arith.constant 0 : i32
    return %c0_i32, %c0_i32_0 : i32, i32
  }
  func.func @transform_11(%arg0: i32) -> (i32, i32) {
    %c0_i32 = arith.constant 0 : i32
    %c0_i32_0 = arith.constant 0 : i32
    %c0_i32_1 = arith.constant 0 : i32
    return %c0_i32, %c0_i32_0 : i32, i32
  }
  func.func @transform_12(%arg0: i32) -> (i32, i32) {
    %c0_i32 = arith.constant 0 : i32
    %c0_i32_0 = arith.constant 0 : i32
    %c0_i32_1 = arith.constant 0 : i32
    return %c0_i32, %c0_i32_0 : i32, i32
  }
  func.func @transform_13(%arg0: i32) -> (i32, i32, i32, i32) {
    %c0_i32 = arith.constant 0 : i32
    %c0_i32_0 = arith.constant 0 : i32
    %c0_i32_1 = arith.constant 0 : i32
    %c0_i32_2 = arith.constant 0 : i32
    return %arg0, %c0_i32, %c0_i32_0, %c0_i32_1 : i32, i32, i32, i32
  }
}

</mosaic_0001>

<llo_original>
// kernel: tpu_custom_call.1
$region0: #{tpu_custom_call.1}
  #allocation0 [shape = 'u32[]', space=smem, size = 0x4, offset = 0x4, fixed_abs, tag = 'smem constant byte address 0x4 - core index']
  #allocation1 [shape = 'u32[144,128]{1,0:T(1,128)}', space=vmem, size = 0x12000, scoped, tag = 'internal scratch']
  %s0 = inlined_call_operand.vmem [shape: f32[2,7,8,96], index: 0, kind: input, shape index: {}]
  %s1 = inlined_call_operand.hbm [shape: f32[7,8,8], index: 1, kind: input, shape index: {}]
  %s2 = inlined_call_operand.hbm [shape: f32[7,8,8], index: 2, kind: input, shape index: {}]
  %s3 = inlined_call_operand.hbm [shape: f32[2,8,32], index: 3, kind: input, shape index: {}]
  %s4 = inlined_call_operand.vmem [shape: f32[2,3,8,4], index: 4, kind: input, shape index: {}]
  %s5 = inlined_call_operand.vmem [shape: f32[8,4], index: 5, kind: input, shape index: {}]
  %s6 = inlined_call_operand.hbm [shape: f32[32,32], index: 6, kind: input, shape index: {}]
  %s7 = inlined_call_operand.hbm [shape: f32[32,32], index: 7, kind: input, shape index: {}]
  %s8 = inlined_call_operand.vmem [shape: f32[1,32], index: 8, kind: input, shape index: {}]
  %s9 = inlined_call_operand.hbm [shape: f32[32,96], index: 9, kind: input, shape index: {}]
  %s10 = inlined_call_operand.vmem [shape: f32[1,96], index: 10, kind: input, shape index: {}]
  %s11 = inlined_call_operand.vmem [shape: f32[32,4], index: 11, kind: input, shape index: {}]
  %s12 = inlined_call_operand.vmem [shape: f32[1,4], index: 12, kind: input, shape index: {}]
  %s13 = inlined_call_operand.vmem [shape: f32[2,3,8,4], index: 13, kind: output, shape index: {}]
  %s14 = sld [smem:[#allocation0]]
  $region109: #{tpu_custom_call.1} parent=0
    _
  %s16 = ssub.s32 1, %s14
  %s17 = scalar_select 0, %s16, %s14
  $region1: #{tpu_custom_call.1} parent=0
    #allocation2 [shape = 'u8[28672]{0}', space=vmem, size = 0x7000, scoped, tag = 'input window, operand 1, single buffered']
    #allocation3 [shape = 's32[2]{0}', space=sflag, size = 0x8, scoped, tag = 'scoped memory for tpu_custom_call.1']
    #allocation4 [shape = 'u8[28672]{0}', space=vmem, size = 0x7000, scoped, tag = 'input window, operand 2, single buffered']
    #allocation5 [shape = 's32[1]{0}', space=sflag, size = 0x4, scoped, tag = 'scoped memory for tpu_custom_call.1']
    #allocation6 [shape = 'u8[8192]{0}', space=vmem, size = 0x2000, scoped, tag = 'input window, operand 3']
    #allocation7 [shape = 'u8[16384]{0}', space=vmem, size = 0x4000, scoped, tag = 'input window, operand 6, single buffered']
    #allocation8 [shape = 'u8[16384]{0}', space=vmem, size = 0x4000, scoped, tag = 'input window, operand 7, single buffered']
    #allocation9 [shape = 's32[1]{0}', space=sflag, size = 0x4, scoped, tag = 'scoped memory for tpu_custom_call.1']
    #allocation10 [shape = 'u8[16384]{0}', space=vmem, size = 0x4000, scoped, tag = 'input window, operand 9, single buffered']
    %18 = vsyncpa [#allocation3], 0
    %19 = vsyncpa [#allocation5], 0
    %20 = vsyncpa [#allocation9], 0
    loop: start=0, step=1, limit=4
    $region2: #{tpu_custom_call.1} parent=1 // loop_pre_header
      _
    $region3: #{tpu_custom_call.1} parent=1 // loop_header
      %s22 = sphi 0, %s26
      %p23 = scmp.ge.s32.totalorder %s22, 4
      %s32 = sphi 0, %s34
      %s35 = sphi 0, %s32
      %s36 = sphi 0, %s35
      %s52 = sphi 0, %s36
      %s56 = sphi 0, %s56
      %s58 = sphi 0, %s56
      %s59 = sphi 0, %s58
      %s73 = sphi 0, %s59
      %s77 = sphi 0, %s77
      %s79 = sphi 0, %s77
      %s80 = sphi 0, %s79
      %s94 = sphi 0, %s80
      %s100 = sphi 0, %s102
      %s103 = sphi 0, %s100
      %s104 = sphi 0, %s103
      %s120 = sphi 0, %s104
      %s126 = sphi 0, %s128
      %s129 = sphi 0, %s126
      %s130 = sphi 0, %s129
      %s146 = sphi 0, %s130
      %s150 = sphi 0, %s150
      %s152 = sphi 0, %s150
      %s153 = sphi 0, %s152
      %s167 = sphi 0, %s153
      %s171 = sphi 0, %s171
      %s173 = sphi 0, %s171
      %s174 = sphi 0, %s173
      %s188 = sphi 0, %s174
      %s192 = sphi 0, %s192
      %s194 = sphi 0, %s192
      %s195 = sphi 0, %s194
      %s209 = sphi 0, %s195
      %s213 = sphi 0, %s213
      %s215 = sphi 0, %s213
      %s216 = sphi 0, %s215
      %s230 = sphi 0, %s216
      %s234 = sphi 0, %s234
      %s236 = sphi 0, %s234
      %s237 = sphi 0, %s236
      %s251 = sphi 0, %s237
      %s255 = sphi 0, %s255
      %s257 = sphi 0, %s255
      %s258 = sphi 0, %s257
      %s272 = sphi 0, %s258
      %s276 = sphi 0, %s276
      %s278 = sphi 0, %s276
      %s279 = sphi 0, %s278
      %s293 = sphi 0, %s279
      %s297 = sphi 0, %s297
      %s299 = sphi 0, %s297
      %s300 = sphi 0, %s299
      %s314 = sphi 0, %s300
      %s320 = sphi 0, %s322
      %s323 = sphi 0, %s320
      %s324 = sphi 0, %s323
      %s340 = sphi 0, %s324
    $region4: #{tpu_custom_call.1} parent=1 // loop_header_branch
      %25 = sbr.rel (%p23) target = $region8
    $region5: #{tpu_custom_call.1} parent=1 // loop_body
      %s27 = ssub.s32 %s22, 1
      %s28 = ssub.s32 %s22, 2
      %s29 = sadd.s32 %s22, 1
      %s30 = ssub.s32 %s22, %s29
      %p31 = scmp.eq.s32.totalorder %s30, 0
      %s33 = sadd.s32 %s32, 1
      %s34 = scalar_select %p31, %s32, %s33
      %p37 = pneg %p31
      %p38 = scmp.eq.s32.totalorder %s22, 1
      %p39 = por %p37, %p38
      %p40 = scmp.ne.s32.totalorder %s32, %s35
      %p41 = scmp.eq.s32.totalorder %s22, 0
      %p42 = por %p40, %p41
      %p43 = scmp.ne.s32.totalorder %s32, %s35
      %p44 = scmp.eq.s32.totalorder %s27, 1
      %p45 = por %p43, %p44
      %p46 = scmp.ne.s32.totalorder %s35, %s36
      %p47 = scmp.eq.s32.totalorder %s27, 0
      %p48 = por %p46, %p47
      %p49 = scmp.ne.s32.totalorder %s35, %s36
      %p50 = scmp.eq.s32.totalorder %s28, 1
      %p51 = por %p49, %p50
      %p53 = scmp.ne.s32.totalorder %s36, %s52
      %p54 = scmp.eq.s32.totalorder %s28, 0
      %p55 = por %p53, %p54
      %s57 = sadd.s32 %s56, 1
      %p60 = scmp.eq.s32.totalorder %s22, 1
      %p61 = scmp.ne.s32.totalorder %s56, %s58
      %p62 = scmp.eq.s32.totalorder %s22, 0
      %p63 = por %p61, %p62
      %p64 = scmp.ne.s32.totalorder %s56, %s58
      %p65 = scmp.eq.s32.totalorder %s27, 1
      %p66 = por %p64, %p65
      %p67 = scmp.ne.s32.totalorder %s58, %s59
      %p68 = scmp.eq.s32.totalorder %s27, 0
      %p69 = por %p67, %p68
      %p70 = scmp.ne.s32.totalorder %s58, %s59
      %p71 = scmp.eq.s32.totalorder %s28, 1
      %p72 = por %p70, %p71
      %p74 = scmp.ne.s32.totalorder %s59, %s73
      %p75 = scmp.eq.s32.totalorder %s28, 0
      %p76 = por %p74, %p75
      %s78 = sadd.s32 %s77, 1
      %p81 = scmp.eq.s32.totalorder %s22, 1
      %p82 = scmp.ne.s32.totalorder %s77, %s79
      %p83 = scmp.eq.s32.totalorder %s22, 0
      %p84 = por %p82, %p83
      %p85 = scmp.ne.s32.totalorder %s77, %s79
      %p86 = scmp.eq.s32.totalorder %s27, 1
      %p87 = por %p85, %p86
      %p88 = scmp.ne.s32.totalorder %s79, %s80
      %p89 = scmp.eq.s32.totalorder %s27, 0
      %p90 = por %p88, %p89
      %p91 = scmp.ne.s32.totalorder %s79, %s80
      %p92 = scmp.eq.s32.totalorder %s28, 1
      %p93 = por %p91, %p92
      %p95 = scmp.ne.s32.totalorder %s80, %s94
      %p96 = scmp.eq.s32.totalorder %s28, 0
      %p97 = por %p95, %p96
      %s98 = ssub.s32 %s22, %s29
      %p99 = scmp.eq.s32.totalorder %s98, 0
      %s101 = sadd.s32 %s100, 1
      %s102 = scalar_select %p99, %s100, %s101
      %p105 = pneg %p99
      %p106 = scmp.eq.s32.totalorder %s22, 1
      %p107 = por %p105, %p106
      %p108 = scmp.ne.s32.totalorder %s100, %s103
      %p109 = scmp.eq.s32.totalorder %s22, 0
      %p110 = por %p108, %p109
      %p111 = scmp.ne.s32.totalorder %s100, %s103
      %p112 = scmp.eq.s32.totalorder %s27, 1
      %p113 = por %p111, %p112
      %p114 = scmp.ne.s32.totalorder %s103, %s104
      %p115 = scmp.eq.s32.totalorder %s27, 0
      %p116 = por %p114, %p115
      %p117 = scmp.ne.s32.totalorder %s103, %s104
      %p118 = scmp.eq.s32.totalorder %s28, 1
      %p119 = por %p117, %p118
      %p121 = scmp.ne.s32.totalorder %s104, %s120
      %p122 = scmp.eq.s32.totalorder %s28, 0
      %p123 = por %p121, %p122
      %s124 = ssub.s32 %s22, %s29
      %p125 = scmp.eq.s32.totalorder %s124, 0
      %s127 = sadd.s32 %s126, 1
      %s128 = scalar_select %p125, %s126, %s127
      %p131 = pneg %p125
      %p132 = scmp.eq.s32.totalorder %s22, 1
      %p133 = por %p131, %p132
      %p134 = scmp.ne.s32.totalorder %s126, %s129
      %p135 = scmp.eq.s32.totalorder %s22, 0
      %p136 = por %p134, %p135
      %p137 = scmp.ne.s32.totalorder %s126, %s129
      %p138 = scmp.eq.s32.totalorder %s27, 1
      %p139 = por %p137, %p138
      %p140 = scmp.ne.s32.totalorder %s129, %s130
      %p141 = scmp.eq.s32.totalorder %s27, 0
      %p142 = por %p140, %p141
      %p143 = scmp.ne.s32.totalorder %s129, %s130
      %p144 = scmp.eq.s32.totalorder %s28, 1
      %p145 = por %p143, %p144
      %p147 = scmp.ne.s32.totalorder %s130, %s146
      %p148 = scmp.eq.s32.totalorder %s28, 0
      %p149 = por %p147, %p148
      %s151 = sadd.s32 %s150, 1
      %p154 = scmp.eq.s32.totalorder %s22, 1
      %p155 = scmp.ne.s32.totalorder %s150, %s152
      %p156 = scmp.eq.s32.totalorder %s22, 0
      %p157 = por %p155, %p156
      %p158 = scmp.ne.s32.totalorder %s150, %s152
      %p159 = scmp.eq.s32.totalorder %s27, 1
      %p160 = por %p158, %p159
      %p161 = scmp.ne.s32.totalorder %s152, %s153
      %p162 = scmp.eq.s32.totalorder %s27, 0
      %p163 = por %p161, %p162
      %p164 = scmp.ne.s32.totalorder %s152, %s153
      %p165 = scmp.eq.s32.totalorder %s28, 1
      %p166 = por %p164, %p165
      %p168 = scmp.ne.s32.totalorder %s153, %s167
      %p169 = scmp.eq.s32.totalorder %s28, 0
      %p170 = por %p168, %p169
      %s172 = sadd.s32 %s171, 1
      %p175 = scmp.eq.s32.totalorder %s22, 1
      %p176 = scmp.ne.s32.totalorder %s171, %s173
      %p177 = scmp.eq.s32.totalorder %s22, 0
      %p178 = por %p176, %p177
      %p179 = scmp.ne.s32.totalorder %s171, %s173
      %p180 = scmp.eq.s32.totalorder %s27, 1
      %p181 = por %p179, %p180
      %p182 = scmp.ne.s32.totalorder %s173, %s174
      %p183 = scmp.eq.s32.totalorder %s27, 0
      %p184 = por %p182, %p183
      %p185 = scmp.ne.s32.totalorder %s173, %s174
      %p186 = scmp.eq.s32.totalorder %s28, 1
      %p187 = por %p185, %p186
      %p189 = scmp.ne.s32.totalorder %s174, %s188
      %p190 = scmp.eq.s32.totalorder %s28, 0
      %p191 = por %p189, %p190
      %s193 = sadd.s32 %s192, 1
      %p196 = scmp.eq.s32.totalorder %s22, 1
      %p197 = scmp.ne.s32.totalorder %s192, %s194
      %p198 = scmp.eq.s32.totalorder %s22, 0
      %p199 = por %p197, %p198
      %p200 = scmp.ne.s32.totalorder %s192, %s194
      %p201 = scmp.eq.s32.totalorder %s27, 1
      %p202 = por %p200, %p201
      %p203 = scmp.ne.s32.totalorder %s194, %s195
      %p204 = scmp.eq.s32.totalorder %s27, 0
      %p205 = por %p203, %p204
      %p206 = scmp.ne.s32.totalorder %s194, %s195
      %p207 = scmp.eq.s32.totalorder %s28, 1
      %p208 = por %p206, %p207
      %p210 = scmp.ne.s32.totalorder %s195, %s209
      %p211 = scmp.eq.s32.totalorder %s28, 0
      %p212 = por %p210, %p211
      %s214 = sadd.s32 %s213, 1
      %p217 = scmp.eq.s32.totalorder %s22, 1
      %p218 = scmp.ne.s32.totalorder %s213, %s215
      %p219 = scmp.eq.s32.totalorder %s22, 0
      %p220 = por %p218, %p219
      %p221 = scmp.ne.s32.totalorder %s213, %s215
      %p222 = scmp.eq.s32.totalorder %s27, 1
      %p223 = por %p221, %p222
      %p224 = scmp.ne.s32.totalorder %s215, %s216
      %p225 = scmp.eq.s32.totalorder %s27, 0
      %p226 = por %p224, %p225
      %p227 = scmp.ne.s32.totalorder %s215, %s216
      %p228 = scmp.eq.s32.totalorder %s28, 1
      %p229 = por %p227, %p228
      %p231 = scmp.ne.s32.totalorder %s216, %s230
      %p232 = scmp.eq.s32.totalorder %s28, 0
      %p233 = por %p231, %p232
      %s235 = sadd.s32 %s234, 1
      %p238 = scmp.eq.s32.totalorder %s22, 1
      %p239 = scmp.ne.s32.totalorder %s234, %s236
      %p240 = scmp.eq.s32.totalorder %s22, 0
      %p241 = por %p239, %p240
      %p242 = scmp.ne.s32.totalorder %s234, %s236
      %p243 = scmp.eq.s32.totalorder %s27, 1
      %p244 = por %p242, %p243
      %p245 = scmp.ne.s32.totalorder %s236, %s237
      %p246 = scmp.eq.s32.totalorder %s27, 0
      %p247 = por %p245, %p246
      %p248 = scmp.ne.s32.totalorder %s236, %s237
      %p249 = scmp.eq.s32.totalorder %s28, 1
      %p250 = por %p248, %p249
      %p252 = scmp.ne.s32.totalorder %s237, %s251
      %p253 = scmp.eq.s32.totalorder %s28, 0
      %p254 = por %p252, %p253
      %s256 = sadd.s32 %s255, 1
      %p259 = scmp.eq.s32.totalorder %s22, 1
      %p260 = scmp.ne.s32.totalorder %s255, %s257
      %p261 = scmp.eq.s32.totalorder %s22, 0
      %p262 = por %p260, %p261
      %p263 = scmp.ne.s32.totalorder %s255, %s257
      %p264 = scmp.eq.s32.totalorder %s27, 1
      %p265 = por %p263, %p264
      %p266 = scmp.ne.s32.totalorder %s257, %s258
      %p267 = scmp.eq.s32.totalorder %s27, 0
      %p268 = por %p266, %p267
      %p269 = scmp.ne.s32.totalorder %s257, %s258
      %p270 = scmp.eq.s32.totalorder %s28, 1
      %p271 = por %p269, %p270
      %p273 = scmp.ne.s32.totalorder %s258, %s272
      %p274 = scmp.eq.s32.totalorder %s28, 0
      %p275 = por %p273, %p274
      %s277 = sadd.s32 %s276, 1
      %p280 = scmp.eq.s32.totalorder %s22, 1
      %p281 = scmp.ne.s32.totalorder %s276, %s278
      %p282 = scmp.eq.s32.totalorder %s22, 0
      %p283 = por %p281, %p282
      %p284 = scmp.ne.s32.totalorder %s276, %s278
      %p285 = scmp.eq.s32.totalorder %s27, 1
      %p286 = por %p284, %p285
      %p287 = scmp.ne.s32.totalorder %s278, %s279
      %p288 = scmp.eq.s32.totalorder %s27, 0
      %p289 = por %p287, %p288
      %p290 = scmp.ne.s32.totalorder %s278, %s279
      %p291 = scmp.eq.s32.totalorder %s28, 1
      %p292 = por %p290, %p291
      %p294 = scmp.ne.s32.totalorder %s279, %s293
      %p295 = scmp.eq.s32.totalorder %s28, 0
      %p296 = por %p294, %p295
      %s298 = sadd.s32 %s297, 1
      %p301 = scmp.eq.s32.totalorder %s22, 1
      %p302 = scmp.ne.s32.totalorder %s297, %s299
      %p303 = scmp.eq.s32.totalorder %s22, 0
      %p304 = por %p302, %p303
      %p305 = scmp.ne.s32.totalorder %s297, %s299
      %p306 = scmp.eq.s32.totalorder %s27, 1
      %p307 = por %p305, %p306
      %p308 = scmp.ne.s32.totalorder %s299, %s300
      %p309 = scmp.eq.s32.totalorder %s27, 0
      %p310 = por %p308, %p309
      %p311 = scmp.ne.s32.totalorder %s299, %s300
      %p312 = scmp.eq.s32.totalorder %s28, 1
      %p313 = por %p311, %p312
      %p315 = scmp.ne.s32.totalorder %s300, %s314
      %p316 = scmp.eq.s32.totalorder %s28, 0
      %p317 = por %p315, %p316
      %s318 = ssub.s32 %s22, %s29
      %p319 = scmp.eq.s32.totalorder %s318, 0
      %s321 = sadd.s32 %s320, 1
      %s322 = scalar_select %p319, %s320, %s321
      %p325 = pneg %p319
      %p326 = scmp.eq.s32.totalorder %s22, 1
      %p327 = por %p325, %p326
      %p328 = scmp.ne.s32.totalorder %s320, %s323
      %p329 = scmp.eq.s32.totalorder %s22, 0
      %p330 = por %p328, %p329
      %p331 = scmp.ne.s32.totalorder %s320, %s323
      %p332 = scmp.eq.s32.totalorder %s27, 1
      %p333 = por %p331, %p332
      %p334 = scmp.ne.s32.totalorder %s323, %s324
      %p335 = scmp.eq.s32.totalorder %s27, 0
      %p336 = por %p334, %p335
      %p337 = scmp.ne.s32.totalorder %s323, %s324
      %p338 = scmp.eq.s32.totalorder %s28, 1
      %p339 = por %p337, %p338
      %p341 = scmp.ne.s32.totalorder %s324, %s340
      %p342 = scmp.eq.s32.totalorder %s28, 0
      %p343 = por %p341, %p342
      %p344 = scmp.le.s32.totalorder 1, %s22
      %p345 = scmp.lt.s32.totalorder %s22, 3
      %p346 = pnand %p344, %p345
      %p347 = pneg %p346
      // Predicated region
      $region9: #{tpu_custom_call.1} parent=5 // pred_check
        _
      $region10: #{tpu_custom_call.1} parent=5 // pred_check_branch
        %349 = sbr.rel (%p346) target = $region12
      $region11: #{tpu_custom_call.1} parent=5 // pred_region
        %s350 = ssub.s32 %s22, 1
        // Predicated region
        $region13: #{tpu_custom_call.1} parent=11 // pred_check
          %p351 = pneg %p69
        $region14: #{tpu_custom_call.1} parent=11 // pred_check_branch
          %353 = sbr.rel (%p351) target = $region16
        $region15: #{tpu_custom_call.1} parent=11 // pred_region
          %s355 = ssub.s32 896, 896
          %356 = vsyncadd [#allocation3], %s355
          %s357 = sshll.u32 [#allocation2], 4
          %s358 = int_to_ptr.vmem [resolvable:$true] %s357
          %363 = dma.hbm_to_vmem [thread:$0]  %s1, 896, %s358, [#allocation3], 128, 128, 8
        $region16: #{tpu_custom_call.1} parent=11 // pred_fallthru
          _
        // Predicated region
        $region17: #{tpu_custom_call.1} parent=11 // pred_check
          %p364 = pneg %p90
        $region18: #{tpu_custom_call.1} parent=11 // pred_check_branch
          %366 = sbr.rel (%p364) target = $region20
        $region19: #{tpu_custom_call.1} parent=11 // pred_region
          %s368 = ssub.s32 896, 896
          %369 = vsyncadd [#allocation5], %s368
          %s370 = sshll.u32 [#allocation4], 4
          %s371 = int_to_ptr.vmem [resolvable:$true] %s370
          %376 = dma.hbm_to_vmem [thread:$0]  %s2, 896, %s371, [#allocation5], 128, 128, 8
        $region20: #{tpu_custom_call.1} parent=11 // pred_fallthru
          _
        // Predicated region
        $region21: #{tpu_custom_call.1} parent=11 // pred_check
          %p377 = pneg %p163
        $region22: #{tpu_custom_call.1} parent=11 // pred_check_branch
          %379 = sbr.rel (%p377) target = $region24
        $region23: #{tpu_custom_call.1} parent=11 // pred_region
          _
        $region24: #{tpu_custom_call.1} parent=11 // pred_fallthru
          _
        // Predicated region
        $region25: #{tpu_custom_call.1} parent=11 // pred_check
          %p380 = pneg %p184
        $region26: #{tpu_custom_call.1} parent=11 // pred_check_branch
          %382 = sbr.rel (%p380) target = $region28
        $region27: #{tpu_custom_call.1} parent=11 // pred_region
          %s384 = ssub.s32 512, 512
          %385 = vsyncadd [#allocation5], %s384
          %s386 = sshll.u32 [#allocation7], 4
          %s387 = int_to_ptr.vmem [resolvable:$true] %s386
          %392 = dma.hbm_to_vmem [thread:$0]  %s6, 512, %s387, [#allocation5], 128, 128, 8
        $region28: #{tpu_custom_call.1} parent=11 // pred_fallthru
          _
        // Predicated region
        $region29: #{tpu_custom_call.1} parent=11 // pred_check
          %p393 = pneg %p205
        $region30: #{tpu_custom_call.1} parent=11 // pred_check_branch
          %395 = sbr.rel (%p393) target = $region32
        $region31: #{tpu_custom_call.1} parent=11 // pred_region
          %s397 = ssub.s32 512, 512
          %398 = vsyncadd [#allocation9], %s397
          %s399 = sshll.u32 [#allocation8], 4
          %s400 = int_to_ptr.vmem [resolvable:$true] %s399
          %405 = dma.hbm_to_vmem [thread:$0]  %s7, 512, %s400, [#allocation9], 128, 128, 8
        $region32: #{tpu_custom_call.1} parent=11 // pred_fallthru
          _
        // Predicated region
        $region33: #{tpu_custom_call.1} parent=11 // pred_check
          %p406 = pneg %p226
        $region34: #{tpu_custom_call.1} parent=11 // pred_check_branch
          %408 = sbr.rel (%p406) target = $region36
        $region35: #{tpu_custom_call.1} parent=11 // pred_region
          _
        $region36: #{tpu_custom_call.1} parent=11 // pred_fallthru
          _
        // Predicated region
        $region37: #{tpu_custom_call.1} parent=11 // pred_check
          %p409 = pneg %p247
        $region38: #{tpu_custom_call.1} parent=11 // pred_check_branch
          %411 = sbr.rel (%p409) target = $region40
        $region39: #{tpu_custom_call.1} parent=11 // pred_region
          %s413 = ssub.s32 512, 512
          %414 = vsyncadd [#allocation9], %s413
          %s415 = sshll.u32 [#allocation10], 4
          %s416 = int_to_ptr.vmem [resolvable:$true] %s415
          %421 = dma.hbm_to_vmem [thread:$0]  %s9, 512, %s416, [#allocation9], 128, 128, 8
        $region40: #{tpu_custom_call.1} parent=11 // pred_fallthru
          _
        // Predicated region
        $region41: #{tpu_custom_call.1} parent=11 // pred_check
          %p422 = pneg %p268
        $region42: #{tpu_custom_call.1} parent=11 // pred_check_branch
          %424 = sbr.rel (%p422) target = $region44
        $region43: #{tpu_custom_call.1} parent=11 // pred_region
          _
        $region44: #{tpu_custom_call.1} parent=11 // pred_fallthru
          _
        // Predicated region
        $region45: #{tpu_custom_call.1} parent=11 // pred_check
          %p425 = pneg %p289
        $region46: #{tpu_custom_call.1} parent=11 // pred_check_branch
          %427 = sbr.rel (%p425) target = $region48
        $region47: #{tpu_custom_call.1} parent=11 // pred_region
          _
        $region48: #{tpu_custom_call.1} parent=11 // pred_fallthru
          _
        // Predicated region
        $region49: #{tpu_custom_call.1} parent=11 // pred_check
          %p428 = pneg %p310
        $region50: #{tpu_custom_call.1} parent=11 // pred_check_branch
          %430 = sbr.rel (%p428) target = $region52
        $region51: #{tpu_custom_call.1} parent=11 // pred_region
          _
        $region52: #{tpu_custom_call.1} parent=11 // pred_fallthru
          _
      $region12: #{tpu_custom_call.1} parent=5 // pred_fallthru
        _
      %p431 = scmp.lt.s32.totalorder %s22, 2
      // Predicated region
      $region53: #{tpu_custom_call.1} parent=5 // pred_check
        %p432 = pneg %p431
      $region54: #{tpu_custom_call.1} parent=5 // pred_check_branch
        %434 = sbr.rel (%p432) target = $region56
      $region55: #{tpu_custom_call.1} parent=5 // pred_region
        // Predicated region
        $region57: #{tpu_custom_call.1} parent=55 // pred_check
          %p435 = pneg %p42
        $region58: #{tpu_custom_call.1} parent=55 // pred_check_branch
          %437 = sbr.rel (%p435) target = $region60
        $region59: #{tpu_custom_call.1} parent=55 // pred_region
          %p438 = scmp.lt.s32.totalorder %s22, 1
          %s439 = scalar_select %p438, %s22, 1
          %s440 = smul.addr %s439, 7
          %s441 = smul.addr %s440, 8
          %s442 = scalar_lea.vmem %s0, %s441
        $region60: #{tpu_custom_call.1} parent=55 // pred_fallthru
          _
        // Predicated region
        $region61: #{tpu_custom_call.1} parent=55 // pred_check
          %p443 = pneg %p110
        $region62: #{tpu_custom_call.1} parent=55 // pred_check_branch
          %445 = sbr.rel (%p443) target = $region64
        $region63: #{tpu_custom_call.1} parent=55 // pred_region
          %s446 = sand.u32 %s22, 1
          %s447 = scalar_lea.sflag [#allocation3], %s446
          %s448 = sand.u32 %s100, 1
          %s449 = smul.addr %s448, 8
          %s450 = scalar_lea.vmem [#allocation6], %s449
          %s452 = ssub.s32 128, 128
          %453 = vsyncadd %s447, %s452
          %s454 = smul.addr %s22, 128
          %s455 = scalar_lea.hbm %s3, %s454
          %s457 = sshll.u32 %s450, 4
          %s458 = int_to_ptr.vmem [resolvable:$true] %s457
          %460 = dma.hbm_to_vmem [thread:$0]  %s455, 128, %s458, %s447
        $region64: #{tpu_custom_call.1} parent=55 // pred_fallthru
          _
        // Predicated region
        $region65: #{tpu_custom_call.1} parent=55 // pred_check
          %p461 = pneg %p136
        $region66: #{tpu_custom_call.1} parent=55 // pred_check_branch
          %463 = sbr.rel (%p461) target = $region68
        $region67: #{tpu_custom_call.1} parent=55 // pred_region
          %p464 = scmp.lt.s32.totalorder %s22, 1
          %s465 = scalar_select %p464, %s22, 1
          %s466 = smul.addr %s465, 3
          %s467 = smul.addr %s466, 8
          %s468 = scalar_lea.vmem %s4, %s467
        $region68: #{tpu_custom_call.1} parent=55 // pred_fallthru
          _
      $region56: #{tpu_custom_call.1} parent=5 // pred_fallthru
        _
      %p469 = scmp.le.s32.totalorder 1, %s22
      %p470 = scmp.lt.s32.totalorder %s22, 3
      %p471 = pnand %p469, %p470
      %p472 = pneg %p471
      // Predicated region
      $region69: #{tpu_custom_call.1} parent=5 // pred_check
        _
      $region70: #{tpu_custom_call.1} parent=5 // pred_check_branch
        %474 = sbr.rel (%p471) target = $region72
      $region71: #{tpu_custom_call.1} parent=5 // pred_region
        %s475 = ssub.s32 %s22, 1
        // Predicated region
        $region73: #{tpu_custom_call.1} parent=71 // pred_check
          %p476 = pneg %p69
        $region74: #{tpu_custom_call.1} parent=71 // pred_check_branch
          %478 = sbr.rel (%p476) target = $region76
        $region75: #{tpu_custom_call.1} parent=71 // pred_region
          %479 = dma.done [#allocation3], 896
        $region76: #{tpu_custom_call.1} parent=71 // pred_fallthru
          _
        // Predicated region
        $region77: #{tpu_custom_call.1} parent=71 // pred_check
          %p480 = pneg %p90
        $region78: #{tpu_custom_call.1} parent=71 // pred_check_branch
          %482 = sbr.rel (%p480) target = $region80
        $region79: #{tpu_custom_call.1} parent=71 // pred_region
          %483 = dma.done [#allocation5], 896
        $region80: #{tpu_custom_call.1} parent=71 // pred_fallthru
          _
        %s484 = sand.u32 %s27, 1
        %s485 = scalar_lea.sflag [#allocation3], %s484
        %s486 = sand.u32 %s103, 1
        %s487 = smul.addr %s486, 8
        %s488 = scalar_lea.vmem [#allocation6], %s487
        // Predicated region
        $region81: #{tpu_custom_call.1} parent=71 // pred_check
          %p489 = pneg %p116
        $region82: #{tpu_custom_call.1} parent=71 // pred_check_branch
          %491 = sbr.rel (%p489) target = $region84
        $region83: #{tpu_custom_call.1} parent=71 // pred_region
          %492 = dma.done %s485, 128
        $region84: #{tpu_custom_call.1} parent=71 // pred_fallthru
          _
        // Predicated region
        $region85: #{tpu_custom_call.1} parent=71 // pred_check
          %p493 = pneg %p184
        $region86: #{tpu_custom_call.1} parent=71 // pred_check_branch
          %495 = sbr.rel (%p493) target = $region88
        $region87: #{tpu_custom_call.1} parent=71 // pred_region
          %496 = dma.done [#allocation5], 512
        $region88: #{tpu_custom_call.1} parent=71 // pred_fallthru
          _
        // Predicated region
        $region89: #{tpu_custom_call.1} parent=71 // pred_check
          %p497 = pneg %p205
        $region90: #{tpu_custom_call.1} parent=71 // pred_check_branch
          %499 = sbr.rel (%p497) target = $region92
        $region91: #{tpu_custom_call.1} parent=71 // pred_region
          %500 = dma.done [#allocation9], 512
        $region92: #{tpu_custom_call.1} parent=71 // pred_fallthru
          _
        // Predicated region
        $region93: #{tpu_custom_call.1} parent=71 // pred_check
          %p501 = pneg %p247
        $region94: #{tpu_custom_call.1} parent=71 // pred_check_branch
          %503 = sbr.rel (%p501) target = $region96
        $region95: #{tpu_custom_call.1} parent=71 // pred_region
          %504 = dma.done [#allocation9], 512
        $region96: #{tpu_custom_call.1} parent=71 // pred_fallthru
          _
        %p505 = scmp.lt.s32.totalorder %s27, 1
        %s506 = scalar_select %p505, %s27, 1
        %s507 = smul.addr %s506, 7
        %s508 = smul.addr %s507, 8
        %s509 = scalar_lea.vmem %s0, %s508
        %p510 = pneg %p48
        %p511 = pneg %p45
        %p512 = pneg %p69
        %p513 = pneg %p66
        %p514 = pneg %p90
        %p515 = pneg %p87
        %s516 = sand.u32 %s27, 1
        %s517 = scalar_lea.sflag [#allocation3], %s516
        %s518 = sand.u32 %s103, 1
        %s519 = smul.addr %s518, 8
        %s520 = scalar_lea.vmem [#allocation6], %s519
        %p521 = pneg %p116
        %p522 = pneg %p113
        %p523 = scmp.lt.s32.totalorder %s27, 1
        %s524 = scalar_select %p523, %s27, 1
        %s525 = smul.addr %s524, 3
        %s526 = smul.addr %s525, 8
        %s527 = scalar_lea.vmem %s4, %s526
        %p528 = pneg %p142
        %p529 = pneg %p139
        %p530 = pneg %p163
        %p531 = pneg %p160
        %p532 = pneg %p184
        %p533 = pneg %p181
        %p534 = pneg %p205
        %p535 = pneg %p202
        %p536 = pneg %p226
        %p537 = pneg %p223
        %p538 = pneg %p247
        %p539 = pneg %p244
        %p540 = pneg %p268
        %p541 = pneg %p265
        %p542 = pneg %p289
        %p543 = pneg %p286
        %p544 = pneg %p310
        %p545 = pneg %p307
        %p546 = pneg %p336
        %p547 = pneg %p333
        %p548 = scmp.lt.s32.totalorder %s27, 1
        %s549 = scalar_select %p548, %s27, 1
        %s550 = smul.addr %s549, 3
        %s551 = smul.addr %s550, 8
        %s552 = scalar_lea.vmem %s13, %s551
        %p553 = scmp.lt.s32.totalorder %s27, 1
        %s554 = scalar_select %p553, %s27, 1
        %s555 = smul.addr %s554, 7
        %s556 = smul.addr %s555, 8
        %s557 = scalar_lea.vmem %s0, %s556
        %p558 = scmp.lt.s32.totalorder %s27, 1
        %s559 = scalar_select %p558, %s27, 1
        %s560 = smul.addr %s559, 3
        %s561 = smul.addr %s560, 8
        %s562 = scalar_lea.vmem %s4, %s561
        %p563 = scmp.lt.s32.totalorder %s27, 1
        %s564 = scalar_select %p563, %s27, 1
        %s565 = smul.addr %s564, 3
        %s566 = smul.addr %s565, 8
        %s567 = scalar_lea.vmem %s13, %s566
        %v568 = vld [vmem:[#allocation7] sm:$0xff]
        %v569 = vld [vmem:[#allocation7 + $0x8] sm:$0xff]
        %v570 = vld [vmem:[#allocation7 + $0x10] sm:$0xff]
        %v571 = vld [vmem:[#allocation7 + $0x18] sm:$0xff]
        %v572 = vld [vmem:[#allocation8] sm:$0xff]
        %v573 = vld [vmem:[#allocation8 + $0x8] sm:$0xff]
        %v574 = vld [vmem:[#allocation8 + $0x10] sm:$0xff]
        %v575 = vld [vmem:[#allocation8 + $0x18] sm:$0xff]
        %v576 = vld [vmem:[%s8] sm:$0x1]
        %v577 = vld [vmem:[#allocation10] sm:$0xff]
        %v578 = vld [vmem:[#allocation10 + $0x8] sm:$0xff]
        %v579 = vld [vmem:[#allocation10 + $0x10] sm:$0xff]
        %v580 = vld [vmem:[#allocation10 + $0x18] sm:$0xff]
        %v581 = vld [vmem:[%s10] sm:$0x1]
        %v582 = vld [vmem:[%s11] sm:$0xff]
        %v583 = vld [vmem:[%s11 + $0x8] sm:$0xff]
        %v584 = vld [vmem:[%s11 + $0x10] sm:$0xff]
        %v585 = vld [vmem:[%s11 + $0x18] sm:$0xff]
        %v586 = vld [vmem:[%s12] sm:$0x1]
        %v587 = vld [vmem:[%s5] sm:$0xff]
        %v588 = vld [vmem:[%s488] sm:$0xff]
        %v589 = vld [vmem:[#allocation2] sm:$0xff]
        %v590 = vld [vmem:[#allocation4] sm:$0xff]
        %vm591 = vcmask 64512
        %v593 = vsel %vm591, %v589, 0
        %595 = vmatprep.subr.mxu0 0.0
        %596 = vmatpush1.msra.mxu0 0.0
        %597 = vmatprep.subr.mxu0 0.0
        %598 = vmatpush1.msra.mxu0 0.0
        %599 = vmatprep.subr.mxu0 0.0
        %600 = vmatpush1.msra.mxu0 0.0
        %601 = vmatprep.subr.mxu0 0.0
        %602 = vmatpush1.msra.mxu0 0.0
        %603 = vmatprep.subr.mxu0 0.0
        %604 = vmatpush1.msra.mxu0 0.0
        %605 = vmatprep.subr.mxu0 0.0
        %606 = vmatpush1.msra.mxu0 0.0
        %607 = vmatprep.subr.mxu0 0.0
        %608 = vmatpush1.msra.mxu0 0.0
        %609 = vmatprep.subr.mxu0 0.0
        %610 = vmatpush1.msra.mxu0 0.0
        %611 = vmatprep.subr.mxu0 0.0
        %612 = vmatpush1.msra.mxu0 0.0
        %613 = vmatprep.subr.mxu0 0.0
        %614 = vmatpush1.msra.mxu0 0.0
        %615 = vmatprep.subr.mxu0 0.0
        %616 = vmatpush1.msra.mxu0 0.0
        %617 = vmatprep.subr.mxu0 0.0
        %618 = vmatpush1.msra.mxu0 0.0
        %619 = vmatprep.subr.mxu0 0.0
        %620 = vmatpush1.msra.mxu0 0.0
        %621 = vmatprep.subr.mxu0 0.0
        %622 = vmatpush1.msra.mxu0 0.0
        %623 = vmatprep.subr.mxu0 0.0
        %624 = vmatpush1.msra.mxu0 0.0
        %625 = vmatprep.subr.mxu0 0.0
        %626 = vmatpush1.msra.mxu0 %v588
        %627 = vmatprep.subr.mxu0 0.0
        %628 = vmatpush2.msra.mxu0 0.0
        %629 = vmatprep.subr.mxu0 0.0
        %630 = vmatpush2.msra.mxu0 0.0
        %631 = vmatprep.subr.mxu0 0.0
        %632 = vmatpush2.msra.mxu0 0.0
        %633 = vmatprep.subr.mxu0 0.0
        %634 = vmatpush2.msra.mxu0 0.0
        %635 = vmatprep.subr.mxu0 0.0
        %636 = vmatpush2.msra.mxu0 0.0
        %637 = vmatprep.subr.mxu0 0.0
        %638 = vmatpush2.msra.mxu0 0.0
        %639 = vmatprep.subr.mxu0 0.0
        %640 = vmatpush2.msra.mxu0 0.0
        %641 = vmatprep.subr.mxu0 0.0
        %642 = vmatpush2.msra.mxu0 0.0
        %643 = vmatprep.subr.mxu0 0.0
        %644 = vmatpush2.msra.mxu0 0.0
        %645 = vmatprep.subr.mxu0 0.0
        %646 = vmatpush2.msra.mxu0 0.0
        %647 = vmatprep.subr.mxu0 0.0
        %648 = vmatpush2.msra.mxu0 0.0
        %649 = vmatprep.subr.mxu0 0.0
        %650 = vmatpush2.msra.mxu0 0.0
        %651 = vmatprep.subr.mxu0 0.0
        %652 = vmatpush2.msra.mxu0 0.0
        %653 = vmatprep.subr.mxu0 0.0
        %654 = vmatpush2.msra.mxu0 0.0
        %655 = vmatprep.subr.mxu0 0.0
        %656 = vmatpush2.msra.mxu0 0.0
        %657 = vmatprep.subr.mxu0 0.0
        %658 = vmatpush2.msra.mxu0 0.0
        %659 = vmatprep.mubr.f32.mxu0 0.0
        %660 = vmatmul.mubr.f32.gmra.mxu0 %v593
        %v661 = vpop.f32.mrf.mxu0
        %v662 = vadd.f32 0.0, %v661
        %v663 = vpop.f32.mrf.mxu0
        %664 = vdwg.mxu0
        %v666 = vsel %vm591, %v590, 0
        %668 = vmatprep.subr.mxu0 0.0
        %669 = vmatpush1.msra.mxu0 0.0
        %670 = vmatprep.subr.mxu0 0.0
        %671 = vmatpush1.msra.mxu0 0.0
        %672 = vmatprep.subr.mxu0 0.0
        %673 = vmatpush1.msra.mxu0 0.0
        %674 = vmatprep.subr.mxu0 0.0
        %675 = vmatpush1.msra.mxu0 0.0
        %676 = vmatprep.subr.mxu0 0.0
        %677 = vmatpush1.msra.mxu0 0.0
        %678 = vmatprep.subr.mxu0 0.0
        %679 = vmatpush1.msra.mxu0 0.0
        %680 = vmatprep.subr.mxu0 0.0
        %681 = vmatpush1.msra.mxu0 0.0
        %682 = vmatprep.subr.mxu0 0.0
        %683 = vmatpush1.msra.mxu0 0.0
        %684 = vmatprep.subr.mxu0 0.0
        %685 = vmatpush1.msra.mxu0 0.0
        %686 = vmatprep.subr.mxu0 0.0
        %687 = vmatpush1.msra.mxu0 0.0
        %688 = vmatprep.subr.mxu0 0.0
        %689 = vmatpush1.msra.mxu0 0.0
        %690 = vmatprep.subr.mxu0 0.0
        %691 = vmatpush1.msra.mxu0 0.0
        %692 = vmatprep.subr.mxu0 0.0
        %693 = vmatpush1.msra.mxu0 0.0
        %694 = vmatprep.subr.mxu0 0.0
        %695 = vmatpush1.msra.mxu0 0.0
        %696 = vmatprep.subr.mxu0 0.0
        %697 = vmatpush1.msra.mxu0 0.0
        %698 = vmatprep.subr.mxu0 0.0
        %699 = vmatpush1.msra.mxu0 %v588
        %700 = vmatprep.subr.mxu0 0.0
        %701 = vmatpush2.msra.mxu0 0.0
        %702 = vmatprep.subr.mxu0 0.0
        %703 = vmatpush2.msra.mxu0 0.0
        %704 = vmatprep.subr.mxu0 0.0
        %705 = vmatpush2.msra.mxu0 0.0
        %706 = vmatprep.subr.mxu0 0.0
        %707 = vmatpush2.msra.mxu0 0.0
        %708 = vmatprep.subr.mxu0 0.0
        %709 = vmatpush2.msra.mxu0 0.0
        %710 = vmatprep.subr.mxu0 0.0
        %711 = vmatpush2.msra.mxu0 0.0
        %712 = vmatprep.subr.mxu0 0.0
        %713 = vmatpush2.msra.mxu0 0.0
        %714 = vmatprep.subr.mxu0 0.0
        %715 = vmatpush2.msra.mxu0 0.0
        %716 = vmatprep.subr.mxu0 0.0
        %717 = vmatpush2.msra.mxu0 0.0
        %718 = vmatprep.subr.mxu0 0.0
        %719 = vmatpush2.msra.mxu0 0.0
        %720 = vmatprep.subr.mxu0 0.0
        %721 = vmatpush2.msra.mxu0 0.0
        %722 = vmatprep.subr.mxu0 0.0
        %723 = vmatpush2.msra.mxu0 0.0
        %724 = vmatprep.subr.mxu0 0.0
        %725 = vmatpush2.msra.mxu0 0.0
        %726 = vmatprep.subr.mxu0 0.0
        %727 = vmatpush2.msra.mxu0 0.0
        %728 = vmatprep.subr.mxu0 0.0
        %729 = vmatpush2.msra.mxu0 0.0
        %730 = vmatprep.subr.mxu0 0.0
        %731 = vmatpush2.msra.mxu0 0.0
        %732 = vmatprep.mubr.f32.mxu0 0.0
        %733 = vmatmul.mubr.f32.gmra.mxu0 %v666
        %v734 = vpop.f32.mrf.mxu0
        %v735 = vadd.f32 0.0, %v734
        %v736 = vpop.f32.mrf.mxu0
        %737 = vdwg.mxu0
        %vm738 = vcmask 261120
        %v740 = vsel %vm738, %v735, 0
        %742 = vmatprep.subr.mxu0 0.0
        %743 = vmatpush1.msra.mxu0 0.0
        %744 = vmatprep.subr.mxu0 0.0
        %745 = vmatpush1.msra.mxu0 0.0
        %746 = vmatprep.subr.mxu0 0.0
        %747 = vmatpush1.msra.mxu0 0.0
        %748 = vmatprep.subr.mxu0 0.0
        %749 = vmatpush1.msra.mxu0 0.0
        %750 = vmatprep.subr.mxu0 0.0
        %751 = vmatpush1.msra.mxu0 0.0
        %752 = vmatprep.subr.mxu0 0.0
        %753 = vmatpush1.msra.mxu0 0.0
        %754 = vmatprep.subr.mxu0 0.0
        %755 = vmatpush1.msra.mxu0 0.0
        %756 = vmatprep.subr.mxu0 0.0
        %757 = vmatpush1.msra.mxu0 0.0
        %758 = vmatprep.subr.mxu0 0.0
        %759 = vmatpush1.msra.mxu0 0.0
        %760 = vmatprep.subr.mxu0 0.0
        %761 = vmatpush1.msra.mxu0 0.0
        %762 = vmatprep.subr.mxu0 0.0
        %763 = vmatpush1.msra.mxu0 0.0
        %764 = vmatprep.subr.mxu0 0.0
        %765 = vmatpush1.msra.mxu0 0.0
        %766 = vmatprep.subr.mxu0 0.0
        %767 = vmatpush1.msra.mxu0 %v575
        %768 = vmatprep.subr.mxu0 0.0
        %769 = vmatpush1.msra.mxu0 %v574
        %770 = vmatprep.subr.mxu0 0.0
        %771 = vmatpush1.msra.mxu0 %v573
        %772 = vmatprep.subr.mxu0 0.0
        %773 = vmatpush1.msra.mxu0 %v572
        %774 = vmatprep.subr.mxu0 0.0
        %775 = vmatpush2.msra.mxu0 0.0
        %776 = vmatprep.subr.mxu0 0.0
        %777 = vmatpush2.msra.mxu0 0.0
        %778 = vmatprep.subr.mxu0 0.0
        %779 = vmatpush2.msra.mxu0 0.0
        %780 = vmatprep.subr.mxu0 0.0
        %781 = vmatpush2.msra.mxu0 0.0
        %782 = vmatprep.subr.mxu0 0.0
        %783 = vmatpush2.msra.mxu0 0.0
        %784 = vmatprep.subr.mxu0 0.0
        %785 = vmatpush2.msra.mxu0 0.0
        %786 = vmatprep.subr.mxu0 0.0
        %787 = vmatpush2.msra.mxu0 0.0
        %788 = vmatprep.subr.mxu0 0.0
        %789 = vmatpush2.msra.mxu0 0.0
        %790 = vmatprep.subr.mxu0 0.0
        %791 = vmatpush2.msra.mxu0 0.0
        %792 = vmatprep.subr.mxu0 0.0
        %793 = vmatpush2.msra.mxu0 0.0
        %794 = vmatprep.subr.mxu0 0.0
        %795 = vmatpush2.msra.mxu0 0.0
        %796 = vmatprep.subr.mxu0 0.0
        %797 = vmatpush2.msra.mxu0 0.0
        %798 = vmatprep.subr.mxu0 0.0
        %799 = vmatpush2.msra.mxu0 0.0
        %800 = vmatprep.subr.mxu0 0.0
        %801 = vmatpush2.msra.mxu0 0.0
        %802 = vmatprep.subr.mxu0 0.0
        %803 = vmatpush2.msra.mxu0 0.0
        %804 = vmatprep.subr.mxu0 0.0
        %805 = vmatpush2.msra.mxu0 0.0
        %806 = vmatprep.mubr.f32.mxu0 0.0
        %807 = vmatmul.mubr.f32.gmra.mxu0 %v740
        %v808 = vpop.f32.mrf.mxu0
        %v809 = vadd.f32 0.0, %v808
        %v810 = vpop.f32.mrf.mxu0
        %811 = vdwg.mxu0
        %v813 = vsel %vm738, %v662, 0
        %815 = vmatprep.subr.mxu0 0.0
        %816 = vmatpush1.msra.mxu0 0.0
        %817 = vmatprep.subr.mxu0 0.0
        %818 = vmatpush1.msra.mxu0 0.0
        %819 = vmatprep.subr.mxu0 0.0
        %820 = vmatpush1.msra.mxu0 0.0
        %821 = vmatprep.subr.mxu0 0.0
        %822 = vmatpush1.msra.mxu0 0.0
        %823 = vmatprep.subr.mxu0 0.0
        %824 = vmatpush1.msra.mxu0 0.0
        %825 = vmatprep.subr.mxu0 0.0
        %826 = vmatpush1.msra.mxu0 0.0
        %827 = vmatprep.subr.mxu0 0.0
        %828 = vmatpush1.msra.mxu0 0.0
        %829 = vmatprep.subr.mxu0 0.0
        %830 = vmatpush1.msra.mxu0 0.0
        %831 = vmatprep.subr.mxu0 0.0
        %832 = vmatpush1.msra.mxu0 0.0
        %833 = vmatprep.subr.mxu0 0.0
        %834 = vmatpush1.msra.mxu0 0.0
        %835 = vmatprep.subr.mxu0 0.0
        %836 = vmatpush1.msra.mxu0 0.0
        %837 = vmatprep.subr.mxu0 0.0
        %838 = vmatpush1.msra.mxu0 0.0
        %839 = vmatprep.subr.mxu0 0.0
        %840 = vmatpush1.msra.mxu0 %v571
        %841 = vmatprep.subr.mxu0 0.0
        %842 = vmatpush1.msra.mxu0 %v570
        %843 = vmatprep.subr.mxu0 0.0
        %844 = vmatpush1.msra.mxu0 %v569
        %845 = vmatprep.subr.mxu0 0.0
        %846 = vmatpush1.msra.mxu0 %v568
        %847 = vmatprep.subr.mxu0 0.0
        %848 = vmatpush2.msra.mxu0 0.0
        %849 = vmatprep.subr.mxu0 0.0
        %850 = vmatpush2.msra.mxu0 0.0
        %851 = vmatprep.subr.mxu0 0.0
        %852 = vmatpush2.msra.mxu0 0.0
        %853 = vmatprep.subr.mxu0 0.0
        %854 = vmatpush2.msra.mxu0 0.0
        %855 = vmatprep.subr.mxu0 0.0
        %856 = vmatpush2.msra.mxu0 0.0
        %857 = vmatprep.subr.mxu0 0.0
        %858 = vmatpush2.msra.mxu0 0.0
        %859 = vmatprep.subr.mxu0 0.0
        %860 = vmatpush2.msra.mxu0 0.0
        %861 = vmatprep.subr.mxu0 0.0
        %862 = vmatpush2.msra.mxu0 0.0
        %863 = vmatprep.subr.mxu0 0.0
        %864 = vmatpush2.msra.mxu0 0.0
        %865 = vmatprep.subr.mxu0 0.0
        %866 = vmatpush2.msra.mxu0 0.0
        %867 = vmatprep.subr.mxu0 0.0
        %868 = vmatpush2.msra.mxu0 0.0
        %869 = vmatprep.subr.mxu0 0.0
        %870 = vmatpush2.msra.mxu0 0.0
        %871 = vmatprep.subr.mxu0 0.0
        %872 = vmatpush2.msra.mxu0 0.0
        %873 = vmatprep.subr.mxu0 0.0
        %874 = vmatpush2.msra.mxu0 0.0
        %875 = vmatprep.subr.mxu0 0.0
        %876 = vmatpush2.msra.mxu0 0.0
        %877 = vmatprep.subr.mxu0 0.0
        %878 = vmatpush2.msra.mxu0 0.0
        %879 = vmatprep.mubr.f32.mxu0 0.0
        %880 = vmatmul.mubr.f32.gmra.mxu0 %v813
        %v881 = vpop.f32.mrf.mxu0
        %v882 = vadd.f32 %v809, %v881
        %v883 = vpop.f32.mrf.mxu0
        %884 = vdwg.mxu0
        %v886 = vlaneseq
        %v887 = vshrl.u32 %v886, 7
        %v888 = vsub.s32 0, %v887
        %v889 = vrot.slane %v576, %v888
        %v891 = vadd.f32 %v882, %v889
        %v893 = vlaneseq
        %v894 = vshrl.u32 %v893, 7
        %v895 = vsub.s32 0, %v894
        %v896 = vrot.slane %v581, %v895
        %v899 = vsel %vm738, %v891, 0
        %901 = vmatprep.subr.mxu0 0.0
        %902 = vmatpush1.msra.mxu0 0.0
        %903 = vmatprep.subr.mxu0 0.0
        %904 = vmatpush1.msra.mxu0 0.0
        %905 = vmatprep.subr.mxu0 0.0
        %906 = vmatpush1.msra.mxu0 0.0
        %907 = vmatprep.subr.mxu0 0.0
        %908 = vmatpush1.msra.mxu0 0.0
        %909 = vmatprep.subr.mxu0 0.0
        %910 = vmatpush1.msra.mxu0 0.0
        %911 = vmatprep.subr.mxu0 0.0
        %912 = vmatpush1.msra.mxu0 0.0
        %913 = vmatprep.subr.mxu0 0.0
        %914 = vmatpush1.msra.mxu0 0.0
        %915 = vmatprep.subr.mxu0 0.0
        %916 = vmatpush1.msra.mxu0 0.0
        %917 = vmatprep.subr.mxu0 0.0
        %918 = vmatpush1.msra.mxu0 0.0
        %919 = vmatprep.subr.mxu0 0.0
        %920 = vmatpush1.msra.mxu0 0.0
        %921 = vmatprep.subr.mxu0 0.0
        %922 = vmatpush1.msra.mxu0 0.0
        %923 = vmatprep.subr.mxu0 0.0
        %924 = vmatpush1.msra.mxu0 0.0
        %925 = vmatprep.subr.mxu0 0.0
        %926 = vmatpush1.msra.mxu0 %v580
        %927 = vmatprep.subr.mxu0 0.0
        %928 = vmatpush1.msra.mxu0 %v579
        %929 = vmatprep.subr.mxu0 0.0
        %930 = vmatpush1.msra.mxu0 %v578
        %931 = vmatprep.subr.mxu0 0.0
        %932 = vmatpush1.msra.mxu0 %v577
        %933 = vmatprep.subr.mxu0 0.0
        %934 = vmatpush2.msra.mxu0 0.0
        %935 = vmatprep.subr.mxu0 0.0
        %936 = vmatpush2.msra.mxu0 0.0
        %937 = vmatprep.subr.mxu0 0.0
        %938 = vmatpush2.msra.mxu0 0.0
        %939 = vmatprep.subr.mxu0 0.0
        %940 = vmatpush2.msra.mxu0 0.0
        %941 = vmatprep.subr.mxu0 0.0
        %942 = vmatpush2.msra.mxu0 0.0
        %943 = vmatprep.subr.mxu0 0.0
        %944 = vmatpush2.msra.mxu0 0.0
        %945 = vmatprep.subr.mxu0 0.0
        %946 = vmatpush2.msra.mxu0 0.0
        %947 = vmatprep.subr.mxu0 0.0
        %948 = vmatpush2.msra.mxu0 0.0
        %949 = vmatprep.subr.mxu0 0.0
        %950 = vmatpush2.msra.mxu0 0.0
        %951 = vmatprep.subr.mxu0 0.0
        %952 = vmatpush2.msra.mxu0 0.0
        %953 = vmatprep.subr.mxu0 0.0
        %954 = vmatpush2.msra.mxu0 0.0
        %955 = vmatprep.subr.mxu0 0.0
        %956 = vmatpush2.msra.mxu0 0.0
        %957 = vmatprep.subr.mxu0 0.0
        %958 = vmatpush2.msra.mxu0 0.0
        %959 = vmatprep.subr.mxu0 0.0
        %960 = vmatpush2.msra.mxu0 0.0
        %961 = vmatprep.subr.mxu0 0.0
        %962 = vmatpush2.msra.mxu0 0.0
        %963 = vmatprep.subr.mxu0 0.0
        %964 = vmatpush2.msra.mxu0 0.0
        %965 = vmatprep.mubr.f32.mxu0 0.0
        %966 = vmatmul.mubr.f32.gmra.mxu0 %v899
        %v967 = vpop.f32.mrf.mxu0
        %v968 = vadd.f32 %v896, %v967
        %v969 = vpop.f32.mrf.mxu0
        %970 = vdwg.mxu0
        %v971 = vld [vmem:[%s557] sm:$0xff]
        %v972 = vadd.f32 %v971, %v968
        %v973 = vxor.u32 %v972, 2147483648
        %v974 = vmul.f32 %v973, 1.442695
        %v975 = vpow.pop %v974
        %v976 = vadd.f32 %v975, 1.0
        %v977 = vrcp.pop %v976
        %v978 = vmul.f32 1.0, %v977
        %980 = vrot.lane.b32.xlu0 %v968, 64
        %v981 = vpop.permute.xlu0 %980
        %v983 = vmul.f32 %v978, %v981
        %985 = vrot.lane.b32.xlu0 %v983, 64
        %v986 = vpop.permute.xlu0 %985
        %v988 = vadd.f32 %v971, %v986
        %v989 = vtanh.pop %v988
        %v990 = vsub.f32 1.0, %v978
        %992 = vrot.lane.b32.xlu0 %v989, 96
        %v993 = vpop.permute.xlu0 %992
        %v995 = vmul.f32 %v990, %v993
        %996 = vrot.lane.b32.xlu0 %v891, 32
        %v997 = vpop.permute.xlu0 %996
        %v999 = vmul.f32 %v978, %v997
        %v1000 = vadd.f32 %v995, %v999
        %v1002 = vlaneseq
        %v1003 = vshrl.u32 %v1002, 7
        %v1004 = vsub.s32 0, %v1003
        %v1005 = vrot.slane %v586, %v1004
        %1008 = vrot.lane.b32.xlu0 %v1000, 96
        %v1009 = vpop.permute.xlu0 %1008
        %v1010 = vsel %vm738, %v1009, 0
        %1012 = vmatprep.subr.mxu0 0.0
        %1013 = vmatpush1.msra.mxu0 0.0
        %1014 = vmatprep.subr.mxu0 0.0
        %1015 = vmatpush1.msra.mxu0 0.0
        %1016 = vmatprep.subr.mxu0 0.0
        %1017 = vmatpush1.msra.mxu0 0.0
        %1018 = vmatprep.subr.mxu0 0.0
        %1019 = vmatpush1.msra.mxu0 0.0
        %1020 = vmatprep.subr.mxu0 0.0
        %1021 = vmatpush1.msra.mxu0 0.0
        %1022 = vmatprep.subr.mxu0 0.0
        %1023 = vmatpush1.msra.mxu0 0.0
        %1024 = vmatprep.subr.mxu0 0.0
        %1025 = vmatpush1.msra.mxu0 0.0
        %1026 = vmatprep.subr.mxu0 0.0
        %1027 = vmatpush1.msra.mxu0 0.0
        %1028 = vmatprep.subr.mxu0 0.0
        %1029 = vmatpush1.msra.mxu0 0.0
        %1030 = vmatprep.subr.mxu0 0.0
        %1031 = vmatpush1.msra.mxu0 0.0
        %1032 = vmatprep.subr.mxu0 0.0
        %1033 = vmatpush1.msra.mxu0 0.0
        %1034 = vmatprep.subr.mxu0 0.0
        %1035 = vmatpush1.msra.mxu0 0.0
        %1036 = vmatprep.subr.mxu0 0.0
        %1037 = vmatpush1.msra.mxu0 %v585
        %1038 = vmatprep.subr.mxu0 0.0
        %1039 = vmatpush1.msra.mxu0 %v584
        %1040 = vmatprep.subr.mxu0 0.0
        %1041 = vmatpush1.msra.mxu0 %v583
        %1042 = vmatprep.subr.mxu0 0.0
        %1043 = vmatpush1.msra.mxu0 %v582
        %1044 = vmatprep.subr.mxu0 0.0
        %1045 = vmatpush2.msra.mxu0 0.0
        %1046 = vmatprep.subr.mxu0 0.0
        %1047 = vmatpush2.msra.mxu0 0.0
        %1048 = vmatprep.subr.mxu0 0.0
        %1049 = vmatpush2.msra.mxu0 0.0
        %1050 = vmatprep.subr.mxu0 0.0
        %1051 = vmatpush2.msra.mxu0 0.0
        %1052 = vmatprep.subr.mxu0 0.0
        %1053 = vmatpush2.msra.mxu0 0.0
        %1054 = vmatprep.subr.mxu0 0.0
        %1055 = vmatpush2.msra.mxu0 0.0
        %1056 = vmatprep.subr.mxu0 0.0
        %1057 = vmatpush2.msra.mxu0 0.0
        %1058 = vmatprep.subr.mxu0 0.0
        %1059 = vmatpush2.msra.mxu0 0.0
        %1060 = vmatprep.subr.mxu0 0.0
        %1061 = vmatpush2.msra.mxu0 0.0
        %1062 = vmatprep.subr.mxu0 0.0
        %1063 = vmatpush2.msra.mxu0 0.0
        %1064 = vmatprep.subr.mxu0 0.0
        %1065 = vmatpush2.msra.mxu0 0.0
        %1066 = vmatprep.subr.mxu0 0.0
        %1067 = vmatpush2.msra.mxu0 0.0
        %1068 = vmatprep.subr.mxu0 0.0
        %1069 = vmatpush2.msra.mxu0 0.0
        %1070 = vmatprep.subr.mxu0 0.0
        %1071 = vmatpush2.msra.mxu0 0.0
        %1072 = vmatprep.subr.mxu0 0.0
        %1073 = vmatpush2.msra.mxu0 0.0
        %1074 = vmatprep.subr.mxu0 0.0
        %1075 = vmatpush2.msra.mxu0 0.0
        %1076 = vmatprep.mubr.f32.mxu0 0.0
        %1077 = vmatmul.mubr.f32.gmra.mxu0 %v1010
        %v1078 = vpop.f32.mrf.mxu0
        %v1079 = vadd.f32 %v1005, %v1078
        %v1080 = vpop.f32.mrf.mxu0
        %1081 = vdwg.mxu0
        %v1082 = vld [vmem:[%s562] sm:$0xff]
        %v1083 = vmul.f32 %v587, %v1079
        %v1084 = vadd.f32 %v1082, %v1083
        %vm1085 = vcmask 31744
        %1086 = vst.msk [vmem:[%s567] sm:$0xff] %vm1085, %v1084
        %s1087 = scalar_lea.vmem [#allocation2], 8
        %v1088 = vld [vmem:[%s1087] sm:$0xff]
        %s1089 = scalar_lea.vmem [#allocation4], 8
        %v1090 = vld [vmem:[%s1089] sm:$0xff]
        %v1093 = vsel %vm591, %v1088, 0
        %1095 = vmatprep.subr.mxu0 0.0
        %1096 = vmatpush1.msra.mxu0 0.0
        %1097 = vmatprep.subr.mxu0 0.0
        %1098 = vmatpush1.msra.mxu0 0.0
        %1099 = vmatprep.subr.mxu0 0.0
        %1100 = vmatpush1.msra.mxu0 0.0
        %1101 = vmatprep.subr.mxu0 0.0
        %1102 = vmatpush1.msra.mxu0 0.0
        %1103 = vmatprep.subr.mxu0 0.0
        %1104 = vmatpush1.msra.mxu0 0.0
        %1105 = vmatprep.subr.mxu0 0.0
        %1106 = vmatpush1.msra.mxu0 0.0
        %1107 = vmatprep.subr.mxu0 0.0
        %1108 = vmatpush1.msra.mxu0 0.0
        %1109 = vmatprep.subr.mxu0 0.0
        %1110 = vmatpush1.msra.mxu0 0.0
        %1111 = vmatprep.subr.mxu0 0.0
        %1112 = vmatpush1.msra.mxu0 0.0
        %1113 = vmatprep.subr.mxu0 0.0
        %1114 = vmatpush1.msra.mxu0 0.0
        %1115 = vmatprep.subr.mxu0 0.0
        %1116 = vmatpush1.msra.mxu0 0.0
        %1117 = vmatprep.subr.mxu0 0.0
        %1118 = vmatpush1.msra.mxu0 0.0
        %1119 = vmatprep.subr.mxu0 0.0
        %1120 = vmatpush1.msra.mxu0 0.0
        %1121 = vmatprep.subr.mxu0 0.0
        %1122 = vmatpush1.msra.mxu0 0.0
        %1123 = vmatprep.subr.mxu0 0.0
        %1124 = vmatpush1.msra.mxu0 0.0
        %1125 = vmatprep.subr.mxu0 0.0
        %1126 = vmatpush1.msra.mxu0 %v1009
        %1127 = vmatprep.subr.mxu0 0.0
        %1128 = vmatpush2.msra.mxu0 0.0
        %1129 = vmatprep.subr.mxu0 0.0
        %1130 = vmatpush2.msra.mxu0 0.0
        %1131 = vmatprep.subr.mxu0 0.0
        %1132 = vmatpush2.msra.mxu0 0.0
        %1133 = vmatprep.subr.mxu0 0.0
        %1134 = vmatpush2.msra.mxu0 0.0
        %1135 = vmatprep.subr.mxu0 0.0
        %1136 = vmatpush2.msra.mxu0 0.0
        %1137 = vmatprep.subr.mxu0 0.0
        %1138 = vmatpush2.msra.mxu0 0.0
        %1139 = vmatprep.subr.mxu0 0.0
        %1140 = vmatpush2.msra.mxu0 0.0
        %1141 = vmatprep.subr.mxu0 0.0
        %1142 = vmatpush2.msra.mxu0 0.0
        %1143 = vmatprep.subr.mxu0 0.0
        %1144 = vmatpush2.msra.mxu0 0.0
        %1145 = vmatprep.subr.mxu0 0.0
        %1146 = vmatpush2.msra.mxu0 0.0
        %1147 = vmatprep.subr.mxu0 0.0
        %1148 = vmatpush2.msra.mxu0 0.0
        %1149 = vmatprep.subr.mxu0 0.0
        %1150 = vmatpush2.msra.mxu0 0.0
        %1151 = vmatprep.subr.mxu0 0.0
        %1152 = vmatpush2.msra.mxu0 0.0
        %1153 = vmatprep.subr.mxu0 0.0
        %1154 = vmatpush2.msra.mxu0 0.0
        %1155 = vmatprep.subr.mxu0 0.0
        %1156 = vmatpush2.msra.mxu0 0.0
        %1157 = vmatprep.subr.mxu0 0.0
        %1158 = vmatpush2.msra.mxu0 0.0
        %1159 = vmatprep.mubr.f32.mxu0 0.0
        %1160 = vmatmul.mubr.f32.gmra.mxu0 %v1093
        %v1161 = vpop.f32.mrf.mxu0
        %v1162 = vadd.f32 0.0, %v1161
        %v1163 = vpop.f32.mrf.mxu0
        %1164 = vdwg.mxu0
        %v1166 = vsel %vm591, %v1090, 0
        %1168 = vmatprep.subr.mxu0 0.0
        %1169 = vmatpush1.msra.mxu0 0.0
        %1170 = vmatprep.subr.mxu0 0.0
        %1171 = vmatpush1.msra.mxu0 0.0
        %1172 = vmatprep.subr.mxu0 0.0
        %1173 = vmatpush1.msra.mxu0 0.0
        %1174 = vmatprep.subr.mxu0 0.0
        %1175 = vmatpush1.msra.mxu0 0.0
        %1176 = vmatprep.subr.mxu0 0.0
        %1177 = vmatpush1.msra.mxu0 0.0
        %1178 = vmatprep.subr.mxu0 0.0
        %1179 = vmatpush1.msra.mxu0 0.0
        %1180 = vmatprep.subr.mxu0 0.0
        %1181 = vmatpush1.msra.mxu0 0.0
        %1182 = vmatprep.subr.mxu0 0.0
        %1183 = vmatpush1.msra.mxu0 0.0
        %1184 = vmatprep.subr.mxu0 0.0
        %1185 = vmatpush1.msra.mxu0 0.0
        %1186 = vmatprep.subr.mxu0 0.0
        %1187 = vmatpush1.msra.mxu0 0.0
        %1188 = vmatprep.subr.mxu0 0.0
        %1189 = vmatpush1.msra.mxu0 0.0
        %1190 = vmatprep.subr.mxu0 0.0
        %1191 = vmatpush1.msra.mxu0 0.0
        %1192 = vmatprep.subr.mxu0 0.0
        %1193 = vmatpush1.msra.mxu0 0.0
        %1194 = vmatprep.subr.mxu0 0.0
        %1195 = vmatpush1.msra.mxu0 0.0
        %1196 = vmatprep.subr.mxu0 0.0
        %1197 = vmatpush1.msra.mxu0 0.0
        %1198 = vmatprep.subr.mxu0 0.0
        %1199 = vmatpush1.msra.mxu0 %v1009
        %1200 = vmatprep.subr.mxu0 0.0
        %1201 = vmatpush2.msra.mxu0 0.0
        %1202 = vmatprep.subr.mxu0 0.0
        %1203 = vmatpush2.msra.mxu0 0.0
        %1204 = vmatprep.subr.mxu0 0.0
        %1205 = vmatpush2.msra.mxu0 0.0
        %1206 = vmatprep.subr.mxu0 0.0
        %1207 = vmatpush2.msra.mxu0 0.0
        %1208 = vmatprep.subr.mxu0 0.0
        %1209 = vmatpush2.msra.mxu0 0.0
        %1210 = vmatprep.subr.mxu0 0.0
        %1211 = vmatpush2.msra.mxu0 0.0
        %1212 = vmatprep.subr.mxu0 0.0
        %1213 = vmatpush2.msra.mxu0 0.0
        %1214 = vmatprep.subr.mxu0 0.0
        %1215 = vmatpush2.msra.mxu0 0.0
        %1216 = vmatprep.subr.mxu0 0.0
        %1217 = vmatpush2.msra.mxu0 0.0
        %1218 = vmatprep.subr.mxu0 0.0
        %1219 = vmatpush2.msra.mxu0 0.0
        %1220 = vmatprep.subr.mxu0 0.0
        %1221 = vmatpush2.msra.mxu0 0.0
        %1222 = vmatprep.subr.mxu0 0.0
        %1223 = vmatpush2.msra.mxu0 0.0
        %1224 = vmatprep.subr.mxu0 0.0
        %1225 = vmatpush2.msra.mxu0 0.0
        %1226 = vmatprep.subr.mxu0 0.0
        %1227 = vmatpush2.msra.mxu0 0.0
        %1228 = vmatprep.subr.mxu0 0.0
        %1229 = vmatpush2.msra.mxu0 0.0
        %1230 = vmatprep.subr.mxu0 0.0
        %1231 = vmatpush2.msra.mxu0 0.0
        %1232 = vmatprep.mubr.f32.mxu0 0.0
        %1233 = vmatmul.mubr.f32.gmra.mxu0 %v1166
        %v1234 = vpop.f32.mrf.mxu0
        %v1235 = vadd.f32 0.0, %v1234
        %v1236 = vpop.f32.mrf.mxu0
        %1237 = vdwg.mxu0
        %v1239 = vsel %vm738, %v1235, 0
        %1241 = vmatprep.subr.mxu0 0.0
        %1242 = vmatpush1.msra.mxu0 0.0
        %1243 = vmatprep.subr.mxu0 0.0
        %1244 = vmatpush1.msra.mxu0 0.0
        %1245 = vmatprep.subr.mxu0 0.0
        %1246 = vmatpush1.msra.mxu0 0.0
        %1247 = vmatprep.subr.mxu0 0.0
        %1248 = vmatpush1.msra.mxu0 0.0
        %1249 = vmatprep.subr.mxu0 0.0
        %1250 = vmatpush1.msra.mxu0 0.0
        %1251 = vmatprep.subr.mxu0 0.0
        %1252 = vmatpush1.msra.mxu0 0.0
        %1253 = vmatprep.subr.mxu0 0.0
        %1254 = vmatpush1.msra.mxu0 0.0
        %1255 = vmatprep.subr.mxu0 0.0
        %1256 = vmatpush1.msra.mxu0 0.0
        %1257 = vmatprep.subr.mxu0 0.0
        %1258 = vmatpush1.msra.mxu0 0.0
        %1259 = vmatprep.subr.mxu0 0.0
        %1260 = vmatpush1.msra.mxu0 0.0
        %1261 = vmatprep.subr.mxu0 0.0
        %1262 = vmatpush1.msra.mxu0 0.0
        %1263 = vmatprep.subr.mxu0 0.0
        %1264 = vmatpush1.msra.mxu0 0.0
        %1265 = vmatprep.subr.mxu0 0.0
        %1266 = vmatpush1.msra.mxu0 %v575
        %1267 = vmatprep.subr.mxu0 0.0
        %1268 = vmatpush1.msra.mxu0 %v574
        %1269 = vmatprep.subr.mxu0 0.0
        %1270 = vmatpush1.msra.mxu0 %v573
        %1271 = vmatprep.subr.mxu0 0.0
        %1272 = vmatpush1.msra.mxu0 %v572
        %1273 = vmatprep.subr.mxu0 0.0
        %1274 = vmatpush2.msra.mxu0 0.0
        %1275 = vmatprep.subr.mxu0 0.0
        %1276 = vmatpush2.msra.mxu0 0.0
        %1277 = vmatprep.subr.mxu0 0.0
        %1278 = vmatpush2.msra.mxu0 0.0
        %1279 = vmatprep.subr.mxu0 0.0
        %1280 = vmatpush2.msra.mxu0 0.0
        %1281 = vmatprep.subr.mxu0 0.0
        %1282 = vmatpush2.msra.mxu0 0.0
        %1283 = vmatprep.subr.mxu0 0.0
        %1284 = vmatpush2.msra.mxu0 0.0
        %1285 = vmatprep.subr.mxu0 0.0
        %1286 = vmatpush2.msra.mxu0 0.0
        %1287 = vmatprep.subr.mxu0 0.0
        %1288 = vmatpush2.msra.mxu0 0.0
        %1289 = vmatprep.subr.mxu0 0.0
        %1290 = vmatpush2.msra.mxu0 0.0
        %1291 = vmatprep.subr.mxu0 0.0
        %1292 = vmatpush2.msra.mxu0 0.0
        %1293 = vmatprep.subr.mxu0 0.0
        %1294 = vmatpush2.msra.mxu0 0.0
        %1295 = vmatprep.subr.mxu0 0.0
        %1296 = vmatpush2.msra.mxu0 0.0
        %1297 = vmatprep.subr.mxu0 0.0
        %1298 = vmatpush2.msra.mxu0 0.0
        %1299 = vmatprep.subr.mxu0 0.0
        %1300 = vmatpush2.msra.mxu0 0.0
        %1301 = vmatprep.subr.mxu0 0.0
        %1302 = vmatpush2.msra.mxu0 0.0
        %1303 = vmatprep.subr.mxu0 0.0
        %1304 = vmatpush2.msra.mxu0 0.0
        %1305 = vmatprep.mubr.f32.mxu0 0.0
        %1306 = vmatmul.mubr.f32.gmra.mxu0 %v1239
        %v1307 = vpop.f32.mrf.mxu0
        %v1308 = vadd.f32 0.0, %v1307
        %v1309 = vpop.f32.mrf.mxu0
        %1310 = vdwg.mxu0
        %v1312 = vsel %vm738, %v1162, 0
        %1314 = vmatprep.subr.mxu0 0.0
        %1315 = vmatpush1.msra.mxu0 0.0
        %1316 = vmatprep.subr.mxu0 0.0
        %1317 = vmatpush1.msra.mxu0 0.0
        %1318 = vmatprep.subr.mxu0 0.0
        %1319 = vmatpush1.msra.mxu0 0.0
        %1320 = vmatprep.subr.mxu0 0.0
        %1321 = vmatpush1.msra.mxu0 0.0
        %1322 = vmatprep.subr.mxu0 0.0
        %1323 = vmatpush1.msra.mxu0 0.0
        %1324 = vmatprep.subr.mxu0 0.0
        %1325 = vmatpush1.msra.mxu0 0.0
        %1326 = vmatprep.subr.mxu0 0.0
        %1327 = vmatpush1.msra.mxu0 0.0
        %1328 = vmatprep.subr.mxu0 0.0
        %1329 = vmatpush1.msra.mxu0 0.0
        %1330 = vmatprep.subr.mxu0 0.0
        %1331 = vmatpush1.msra.mxu0 0.0
        %1332 = vmatprep.subr.mxu0 0.0
        %1333 = vmatpush1.msra.mxu0 0.0
        %1334 = vmatprep.subr.mxu0 0.0
        %1335 = vmatpush1.msra.mxu0 0.0
        %1336 = vmatprep.subr.mxu0 0.0
        %1337 = vmatpush1.msra.mxu0 0.0
        %1338 = vmatprep.subr.mxu0 0.0
        %1339 = vmatpush1.msra.mxu0 %v571
        %1340 = vmatprep.subr.mxu0 0.0
        %1341 = vmatpush1.msra.mxu0 %v570
        %1342 = vmatprep.subr.mxu0 0.0
        %1343 = vmatpush1.msra.mxu0 %v569
        %1344 = vmatprep.subr.mxu0 0.0
        %1345 = vmatpush1.msra.mxu0 %v568
        %1346 = vmatprep.subr.mxu0 0.0
        %1347 = vmatpush2.msra.mxu0 0.0
        %1348 = vmatprep.subr.mxu0 0.0
        %1349 = vmatpush2.msra.mxu0 0.0
        %1350 = vmatprep.subr.mxu0 0.0
        %1351 = vmatpush2.msra.mxu0 0.0
        %1352 = vmatprep.subr.mxu0 0.0
        %1353 = vmatpush2.msra.mxu0 0.0
        %1354 = vmatprep.subr.mxu0 0.0
        %1355 = vmatpush2.msra.mxu0 0.0
        %1356 = vmatprep.subr.mxu0 0.0
        %1357 = vmatpush2.msra.mxu0 0.0
        %1358 = vmatprep.subr.mxu0 0.0
        %1359 = vmatpush2.msra.mxu0 0.0
        %1360 = vmatprep.subr.mxu0 0.0
        %1361 = vmatpush2.msra.mxu0 0.0
        %1362 = vmatprep.subr.mxu0 0.0
        %1363 = vmatpush2.msra.mxu0 0.0
        %1364 = vmatprep.subr.mxu0 0.0
        %1365 = vmatpush2.msra.mxu0 0.0
        %1366 = vmatprep.subr.mxu0 0.0
        %1367 = vmatpush2.msra.mxu0 0.0
        %1368 = vmatprep.subr.mxu0 0.0
        %1369 = vmatpush2.msra.mxu0 0.0
        %1370 = vmatprep.subr.mxu0 0.0
        %1371 = vmatpush2.msra.mxu0 0.0
        %1372 = vmatprep.subr.mxu0 0.0
        %1373 = vmatpush2.msra.mxu0 0.0
        %1374 = vmatprep.subr.mxu0 0.0
        %1375 = vmatpush2.msra.mxu0 0.0
        %1376 = vmatprep.subr.mxu0 0.0
        %1377 = vmatpush2.msra.mxu0 0.0
        %1378 = vmatprep.mubr.f32.mxu0 0.0
        %1379 = vmatmul.mubr.f32.gmra.mxu0 %v1312
        %v1380 = vpop.f32.mrf.mxu0
        %v1381 = vadd.f32 %v1308, %v1380
        %v1382 = vpop.f32.mrf.mxu0
        %1383 = vdwg.mxu0
        %v1384 = vadd.f32 %v1381, %v889
        %v1386 = vsel %vm738, %v1384, 0
        %1388 = vmatprep.subr.mxu0 0.0
        %1389 = vmatpush1.msra.mxu0 0.0
        %1390 = vmatprep.subr.mxu0 0.0
        %1391 = vmatpush1.msra.mxu0 0.0
        %1392 = vmatprep.subr.mxu0 0.0
        %1393 = vmatpush1.msra.mxu0 0.0
        %1394 = vmatprep.subr.mxu0 0.0
        %1395 = vmatpush1.msra.mxu0 0.0
        %1396 = vmatprep.subr.mxu0 0.0
        %1397 = vmatpush1.msra.mxu0 0.0
        %1398 = vmatprep.subr.mxu0 0.0
        %1399 = vmatpush1.msra.mxu0 0.0
        %1400 = vmatprep.subr.mxu0 0.0
        %1401 = vmatpush1.msra.mxu0 0.0
        %1402 = vmatprep.subr.mxu0 0.0
        %1403 = vmatpush1.msra.mxu0 0.0
        %1404 = vmatprep.subr.mxu0 0.0
        %1405 = vmatpush1.msra.mxu0 0.0
        %1406 = vmatprep.subr.mxu0 0.0
        %1407 = vmatpush1.msra.mxu0 0.0
        %1408 = vmatprep.subr.mxu0 0.0
        %1409 = vmatpush1.msra.mxu0 0.0
        %1410 = vmatprep.subr.mxu0 0.0
        %1411 = vmatpush1.msra.mxu0 0.0
        %1412 = vmatprep.subr.mxu0 0.0
        %1413 = vmatpush1.msra.mxu0 %v580
        %1414 = vmatprep.subr.mxu0 0.0
        %1415 = vmatpush1.msra.mxu0 %v579
        %1416 = vmatprep.subr.mxu0 0.0
        %1417 = vmatpush1.msra.mxu0 %v578
        %1418 = vmatprep.subr.mxu0 0.0
        %1419 = vmatpush1.msra.mxu0 %v577
        %1420 = vmatprep.subr.mxu0 0.0
        %1421 = vmatpush2.msra.mxu0 0.0
        %1422 = vmatprep.subr.mxu0 0.0
        %1423 = vmatpush2.msra.mxu0 0.0
        %1424 = vmatprep.subr.mxu0 0.0
        %1425 = vmatpush2.msra.mxu0 0.0
        %1426 = vmatprep.subr.mxu0 0.0
        %1427 = vmatpush2.msra.mxu0 0.0
        %1428 = vmatprep.subr.mxu0 0.0
        %1429 = vmatpush2.msra.mxu0 0.0
        %1430 = vmatprep.subr.mxu0 0.0
        %1431 = vmatpush2.msra.mxu0 0.0
        %1432 = vmatprep.subr.mxu0 0.0
        %1433 = vmatpush2.msra.mxu0 0.0
        %1434 = vmatprep.subr.mxu0 0.0
        %1435 = vmatpush2.msra.mxu0 0.0
        %1436 = vmatprep.subr.mxu0 0.0
        %1437 = vmatpush2.msra.mxu0 0.0
        %1438 = vmatprep.subr.mxu0 0.0
        %1439 = vmatpush2.msra.mxu0 0.0
        %1440 = vmatprep.subr.mxu0 0.0
        %1441 = vmatpush2.msra.mxu0 0.0
        %1442 = vmatprep.subr.mxu0 0.0
        %1443 = vmatpush2.msra.mxu0 0.0
        %1444 = vmatprep.subr.mxu0 0.0
        %1445 = vmatpush2.msra.mxu0 0.0
        %1446 = vmatprep.subr.mxu0 0.0
        %1447 = vmatpush2.msra.mxu0 0.0
        %1448 = vmatprep.subr.mxu0 0.0
        %1449 = vmatpush2.msra.mxu0 0.0
        %1450 = vmatprep.subr.mxu0 0.0
        %1451 = vmatpush2.msra.mxu0 0.0
        %1452 = vmatprep.mubr.f32.mxu0 0.0
        %1453 = vmatmul.mubr.f32.gmra.mxu0 %v1386
        %v1454 = vpop.f32.mrf.mxu0
        %v1455 = vadd.f32 %v896, %v1454
        %v1456 = vpop.f32.mrf.mxu0
        %1457 = vdwg.mxu0
        %s1458 = scalar_lea.vmem %s557, 8
        %v1459 = vld [vmem:[%s1458] sm:$0xff]
        %v1460 = vadd.f32 %v1459, %v1455
        %v1461 = vxor.u32 %v1460, 2147483648
        %v1462 = vmul.f32 %v1461, 1.442695
        %v1463 = vpow.pop %v1462
        %v1464 = vadd.f32 %v1463, 1.0
        %v1465 = vrcp.pop %v1464
        %v1466 = vmul.f32 1.0, %v1465
        %1468 = vrot.lane.b32.xlu0 %v1455, 64
        %v1469 = vpop.permute.xlu0 %1468
        %v1471 = vmul.f32 %v1466, %v1469
        %1473 = vrot.lane.b32.xlu0 %v1471, 64
        %v1474 = vpop.permute.xlu0 %1473
        %v1476 = vadd.f32 %v1459, %v1474
        %v1477 = vtanh.pop %v1476
        %v1478 = vsub.f32 1.0, %v1466
        %1480 = vrot.lane.b32.xlu0 %v1477, 96
        %v1481 = vpop.permute.xlu0 %1480
        %v1483 = vmul.f32 %v1478, %v1481
        %1484 = vrot.lane.b32.xlu0 %v1384, 32
        %v1485 = vpop.permute.xlu0 %1484
        %v1487 = vmul.f32 %v1466, %v1485
        %v1488 = vadd.f32 %v1483, %v1487
        %1490 = vrot.lane.b32.xlu0 %v1488, 96
        %v1491 = vpop.permute.xlu0 %1490
        %v1492 = vsel %vm738, %v1491, 0
        %1494 = vmatprep.subr.mxu0 0.0
        %1495 = vmatpush1.msra.mxu0 0.0
        %1496 = vmatprep.subr.mxu0 0.0
        %1497 = vmatpush1.msra.mxu0 0.0
        %1498 = vmatprep.subr.mxu0 0.0
        %1499 = vmatpush1.msra.mxu0 0.0
        %1500 = vmatprep.subr.mxu0 0.0
        %1501 = vmatpush1.msra.mxu0 0.0
        %1502 = vmatprep.subr.mxu0 0.0
        %1503 = vmatpush1.msra.mxu0 0.0
        %1504 = vmatprep.subr.mxu0 0.0
        %1505 = vmatpush1.msra.mxu0 0.0
        %1506 = vmatprep.subr.mxu0 0.0
        %1507 = vmatpush1.msra.mxu0 0.0
        %1508 = vmatprep.subr.mxu0 0.0
        %1509 = vmatpush1.msra.mxu0 0.0
        %1510 = vmatprep.subr.mxu0 0.0
        %1511 = vmatpush1.msra.mxu0 0.0
        %1512 = vmatprep.subr.mxu0 0.0
        %1513 = vmatpush1.msra.mxu0 0.0
        %1514 = vmatprep.subr.mxu0 0.0
        %1515 = vmatpush1.msra.mxu0 0.0
        %1516 = vmatprep.subr.mxu0 0.0
        %1517 = vmatpush1.msra.mxu0 0.0
        %1518 = vmatprep.subr.mxu0 0.0
        %1519 = vmatpush1.msra.mxu0 %v585
        %1520 = vmatprep.subr.mxu0 0.0
        %1521 = vmatpush1.msra.mxu0 %v584
        %1522 = vmatprep.subr.mxu0 0.0
        %1523 = vmatpush1.msra.mxu0 %v583
        %1524 = vmatprep.subr.mxu0 0.0
        %1525 = vmatpush1.msra.mxu0 %v582
        %1526 = vmatprep.subr.mxu0 0.0
        %1527 = vmatpush2.msra.mxu0 0.0
        %1528 = vmatprep.subr.mxu0 0.0
        %1529 = vmatpush2.msra.mxu0 0.0
        %1530 = vmatprep.subr.mxu0 0.0
        %1531 = vmatpush2.msra.mxu0 0.0
        %1532 = vmatprep.subr.mxu0 0.0
        %1533 = vmatpush2.msra.mxu0 0.0
        %1534 = vmatprep.subr.mxu0 0.0
        %1535 = vmatpush2.msra.mxu0 0.0
        %1536 = vmatprep.subr.mxu0 0.0
        %1537 = vmatpush2.msra.mxu0 0.0
        %1538 = vmatprep.subr.mxu0 0.0
        %1539 = vmatpush2.msra.mxu0 0.0
        %1540 = vmatprep.subr.mxu0 0.0
        %1541 = vmatpush2.msra.mxu0 0.0
        %1542 = vmatprep.subr.mxu0 0.0
        %1543 = vmatpush2.msra.mxu0 0.0
        %1544 = vmatprep.subr.mxu0 0.0
        %1545 = vmatpush2.msra.mxu0 0.0
        %1546 = vmatprep.subr.mxu0 0.0
        %1547 = vmatpush2.msra.mxu0 0.0
        %1548 = vmatprep.subr.mxu0 0.0
        %1549 = vmatpush2.msra.mxu0 0.0
        %1550 = vmatprep.subr.mxu0 0.0
        %1551 = vmatpush2.msra.mxu0 0.0
        %1552 = vmatprep.subr.mxu0 0.0
        %1553 = vmatpush2.msra.mxu0 0.0
        %1554 = vmatprep.subr.mxu0 0.0
        %1555 = vmatpush2.msra.mxu0 0.0
        %1556 = vmatprep.subr.mxu0 0.0
        %1557 = vmatpush2.msra.mxu0 0.0
        %1558 = vmatprep.mubr.f32.mxu0 0.0
        %1559 = vmatmul.mubr.f32.gmra.mxu0 %v1492
        %v1560 = vpop.f32.mrf.mxu0
        %v1561 = vadd.f32 %v1005, %v1560
        %v1562 = vpop.f32.mrf.mxu0
        %1563 = vdwg.mxu0
        %v1564 = vld [vmem:[%s562] sm:$0xff]
        %v1565 = vmul.f32 %v587, %v1561
        %v1566 = vadd.f32 %v1564, %v1565
        %1567 = vst.msk [vmem:[%s567] sm:$0xff] %vm1085, %v1566
        %s1568 = scalar_lea.vmem [#allocation2], 16
        %v1569 = vld [vmem:[%s1568] sm:$0xff]
        %s1570 = scalar_lea.vmem [#allocation4], 16
        %v1571 = vld [vmem:[%s1570] sm:$0xff]
        %v1574 = vsel %vm591, %v1569, 0
        %1576 = vmatprep.subr.mxu0 0.0
        %1577 = vmatpush1.msra.mxu0 0.0
        %1578 = vmatprep.subr.mxu0 0.0
        %1579 = vmatpush1.msra.mxu0 0.0
        %1580 = vmatprep.subr.mxu0 0.0
        %1581 = vmatpush1.msra.mxu0 0.0
        %1582 = vmatprep.subr.mxu0 0.0
        %1583 = vmatpush1.msra.mxu0 0.0
        %1584 = vmatprep.subr.mxu0 0.0
        %1585 = vmatpush1.msra.mxu0 0.0
        %1586 = vmatprep.subr.mxu0 0.0
        %1587 = vmatpush1.msra.mxu0 0.0
        %1588 = vmatprep.subr.mxu0 0.0
        %1589 = vmatpush1.msra.mxu0 0.0
        %1590 = vmatprep.subr.mxu0 0.0
        %1591 = vmatpush1.msra.mxu0 0.0
        %1592 = vmatprep.subr.mxu0 0.0
        %1593 = vmatpush1.msra.mxu0 0.0
        %1594 = vmatprep.subr.mxu0 0.0
        %1595 = vmatpush1.msra.mxu0 0.0
        %1596 = vmatprep.subr.mxu0 0.0
        %1597 = vmatpush1.msra.mxu0 0.0
        %1598 = vmatprep.subr.mxu0 0.0
        %1599 = vmatpush1.msra.mxu0 0.0
        %1600 = vmatprep.subr.mxu0 0.0
        %1601 = vmatpush1.msra.mxu0 0.0
        %1602 = vmatprep.subr.mxu0 0.0
        %1603 = vmatpush1.msra.mxu0 0.0
        %1604 = vmatprep.subr.mxu0 0.0
        %1605 = vmatpush1.msra.mxu0 0.0
        %1606 = vmatprep.subr.mxu0 0.0
        %1607 = vmatpush1.msra.mxu0 %v1491
        %1608 = vmatprep.subr.mxu0 0.0
        %1609 = vmatpush2.msra.mxu0 0.0
        %1610 = vmatprep.subr.mxu0 0.0
        %1611 = vmatpush2.msra.mxu0 0.0
        %1612 = vmatprep.subr.mxu0 0.0
        %1613 = vmatpush2.msra.mxu0 0.0
        %1614 = vmatprep.subr.mxu0 0.0
        %1615 = vmatpush2.msra.mxu0 0.0
        %1616 = vmatprep.subr.mxu0 0.0
        %1617 = vmatpush2.msra.mxu0 0.0
        %1618 = vmatprep.subr.mxu0 0.0
        %1619 = vmatpush2.msra.mxu0 0.0
        %1620 = vmatprep.subr.mxu0 0.0
        %1621 = vmatpush2.msra.mxu0 0.0
        %1622 = vmatprep.subr.mxu0 0.0
        %1623 = vmatpush2.msra.mxu0 0.0
        %1624 = vmatprep.subr.mxu0 0.0
        %1625 = vmatpush2.msra.mxu0 0.0
        %1626 = vmatprep.subr.mxu0 0.0
        %1627 = vmatpush2.msra.mxu0 0.0
        %1628 = vmatprep.subr.mxu0 0.0
        %1629 = vmatpush2.msra.mxu0 0.0
        %1630 = vmatprep.subr.mxu0 0.0
        %1631 = vmatpush2.msra.mxu0 0.0
        %1632 = vmatprep.subr.mxu0 0.0
        %1633 = vmatpush2.msra.mxu0 0.0
        %1634 = vmatprep.subr.mxu0 0.0
        %1635 = vmatpush2.msra.mxu0 0.0
        %1636 = vmatprep.subr.mxu0 0.0
        %1637 = vmatpush2.msra.mxu0 0.0
        %1638 = vmatprep.subr.mxu0 0.0
        %1639 = vmatpush2.msra.mxu0 0.0
        %1640 = vmatprep.mubr.f32.mxu0 0.0
        %1641 = vmatmul.mubr.f32.gmra.mxu0 %v1574
        %v1642 = vpop.f32.mrf.mxu0
        %v1643 = vadd.f32 0.0, %v1642
        %v1644 = vpop.f32.mrf.mxu0
        %1645 = vdwg.mxu0
        %v1647 = vsel %vm591, %v1571, 0
        %1649 = vmatprep.subr.mxu0 0.0
        %1650 = vmatpush1.msra.mxu0 0.0
        %1651 = vmatprep.subr.mxu0 0.0
        %1652 = vmatpush1.msra.mxu0 0.0
        %1653 = vmatprep.subr.mxu0 0.0
        %1654 = vmatpush1.msra.mxu0 0.0
        %1655 = vmatprep.subr.mxu0 0.0
        %1656 = vmatpush1.msra.mxu0 0.0
        %1657 = vmatprep.subr.mxu0 0.0
        %1658 = vmatpush1.msra.mxu0 0.0
        %1659 = vmatprep.subr.mxu0 0.0
        %1660 = vmatpush1.msra.mxu0 0.0
        %1661 = vmatprep.subr.mxu0 0.0
        %1662 = vmatpush1.msra.mxu0 0.0
        %1663 = vmatprep.subr.mxu0 0.0
        %1664 = vmatpush1.msra.mxu0 0.0
        %1665 = vmatprep.subr.mxu0 0.0
        %1666 = vmatpush1.msra.mxu0 0.0
        %1667 = vmatprep.subr.mxu0 0.0
        %1668 = vmatpush1.msra.mxu0 0.0
        %1669 = vmatprep.subr.mxu0 0.0
        %1670 = vmatpush1.msra.mxu0 0.0
        %1671 = vmatprep.subr.mxu0 0.0
        %1672 = vmatpush1.msra.mxu0 0.0
        %1673 = vmatprep.subr.mxu0 0.0
        %1674 = vmatpush1.msra.mxu0 0.0
        %1675 = vmatprep.subr.mxu0 0.0
        %1676 = vmatpush1.msra.mxu0 0.0
        %1677 = vmatprep.subr.mxu0 0.0
        %1678 = vmatpush1.msra.mxu0 0.0
        %1679 = vmatprep.subr.mxu0 0.0
        %1680 = vmatpush1.msra.mxu0 %v1491
        %1681 = vmatprep.subr.mxu0 0.0
        %1682 = vmatpush2.msra.mxu0 0.0
        %1683 = vmatprep.subr.mxu0 0.0
        %1684 = vmatpush2.msra.mxu0 0.0
        %1685 = vmatprep.subr.mxu0 0.0
        %1686 = vmatpush2.msra.mxu0 0.0
        %1687 = vmatprep.subr.mxu0 0.0
        %1688 = vmatpush2.msra.mxu0 0.0
        %1689 = vmatprep.subr.mxu0 0.0
        %1690 = vmatpush2.msra.mxu0 0.0
        %1691 = vmatprep.subr.mxu0 0.0
        %1692 = vmatpush2.msra.mxu0 0.0
        %1693 = vmatprep.subr.mxu0 0.0
        %1694 = vmatpush2.msra.mxu0 0.0
        %1695 = vmatprep.subr.mxu0 0.0
        %1696 = vmatpush2.msra.mxu0 0.0
        %1697 = vmatprep.subr.mxu0 0.0
        %1698 = vmatpush2.msra.mxu0 0.0
        %1699 = vmatprep.subr.mxu0 0.0
        %1700 = vmatpush2.msra.mxu0 0.0
        %1701 = vmatprep.subr.mxu0 0.0
        %1702 = vmatpush2.msra.mxu0 0.0
        %1703 = vmatprep.subr.mxu0 0.0
        %1704 = vmatpush2.msra.mxu0 0.0
        %1705 = vmatprep.subr.mxu0 0.0
        %1706 = vmatpush2.msra.mxu0 0.0
        %1707 = vmatprep.subr.mxu0 0.0
        %1708 = vmatpush2.msra.mxu0 0.0
        %1709 = vmatprep.subr.mxu0 0.0
        %1710 = vmatpush2.msra.mxu0 0.0
        %1711 = vmatprep.subr.mxu0 0.0
        %1712 = vmatpush2.msra.mxu0 0.0
        %1713 = vmatprep.mubr.f32.mxu0 0.0
        %1714 = vmatmul.mubr.f32.gmra.mxu0 %v1647
        %v1715 = vpop.f32.mrf.mxu0
        %v1716 = vadd.f32 0.0, %v1715
        %v1717 = vpop.f32.mrf.mxu0
        %1718 = vdwg.mxu0
        %v1720 = vsel %vm738, %v1716, 0
        %1722 = vmatprep.subr.mxu0 0.0
        %1723 = vmatpush1.msra.mxu0 0.0
        %1724 = vmatprep.subr.mxu0 0.0
        %1725 = vmatpush1.msra.mxu0 0.0
        %1726 = vmatprep.subr.mxu0 0.0
        %1727 = vmatpush1.msra.mxu0 0.0
        %1728 = vmatprep.subr.mxu0 0.0
        %1729 = vmatpush1.msra.mxu0 0.0
        %1730 = vmatprep.subr.mxu0 0.0
        %1731 = vmatpush1.msra.mxu0 0.0
        %1732 = vmatprep.subr.mxu0 0.0
        %1733 = vmatpush1.msra.mxu0 0.0
        %1734 = vmatprep.subr.mxu0 0.0
        %1735 = vmatpush1.msra.mxu0 0.0
        %1736 = vmatprep.subr.mxu0 0.0
        %1737 = vmatpush1.msra.mxu0 0.0
        %1738 = vmatprep.subr.mxu0 0.0
        %1739 = vmatpush1.msra.mxu0 0.0
        %1740 = vmatprep.subr.mxu0 0.0
        %1741 = vmatpush1.msra.mxu0 0.0
        %1742 = vmatprep.subr.mxu0 0.0
        %1743 = vmatpush1.msra.mxu0 0.0
        %1744 = vmatprep.subr.mxu0 0.0
        %1745 = vmatpush1.msra.mxu0 0.0
        %1746 = vmatprep.subr.mxu0 0.0
        %1747 = vmatpush1.msra.mxu0 %v575
        %1748 = vmatprep.subr.mxu0 0.0
        %1749 = vmatpush1.msra.mxu0 %v574
        %1750 = vmatprep.subr.mxu0 0.0
        %1751 = vmatpush1.msra.mxu0 %v573
        %1752 = vmatprep.subr.mxu0 0.0
        %1753 = vmatpush1.msra.mxu0 %v572
        %1754 = vmatprep.subr.mxu0 0.0
        %1755 = vmatpush2.msra.mxu0 0.0
        %1756 = vmatprep.subr.mxu0 0.0
        %1757 = vmatpush2.msra.mxu0 0.0
        %1758 = vmatprep.subr.mxu0 0.0
        %1759 = vmatpush2.msra.mxu0 0.0
        %1760 = vmatprep.subr.mxu0 0.0
        %1761 = vmatpush2.msra.mxu0 0.0
        %1762 = vmatprep.subr.mxu0 0.0
        %1763 = vmatpush2.msra.mxu0 0.0
        %1764 = vmatprep.subr.mxu0 0.0
        %1765 = vmatpush2.msra.mxu0 0.0
        %1766 = vmatprep.subr.mxu0 0.0
        %1767 = vmatpush2.msra.mxu0 0.0
        %1768 = vmatprep.subr.mxu0 0.0
        %1769 = vmatpush2.msra.mxu0 0.0
        %1770 = vmatprep.subr.mxu0 0.0
        %1771 = vmatpush2.msra.mxu0 0.0
        %1772 = vmatprep.subr.mxu0 0.0
        %1773 = vmatpush2.msra.mxu0 0.0
        %1774 = vmatprep.subr.mxu0 0.0
        %1775 = vmatpush2.msra.mxu0 0.0
        %1776 = vmatprep.subr.mxu0 0.0
        %1777 = vmatpush2.msra.mxu0 0.0
        %1778 = vmatprep.subr.mxu0 0.0
        %1779 = vmatpush2.msra.mxu0 0.0
        %1780 = vmatprep.subr.mxu0 0.0
        %1781 = vmatpush2.msra.mxu0 0.0
        %1782 = vmatprep.subr.mxu0 0.0
        %1783 = vmatpush2.msra.mxu0 0.0
        %1784 = vmatprep.subr.mxu0 0.0
        %1785 = vmatpush2.msra.mxu0 0.0
        %1786 = vmatprep.mubr.f32.mxu0 0.0
        %1787 = vmatmul.mubr.f32.gmra.mxu0 %v1720
        %v1788 = vpop.f32.mrf.mxu0
        %v1789 = vadd.f32 0.0, %v1788
        %v1790 = vpop.f32.mrf.mxu0
        %1791 = vdwg.mxu0
        %v1793 = vsel %vm738, %v1643, 0
        %1795 = vmatprep.subr.mxu0 0.0
        %1796 = vmatpush1.msra.mxu0 0.0
        %1797 = vmatprep.subr.mxu0 0.0
        %1798 = vmatpush1.msra.mxu0 0.0
        %1799 = vmatprep.subr.mxu0 0.0
        %1800 = vmatpush1.msra.mxu0 0.0
        %1801 = vmatprep.subr.mxu0 0.0
        %1802 = vmatpush1.msra.mxu0 0.0
        %1803 = vmatprep.subr.mxu0 0.0
        %1804 = vmatpush1.msra.mxu0 0.0
        %1805 = vmatprep.subr.mxu0 0.0
        %1806 = vmatpush1.msra.mxu0 0.0
        %1807 = vmatprep.subr.mxu0 0.0
        %1808 = vmatpush1.msra.mxu0 0.0
        %1809 = vmatprep.subr.mxu0 0.0
        %1810 = vmatpush1.msra.mxu0 0.0
        %1811 = vmatprep.subr.mxu0 0.0
        %1812 = vmatpush1.msra.mxu0 0.0
        %1813 = vmatprep.subr.mxu0 0.0
        %1814 = vmatpush1.msra.mxu0 0.0
        %1815 = vmatprep.subr.mxu0 0.0
        %1816 = vmatpush1.msra.mxu0 0.0
        %1817 = vmatprep.subr.mxu0 0.0
        %1818 = vmatpush1.msra.mxu0 0.0
        %1819 = vmatprep.subr.mxu0 0.0
        %1820 = vmatpush1.msra.mxu0 %v571
        %1821 = vmatprep.subr.mxu0 0.0
        %1822 = vmatpush1.msra.mxu0 %v570
        %1823 = vmatprep.subr.mxu0 0.0
        %1824 = vmatpush1.msra.mxu0 %v569
        %1825 = vmatprep.subr.mxu0 0.0
        %1826 = vmatpush1.msra.mxu0 %v568
        %1827 = vmatprep.subr.mxu0 0.0
        %1828 = vmatpush2.msra.mxu0 0.0
        %1829 = vmatprep.subr.mxu0 0.0
        %1830 = vmatpush2.msra.mxu0 0.0
        %1831 = vmatprep.subr.mxu0 0.0
        %1832 = vmatpush2.msra.mxu0 0.0
        %1833 = vmatprep.subr.mxu0 0.0
        %1834 = vmatpush2.msra.mxu0 0.0
        %1835 = vmatprep.subr.mxu0 0.0
        %1836 = vmatpush2.msra.mxu0 0.0
        %1837 = vmatprep.subr.mxu0 0.0
        %1838 = vmatpush2.msra.mxu0 0.0
        %1839 = vmatprep.subr.mxu0 0.0
        %1840 = vmatpush2.msra.mxu0 0.0
        %1841 = vmatprep.subr.mxu0 0.0
        %1842 = vmatpush2.msra.mxu0 0.0
        %1843 = vmatprep.subr.mxu0 0.0
        %1844 = vmatpush2.msra.mxu0 0.0
        %1845 = vmatprep.subr.mxu0 0.0
        %1846 = vmatpush2.msra.mxu0 0.0
        %1847 = vmatprep.subr.mxu0 0.0
        %1848 = vmatpush2.msra.mxu0 0.0
        %1849 = vmatprep.subr.mxu0 0.0
        %1850 = vmatpush2.msra.mxu0 0.0
        %1851 = vmatprep.subr.mxu0 0.0
        %1852 = vmatpush2.msra.mxu0 0.0
        %1853 = vmatprep.subr.mxu0 0.0
        %1854 = vmatpush2.msra.mxu0 0.0
        %1855 = vmatprep.subr.mxu0 0.0
        %1856 = vmatpush2.msra.mxu0 0.0
        %1857 = vmatprep.subr.mxu0 0.0
        %1858 = vmatpush2.msra.mxu0 0.0
        %1859 = vmatprep.mubr.f32.mxu0 0.0
        %1860 = vmatmul.mubr.f32.gmra.mxu0 %v1793
        %v1861 = vpop.f32.mrf.mxu0
        %v1862 = vadd.f32 %v1789, %v1861
        %v1863 = vpop.f32.mrf.mxu0
        %1864 = vdwg.mxu0
        %v1865 = vadd.f32 %v1862, %v889
        %v1867 = vsel %vm738, %v1865, 0
        %1869 = vmatprep.subr.mxu0 0.0
        %1870 = vmatpush1.msra.mxu0 0.0
        %1871 = vmatprep.subr.mxu0 0.0
        %1872 = vmatpush1.msra.mxu0 0.0
        %1873 = vmatprep.subr.mxu0 0.0
        %1874 = vmatpush1.msra.mxu0 0.0
        %1875 = vmatprep.subr.mxu0 0.0
        %1876 = vmatpush1.msra.mxu0 0.0
        %1877 = vmatprep.subr.mxu0 0.0
        %1878 = vmatpush1.msra.mxu0 0.0
        %1879 = vmatprep.subr.mxu0 0.0
        %1880 = vmatpush1.msra.mxu0 0.0
        %1881 = vmatprep.subr.mxu0 0.0
        %1882 = vmatpush1.msra.mxu0 0.0
        %1883 = vmatprep.subr.mxu0 0.0
        %1884 = vmatpush1.msra.mxu0 0.0
        %1885 = vmatprep.subr.mxu0 0.0
        %1886 = vmatpush1.msra.mxu0 0.0
        %1887 = vmatprep.subr.mxu0 0.0
        %1888 = vmatpush1.msra.mxu0 0.0
        %1889 = vmatprep.subr.mxu0 0.0
        %1890 = vmatpush1.msra.mxu0 0.0
        %1891 = vmatprep.subr.mxu0 0.0
        %1892 = vmatpush1.msra.mxu0 0.0
        %1893 = vmatprep.subr.mxu0 0.0
        %1894 = vmatpush1.msra.mxu0 %v580
        %1895 = vmatprep.subr.mxu0 0.0
        %1896 = vmatpush1.msra.mxu0 %v579
        %1897 = vmatprep.subr.mxu0 0.0
        %1898 = vmatpush1.msra.mxu0 %v578
        %1899 = vmatprep.subr.mxu0 0.0
        %1900 = vmatpush1.msra.mxu0 %v577
        %1901 = vmatprep.subr.mxu0 0.0
        %1902 = vmatpush2.msra.mxu0 0.0
        %1903 = vmatprep.subr.mxu0 0.0
        %1904 = vmatpush2.msra.mxu0 0.0
        %1905 = vmatprep.subr.mxu0 0.0
        %1906 = vmatpush2.msra.mxu0 0.0
        %1907 = vmatprep.subr.mxu0 0.0
        %1908 = vmatpush2.msra.mxu0 0.0
        %1909 = vmatprep.subr.mxu0 0.0
        %1910 = vmatpush2.msra.mxu0 0.0
        %1911 = vmatprep.subr.mxu0 0.0
        %1912 = vmatpush2.msra.mxu0 0.0
        %1913 = vmatprep.subr.mxu0 0.0
        %1914 = vmatpush2.msra.mxu0 0.0
        %1915 = vmatprep.subr.mxu0 0.0
        %1916 = vmatpush2.msra.mxu0 0.0
        %1917 = vmatprep.subr.mxu0 0.0
        %1918 = vmatpush2.msra.mxu0 0.0
        %1919 = vmatprep.subr.mxu0 0.0
        %1920 = vmatpush2.msra.mxu0 0.0
        %1921 = vmatprep.subr.mxu0 0.0
        %1922 = vmatpush2.msra.mxu0 0.0
        %1923 = vmatprep.subr.mxu0 0.0
        %1924 = vmatpush2.msra.mxu0 0.0
        %1925 = vmatprep.subr.mxu0 0.0
        %1926 = vmatpush2.msra.mxu0 0.0
        %1927 = vmatprep.subr.mxu0 0.0
        %1928 = vmatpush2.msra.mxu0 0.0
        %1929 = vmatprep.subr.mxu0 0.0
        %1930 = vmatpush2.msra.mxu0 0.0
        %1931 = vmatprep.subr.mxu0 0.0
        %1932 = vmatpush2.msra.mxu0 0.0
        %1933 = vmatprep.mubr.f32.mxu0 0.0
        %1934 = vmatmul.mubr.f32.gmra.mxu0 %v1867
        %v1935 = vpop.f32.mrf.mxu0
        %v1936 = vadd.f32 %v896, %v1935
        %v1937 = vpop.f32.mrf.mxu0
        %1938 = vdwg.mxu0
        %s1939 = scalar_lea.vmem %s557, 16
        %v1940 = vld [vmem:[%s1939] sm:$0xff]
        %v1941 = vadd.f32 %v1940, %v1936
        %v1942 = vxor.u32 %v1941, 2147483648
        %v1943 = vmul.f32 %v1942, 1.442695
        %v1944 = vpow.pop %v1943
        %v1945 = vadd.f32 %v1944, 1.0
        %v1946 = vrcp.pop %v1945
        %v1947 = vmul.f32 1.0, %v1946
        %1949 = vrot.lane.b32.xlu0 %v1936, 64
        %v1950 = vpop.permute.xlu0 %1949
        %v1952 = vmul.f32 %v1947, %v1950
        %1954 = vrot.lane.b32.xlu0 %v1952, 64
        %v1955 = vpop.permute.xlu0 %1954
        %v1957 = vadd.f32 %v1940, %v1955
        %v1958 = vtanh.pop %v1957
        %v1959 = vsub.f32 1.0, %v1947
        %1961 = vrot.lane.b32.xlu0 %v1958, 96
        %v1962 = vpop.permute.xlu0 %1961
        %v1964 = vmul.f32 %v1959, %v1962
        %1965 = vrot.lane.b32.xlu0 %v1865, 32
        %v1966 = vpop.permute.xlu0 %1965
        %v1968 = vmul.f32 %v1947, %v1966
        %v1969 = vadd.f32 %v1964, %v1968
        %1971 = vrot.lane.b32.xlu0 %v1969, 96
        %v1972 = vpop.permute.xlu0 %1971
        %v1973 = vsel %vm738, %v1972, 0
        %1975 = vmatprep.subr.mxu0 0.0
        %1976 = vmatpush1.msra.mxu0 0.0
        %1977 = vmatprep.subr.mxu0 0.0
        %1978 = vmatpush1.msra.mxu0 0.0
        %1979 = vmatprep.subr.mxu0 0.0
        %1980 = vmatpush1.msra.mxu0 0.0
        %1981 = vmatprep.subr.mxu0 0.0
        %1982 = vmatpush1.msra.mxu0 0.0
        %1983 = vmatprep.subr.mxu0 0.0
        %1984 = vmatpush1.msra.mxu0 0.0
        %1985 = vmatprep.subr.mxu0 0.0
        %1986 = vmatpush1.msra.mxu0 0.0
        %1987 = vmatprep.subr.mxu0 0.0
        %1988 = vmatpush1.msra.mxu0 0.0
        %1989 = vmatprep.subr.mxu0 0.0
        %1990 = vmatpush1.msra.mxu0 0.0
        %1991 = vmatprep.subr.mxu0 0.0
        %1992 = vmatpush1.msra.mxu0 0.0
        %1993 = vmatprep.subr.mxu0 0.0
        %1994 = vmatpush1.msra.mxu0 0.0
        %1995 = vmatprep.subr.mxu0 0.0
        %1996 = vmatpush1.msra.mxu0 0.0
        %1997 = vmatprep.subr.mxu0 0.0
        %1998 = vmatpush1.msra.mxu0 0.0
        %1999 = vmatprep.subr.mxu0 0.0
        %2000 = vmatpush1.msra.mxu0 %v585
        %2001 = vmatprep.subr.mxu0 0.0
        %2002 = vmatpush1.msra.mxu0 %v584
        %2003 = vmatprep.subr.mxu0 0.0
        %2004 = vmatpush1.msra.mxu0 %v583
        %2005 = vmatprep.subr.mxu0 0.0
        %2006 = vmatpush1.msra.mxu0 %v582
        %2007 = vmatprep.subr.mxu0 0.0
        %2008 = vmatpush2.msra.mxu0 0.0
        %2009 = vmatprep.subr.mxu0 0.0
        %2010 = vmatpush2.msra.mxu0 0.0
        %2011 = vmatprep.subr.mxu0 0.0
        %2012 = vmatpush2.msra.mxu0 0.0
        %2013 = vmatprep.subr.mxu0 0.0
        %2014 = vmatpush2.msra.mxu0 0.0
        %2015 = vmatprep.subr.mxu0 0.0
        %2016 = vmatpush2.msra.mxu0 0.0
        %2017 = vmatprep.subr.mxu0 0.0
        %2018 = vmatpush2.msra.mxu0 0.0
        %2019 = vmatprep.subr.mxu0 0.0
        %2020 = vmatpush2.msra.mxu0 0.0
        %2021 = vmatprep.subr.mxu0 0.0
        %2022 = vmatpush2.msra.mxu0 0.0
        %2023 = vmatprep.subr.mxu0 0.0
        %2024 = vmatpush2.msra.mxu0 0.0
        %2025 = vmatprep.subr.mxu0 0.0
        %2026 = vmatpush2.msra.mxu0 0.0
        %2027 = vmatprep.subr.mxu0 0.0
        %2028 = vmatpush2.msra.mxu0 0.0
        %2029 = vmatprep.subr.mxu0 0.0
        %2030 = vmatpush2.msra.mxu0 0.0
        %2031 = vmatprep.subr.mxu0 0.0
        %2032 = vmatpush2.msra.mxu0 0.0
        %2033 = vmatprep.subr.mxu0 0.0
        %2034 = vmatpush2.msra.mxu0 0.0
        %2035 = vmatprep.subr.mxu0 0.0
        %2036 = vmatpush2.msra.mxu0 0.0
        %2037 = vmatprep.subr.mxu0 0.0
        %2038 = vmatpush2.msra.mxu0 0.0
        %2039 = vmatprep.mubr.f32.mxu0 0.0
        %2040 = vmatmul.mubr.f32.gmra.mxu0 %v1973
        %v2041 = vpop.f32.mrf.mxu0
        %v2042 = vadd.f32 %v1005, %v2041
        %v2043 = vpop.f32.mrf.mxu0
        %2044 = vdwg.mxu0
        %v2045 = vld [vmem:[%s562] sm:$0xff]
        %v2046 = vmul.f32 %v587, %v2042
        %v2047 = vadd.f32 %v2045, %v2046
        %2048 = vst.msk [vmem:[%s567] sm:$0xff] %vm1085, %v2047
        %s2049 = scalar_lea.vmem [#allocation2], 24
        %v2050 = vld [vmem:[%s2049] sm:$0xff]
        %s2051 = scalar_lea.vmem [#allocation4], 24
        %v2052 = vld [vmem:[%s2051] sm:$0xff]
        %v2055 = vsel %vm591, %v2050, 0
        %2057 = vmatprep.subr.mxu0 0.0
        %2058 = vmatpush1.msra.mxu0 0.0
        %2059 = vmatprep.subr.mxu0 0.0
        %2060 = vmatpush1.msra.mxu0 0.0
        %2061 = vmatprep.subr.mxu0 0.0
        %2062 = vmatpush1.msra.mxu0 0.0
        %2063 = vmatprep.subr.mxu0 0.0
        %2064 = vmatpush1.msra.mxu0 0.0
        %2065 = vmatprep.subr.mxu0 0.0
        %2066 = vmatpush1.msra.mxu0 0.0
        %2067 = vmatprep.subr.mxu0 0.0
        %2068 = vmatpush1.msra.mxu0 0.0
        %2069 = vmatprep.subr.mxu0 0.0
        %2070 = vmatpush1.msra.mxu0 0.0
        %2071 = vmatprep.subr.mxu0 0.0
        %2072 = vmatpush1.msra.mxu0 0.0
        %2073 = vmatprep.subr.mxu0 0.0
        %2074 = vmatpush1.msra.mxu0 0.0
        %2075 = vmatprep.subr.mxu0 0.0
        %2076 = vmatpush1.msra.mxu0 0.0
        %2077 = vmatprep.subr.mxu0 0.0
        %2078 = vmatpush1.msra.mxu0 0.0
        %2079 = vmatprep.subr.mxu0 0.0
        %2080 = vmatpush1.msra.mxu0 0.0
        %2081 = vmatprep.subr.mxu0 0.0
        %2082 = vmatpush1.msra.mxu0 0.0
        %2083 = vmatprep.subr.mxu0 0.0
        %2084 = vmatpush1.msra.mxu0 0.0
        %2085 = vmatprep.subr.mxu0 0.0
        %2086 = vmatpush1.msra.mxu0 0.0
        %2087 = vmatprep.subr.mxu0 0.0
        %2088 = vmatpush1.msra.mxu0 %v1972
        %2089 = vmatprep.subr.mxu0 0.0
        %2090 = vmatpush2.msra.mxu0 0.0
        %2091 = vmatprep.subr.mxu0 0.0
        %2092 = vmatpush2.msra.mxu0 0.0
        %2093 = vmatprep.subr.mxu0 0.0
        %2094 = vmatpush2.msra.mxu0 0.0
        %2095 = vmatprep.subr.mxu0 0.0
        %2096 = vmatpush2.msra.mxu0 0.0
        %2097 = vmatprep.subr.mxu0 0.0
        %2098 = vmatpush2.msra.mxu0 0.0
        %2099 = vmatprep.subr.mxu0 0.0
        %2100 = vmatpush2.msra.mxu0 0.0
        %2101 = vmatprep.subr.mxu0 0.0
        %2102 = vmatpush2.msra.mxu0 0.0
        %2103 = vmatprep.subr.mxu0 0.0
        %2104 = vmatpush2.msra.mxu0 0.0
        %2105 = vmatprep.subr.mxu0 0.0
        %2106 = vmatpush2.msra.mxu0 0.0
        %2107 = vmatprep.subr.mxu0 0.0
        %2108 = vmatpush2.msra.mxu0 0.0
        %2109 = vmatprep.subr.mxu0 0.0
        %2110 = vmatpush2.msra.mxu0 0.0
        %2111 = vmatprep.subr.mxu0 0.0
        %2112 = vmatpush2.msra.mxu0 0.0
        %2113 = vmatprep.subr.mxu0 0.0
        %2114 = vmatpush2.msra.mxu0 0.0
        %2115 = vmatprep.subr.mxu0 0.0
        %2116 = vmatpush2.msra.mxu0 0.0
        %2117 = vmatprep.subr.mxu0 0.0
        %2118 = vmatpush2.msra.mxu0 0.0
        %2119 = vmatprep.subr.mxu0 0.0
        %2120 = vmatpush2.msra.mxu0 0.0
        %2121 = vmatprep.mubr.f32.mxu0 0.0
        %2122 = vmatmul.mubr.f32.gmra.mxu0 %v2055
        %v2123 = vpop.f32.mrf.mxu0
        %v2124 = vadd.f32 0.0, %v2123
        %v2125 = vpop.f32.mrf.mxu0
        %2126 = vdwg.mxu0
        %v2128 = vsel %vm591, %v2052, 0
        %2130 = vmatprep.subr.mxu0 0.0
        %2131 = vmatpush1.msra.mxu0 0.0
        %2132 = vmatprep.subr.mxu0 0.0
        %2133 = vmatpush1.msra.mxu0 0.0
        %2134 = vmatprep.subr.mxu0 0.0
        %2135 = vmatpush1.msra.mxu0 0.0
        %2136 = vmatprep.subr.mxu0 0.0
        %2137 = vmatpush1.msra.mxu0 0.0
        %2138 = vmatprep.subr.mxu0 0.0
        %2139 = vmatpush1.msra.mxu0 0.0
        %2140 = vmatprep.subr.mxu0 0.0
        %2141 = vmatpush1.msra.mxu0 0.0
        %2142 = vmatprep.subr.mxu0 0.0
        %2143 = vmatpush1.msra.mxu0 0.0
        %2144 = vmatprep.subr.mxu0 0.0
        %2145 = vmatpush1.msra.mxu0 0.0
        %2146 = vmatprep.subr.mxu0 0.0
        %2147 = vmatpush1.msra.mxu0 0.0
        %2148 = vmatprep.subr.mxu0 0.0
        %2149 = vmatpush1.msra.mxu0 0.0
        %2150 = vmatprep.subr.mxu0 0.0
        %2151 = vmatpush1.msra.mxu0 0.0
        %2152 = vmatprep.subr.mxu0 0.0
        %2153 = vmatpush1.msra.mxu0 0.0
        %2154 = vmatprep.subr.mxu0 0.0
        %2155 = vmatpush1.msra.mxu0 0.0
        %2156 = vmatprep.subr.mxu0 0.0
        %2157 = vmatpush1.msra.mxu0 0.0
        %2158 = vmatprep.subr.mxu0 0.0
        %2159 = vmatpush1.msra.mxu0 0.0
        %2160 = vmatprep.subr.mxu0 0.0
        %2161 = vmatpush1.msra.mxu0 %v1972
        %2162 = vmatprep.subr.mxu0 0.0
        %2163 = vmatpush2.msra.mxu0 0.0
        %2164 = vmatprep.subr.mxu0 0.0
        %2165 = vmatpush2.msra.mxu0 0.0
        %2166 = vmatprep.subr.mxu0 0.0
        %2167 = vmatpush2.msra.mxu0 0.0
        %2168 = vmatprep.subr.mxu0 0.0
        %2169 = vmatpush2.msra.mxu0 0.0
        %2170 = vmatprep.subr.mxu0 0.0
        %2171 = vmatpush2.msra.mxu0 0.0
        %2172 = vmatprep.subr.mxu0 0.0
        %2173 = vmatpush2.msra.mxu0 0.0
        %2174 = vmatprep.subr.mxu0 0.0
        %2175 = vmatpush2.msra.mxu0 0.0
        %2176 = vmatprep.subr.mxu0 0.0
        %2177 = vmatpush2.msra.mxu0 0.0
        %2178 = vmatprep.subr.mxu0 0.0
        %2179 = vmatpush2.msra.mxu0 0.0
        %2180 = vmatprep.subr.mxu0 0.0
        %2181 = vmatpush2.msra.mxu0 0.0
        %2182 = vmatprep.subr.mxu0 0.0
        %2183 = vmatpush2.msra.mxu0 0.0
        %2184 = vmatprep.subr.mxu0 0.0
        %2185 = vmatpush2.msra.mxu0 0.0
        %2186 = vmatprep.subr.mxu0 0.0
        %2187 = vmatpush2.msra.mxu0 0.0
        %2188 = vmatprep.subr.mxu0 0.0
        %2189 = vmatpush2.msra.mxu0 0.0
        %2190 = vmatprep.subr.mxu0 0.0
        %2191 = vmatpush2.msra.mxu0 0.0
        %2192 = vmatprep.subr.mxu0 0.0
        %2193 = vmatpush2.msra.mxu0 0.0
        %2194 = vmatprep.mubr.f32.mxu0 0.0
        %2195 = vmatmul.mubr.f32.gmra.mxu0 %v2128
        %v2196 = vpop.f32.mrf.mxu0
        %v2197 = vadd.f32 0.0, %v2196
        %v2198 = vpop.f32.mrf.mxu0
        %2199 = vdwg.mxu0
        %v2201 = vsel %vm738, %v2197, 0
        %2203 = vmatprep.subr.mxu0 0.0
        %2204 = vmatpush1.msra.mxu0 0.0
        %2205 = vmatprep.subr.mxu0 0.0
        %2206 = vmatpush1.msra.mxu0 0.0
        %2207 = vmatprep.subr.mxu0 0.0
        %2208 = vmatpush1.msra.mxu0 0.0
        %2209 = vmatprep.subr.mxu0 0.0
        %2210 = vmatpush1.msra.mxu0 0.0
        %2211 = vmatprep.subr.mxu0 0.0
        %2212 = vmatpush1.msra.mxu0 0.0
        %2213 = vmatprep.subr.mxu0 0.0
        %2214 = vmatpush1.msra.mxu0 0.0
        %2215 = vmatprep.subr.mxu0 0.0
        %2216 = vmatpush1.msra.mxu0 0.0
        %2217 = vmatprep.subr.mxu0 0.0
        %2218 = vmatpush1.msra.mxu0 0.0
        %2219 = vmatprep.subr.mxu0 0.0
        %2220 = vmatpush1.msra.mxu0 0.0
        %2221 = vmatprep.subr.mxu0 0.0
        %2222 = vmatpush1.msra.mxu0 0.0
        %2223 = vmatprep.subr.mxu0 0.0
        %2224 = vmatpush1.msra.mxu0 0.0
        %2225 = vmatprep.subr.mxu0 0.0
        %2226 = vmatpush1.msra.mxu0 0.0
        %2227 = vmatprep.subr.mxu0 0.0
        %2228 = vmatpush1.msra.mxu0 %v575
        %2229 = vmatprep.subr.mxu0 0.0
        %2230 = vmatpush1.msra.mxu0 %v574
        %2231 = vmatprep.subr.mxu0 0.0
        %2232 = vmatpush1.msra.mxu0 %v573
        %2233 = vmatprep.subr.mxu0 0.0
        %2234 = vmatpush1.msra.mxu0 %v572
        %2235 = vmatprep.subr.mxu0 0.0
        %2236 = vmatpush2.msra.mxu0 0.0
        %2237 = vmatprep.subr.mxu0 0.0
        %2238 = vmatpush2.msra.mxu0 0.0
        %2239 = vmatprep.subr.mxu0 0.0
        %2240 = vmatpush2.msra.mxu0 0.0
        %2241 = vmatprep.subr.mxu0 0.0
        %2242 = vmatpush2.msra.mxu0 0.0
        %2243 = vmatprep.subr.mxu0 0.0
        %2244 = vmatpush2.msra.mxu0 0.0
        %2245 = vmatprep.subr.mxu0 0.0
        %2246 = vmatpush2.msra.mxu0 0.0
        %2247 = vmatprep.subr.mxu0 0.0
        %2248 = vmatpush2.msra.mxu0 0.0
        %2249 = vmatprep.subr.mxu0 0.0
        %2250 = vmatpush2.msra.mxu0 0.0
        %2251 = vmatprep.subr.mxu0 0.0
        %2252 = vmatpush2.msra.mxu0 0.0
        %2253 = vmatprep.subr.mxu0 0.0
        %2254 = vmatpush2.msra.mxu0 0.0
        %2255 = vmatprep.subr.mxu0 0.0
        %2256 = vmatpush2.msra.mxu0 0.0
        %2257 = vmatprep.subr.mxu0 0.0
        %2258 = vmatpush2.msra.mxu0 0.0
        %2259 = vmatprep.subr.mxu0 0.0
        %2260 = vmatpush2.msra.mxu0 0.0
        %2261 = vmatprep.subr.mxu0 0.0
        %2262 = vmatpush2.msra.mxu0 0.0
        %2263 = vmatprep.subr.mxu0 0.0
        %2264 = vmatpush2.msra.mxu0 0.0
        %2265 = vmatprep.subr.mxu0 0.0
        %2266 = vmatpush2.msra.mxu0 0.0
        %2267 = vmatprep.mubr.f32.mxu0 0.0
        %2268 = vmatmul.mubr.f32.gmra.mxu0 %v2201
        %v2269 = vpop.f32.mrf.mxu0
        %v2270 = vadd.f32 0.0, %v2269
        %v2271 = vpop.f32.mrf.mxu0
        %2272 = vdwg.mxu0
        %v2274 = vsel %vm738, %v2124, 0
        %2276 = vmatprep.subr.mxu0 0.0
        %2277 = vmatpush1.msra.mxu0 0.0
        %2278 = vmatprep.subr.mxu0 0.0
        %2279 = vmatpush1.msra.mxu0 0.0
        %2280 = vmatprep.subr.mxu0 0.0
        %2281 = vmatpush1.msra.mxu0 0.0
        %2282 = vmatprep.subr.mxu0 0.0
        %2283 = vmatpush1.msra.mxu0 0.0
        %2284 = vmatprep.subr.mxu0 0.0
        %2285 = vmatpush1.msra.mxu0 0.0
        %2286 = vmatprep.subr.mxu0 0.0
        %2287 = vmatpush1.msra.mxu0 0.0
        %2288 = vmatprep.subr.mxu0 0.0
        %2289 = vmatpush1.msra.mxu0 0.0
        %2290 = vmatprep.subr.mxu0 0.0
        %2291 = vmatpush1.msra.mxu0 0.0
        %2292 = vmatprep.subr.mxu0 0.0
        %2293 = vmatpush1.msra.mxu0 0.0
        %2294 = vmatprep.subr.mxu0 0.0
        %2295 = vmatpush1.msra.mxu0 0.0
        %2296 = vmatprep.subr.mxu0 0.0
        %2297 = vmatpush1.msra.mxu0 0.0
        %2298 = vmatprep.subr.mxu0 0.0
        %2299 = vmatpush1.msra.mxu0 0.0
        %2300 = vmatprep.subr.mxu0 0.0
        %2301 = vmatpush1.msra.mxu0 %v571
        %2302 = vmatprep.subr.mxu0 0.0
        %2303 = vmatpush1.msra.mxu0 %v570
        %2304 = vmatprep.subr.mxu0 0.0
        %2305 = vmatpush1.msra.mxu0 %v569
        %2306 = vmatprep.subr.mxu0 0.0
        %2307 = vmatpush1.msra.mxu0 %v568
        %2308 = vmatprep.subr.mxu0 0.0
        %2309 = vmatpush2.msra.mxu0 0.0
        %2310 = vmatprep.subr.mxu0 0.0
        %2311 = vmatpush2.msra.mxu0 0.0
        %2312 = vmatprep.subr.mxu0 0.0
        %2313 = vmatpush2.msra.mxu0 0.0
        %2314 = vmatprep.subr.mxu0 0.0
        %2315 = vmatpush2.msra.mxu0 0.0
        %2316 = vmatprep.subr.mxu0 0.0
        %2317 = vmatpush2.msra.mxu0 0.0
        %2318 = vmatprep.subr.mxu0 0.0
        %2319 = vmatpush2.msra.mxu0 0.0
        %2320 = vmatprep.subr.mxu0 0.0
        %2321 = vmatpush2.msra.mxu0 0.0
        %2322 = vmatprep.subr.mxu0 0.0
        %2323 = vmatpush2.msra.mxu0 0.0
        %2324 = vmatprep.subr.mxu0 0.0
        %2325 = vmatpush2.msra.mxu0 0.0
        %2326 = vmatprep.subr.mxu0 0.0
        %2327 = vmatpush2.msra.mxu0 0.0
        %2328 = vmatprep.subr.mxu0 0.0
        %2329 = vmatpush2.msra.mxu0 0.0
        %2330 = vmatprep.subr.mxu0 0.0
        %2331 = vmatpush2.msra.mxu0 0.0
        %2332 = vmatprep.subr.mxu0 0.0
        %2333 = vmatpush2.msra.mxu0 0.0
        %2334 = vmatprep.subr.mxu0 0.0
        %2335 = vmatpush2.msra.mxu0 0.0
        %2336 = vmatprep.subr.mxu0 0.0
        %2337 = vmatpush2.msra.mxu0 0.0
        %2338 = vmatprep.subr.mxu0 0.0
        %2339 = vmatpush2.msra.mxu0 0.0
        %2340 = vmatprep.mubr.f32.mxu0 0.0
        %2341 = vmatmul.mubr.f32.gmra.mxu0 %v2274
        %v2342 = vpop.f32.mrf.mxu0
        %v2343 = vadd.f32 %v2270, %v2342
        %v2344 = vpop.f32.mrf.mxu0
        %2345 = vdwg.mxu0
        %v2346 = vadd.f32 %v2343, %v889
        %v2348 = vsel %vm738, %v2346, 0
        %2350 = vmatprep.subr.mxu0 0.0
        %2351 = vmatpush1.msra.mxu0 0.0
        %2352 = vmatprep.subr.mxu0 0.0
        %2353 = vmatpush1.msra.mxu0 0.0
        %2354 = vmatprep.subr.mxu0 0.0
        %2355 = vmatpush1.msra.mxu0 0.0
        %2356 = vmatprep.subr.mxu0 0.0
        %2357 = vmatpush1.msra.mxu0 0.0
        %2358 = vmatprep.subr.mxu0 0.0
        %2359 = vmatpush1.msra.mxu0 0.0
        %2360 = vmatprep.subr.mxu0 0.0
        %2361 = vmatpush1.msra.mxu0 0.0
        %2362 = vmatprep.subr.mxu0 0.0
        %2363 = vmatpush1.msra.mxu0 0.0
        %2364 = vmatprep.subr.mxu0 0.0
        %2365 = vmatpush1.msra.mxu0 0.0
        %2366 = vmatprep.subr.mxu0 0.0
        %2367 = vmatpush1.msra.mxu0 0.0
        %2368 = vmatprep.subr.mxu0 0.0
        %2369 = vmatpush1.msra.mxu0 0.0
        %2370 = vmatprep.subr.mxu0 0.0
        %2371 = vmatpush1.msra.mxu0 0.0
        %2372 = vmatprep.subr.mxu0 0.0
        %2373 = vmatpush1.msra.mxu0 0.0
        %2374 = vmatprep.subr.mxu0 0.0
        %2375 = vmatpush1.msra.mxu0 %v580
        %2376 = vmatprep.subr.mxu0 0.0
        %2377 = vmatpush1.msra.mxu0 %v579
        %2378 = vmatprep.subr.mxu0 0.0
        %2379 = vmatpush1.msra.mxu0 %v578
        %2380 = vmatprep.subr.mxu0 0.0
        %2381 = vmatpush1.msra.mxu0 %v577
        %2382 = vmatprep.subr.mxu0 0.0
        %2383 = vmatpush2.msra.mxu0 0.0
        %2384 = vmatprep.subr.mxu0 0.0
        %2385 = vmatpush2.msra.mxu0 0.0
        %2386 = vmatprep.subr.mxu0 0.0
        %2387 = vmatpush2.msra.mxu0 0.0
        %2388 = vmatprep.subr.mxu0 0.0
        %2389 = vmatpush2.msra.mxu0 0.0
        %2390 = vmatprep.subr.mxu0 0.0
        %2391 = vmatpush2.msra.mxu0 0.0
        %2392 = vmatprep.subr.mxu0 0.0
        %2393 = vmatpush2.msra.mxu0 0.0
        %2394 = vmatprep.subr.mxu0 0.0
        %2395 = vmatpush2.msra.mxu0 0.0
        %2396 = vmatprep.subr.mxu0 0.0
        %2397 = vmatpush2.msra.mxu0 0.0
        %2398 = vmatprep.subr.mxu0 0.0
        %2399 = vmatpush2.msra.mxu0 0.0
        %2400 = vmatprep.subr.mxu0 0.0
        %2401 = vmatpush2.msra.mxu0 0.0
        %2402 = vmatprep.subr.mxu0 0.0
        %2403 = vmatpush2.msra.mxu0 0.0
        %2404 = vmatprep.subr.mxu0 0.0
        %2405 = vmatpush2.msra.mxu0 0.0
        %2406 = vmatprep.subr.mxu0 0.0
        %2407 = vmatpush2.msra.mxu0 0.0
        %2408 = vmatprep.subr.mxu0 0.0
        %2409 = vmatpush2.msra.mxu0 0.0
        %2410 = vmatprep.subr.mxu0 0.0
        %2411 = vmatpush2.msra.mxu0 0.0
        %2412 = vmatprep.subr.mxu0 0.0
        %2413 = vmatpush2.msra.mxu0 0.0
        %2414 = vmatprep.mubr.f32.mxu0 0.0
        %2415 = vmatmul.mubr.f32.gmra.mxu0 %v2348
        %v2416 = vpop.f32.mrf.mxu0
        %v2417 = vadd.f32 %v896, %v2416
        %v2418 = vpop.f32.mrf.mxu0
        %2419 = vdwg.mxu0
        %s2420 = scalar_lea.vmem %s557, 24
        %v2421 = vld [vmem:[%s2420] sm:$0xff]
        %v2422 = vadd.f32 %v2421, %v2417
        %v2423 = vxor.u32 %v2422, 2147483648
        %v2424 = vmul.f32 %v2423, 1.442695
        %v2425 = vpow.pop %v2424
        %v2426 = vadd.f32 %v2425, 1.0
        %v2427 = vrcp.pop %v2426
        %v2428 = vmul.f32 1.0, %v2427
        %2430 = vrot.lane.b32.xlu0 %v2417, 64
        %v2431 = vpop.permute.xlu0 %2430
        %v2433 = vmul.f32 %v2428, %v2431
        %2435 = vrot.lane.b32.xlu0 %v2433, 64
        %v2436 = vpop.permute.xlu0 %2435
        %v2438 = vadd.f32 %v2421, %v2436
        %v2439 = vtanh.pop %v2438
        %v2440 = vsub.f32 1.0, %v2428
        %2442 = vrot.lane.b32.xlu0 %v2439, 96
        %v2443 = vpop.permute.xlu0 %2442
        %v2445 = vmul.f32 %v2440, %v2443
        %2446 = vrot.lane.b32.xlu0 %v2346, 32
        %v2447 = vpop.permute.xlu0 %2446
        %v2449 = vmul.f32 %v2428, %v2447
        %v2450 = vadd.f32 %v2445, %v2449
        %2452 = vrot.lane.b32.xlu0 %v2450, 96
        %v2453 = vpop.permute.xlu0 %2452
        %v2454 = vsel %vm738, %v2453, 0
        %2456 = vmatprep.subr.mxu0 0.0
        %2457 = vmatpush1.msra.mxu0 0.0
        %2458 = vmatprep.subr.mxu0 0.0
        %2459 = vmatpush1.msra.mxu0 0.0
        %2460 = vmatprep.subr.mxu0 0.0
        %2461 = vmatpush1.msra.mxu0 0.0
        %2462 = vmatprep.subr.mxu0 0.0
        %2463 = vmatpush1.msra.mxu0 0.0
        %2464 = vmatprep.subr.mxu0 0.0
        %2465 = vmatpush1.msra.mxu0 0.0
        %2466 = vmatprep.subr.mxu0 0.0
        %2467 = vmatpush1.msra.mxu0 0.0
        %2468 = vmatprep.subr.mxu0 0.0
        %2469 = vmatpush1.msra.mxu0 0.0
        %2470 = vmatprep.subr.mxu0 0.0
        %2471 = vmatpush1.msra.mxu0 0.0
        %2472 = vmatprep.subr.mxu0 0.0
        %2473 = vmatpush1.msra.mxu0 0.0
        %2474 = vmatprep.subr.mxu0 0.0
        %2475 = vmatpush1.msra.mxu0 0.0
        %2476 = vmatprep.subr.mxu0 0.0
        %2477 = vmatpush1.msra.mxu0 0.0
        %2478 = vmatprep.subr.mxu0 0.0
        %2479 = vmatpush1.msra.mxu0 0.0
        %2480 = vmatprep.subr.mxu0 0.0
        %2481 = vmatpush1.msra.mxu0 %v585
        %2482 = vmatprep.subr.mxu0 0.0
        %2483 = vmatpush1.msra.mxu0 %v584
        %2484 = vmatprep.subr.mxu0 0.0
        %2485 = vmatpush1.msra.mxu0 %v583
        %2486 = vmatprep.subr.mxu0 0.0
        %2487 = vmatpush1.msra.mxu0 %v582
        %2488 = vmatprep.subr.mxu0 0.0
        %2489 = vmatpush2.msra.mxu0 0.0
        %2490 = vmatprep.subr.mxu0 0.0
        %2491 = vmatpush2.msra.mxu0 0.0
        %2492 = vmatprep.subr.mxu0 0.0
        %2493 = vmatpush2.msra.mxu0 0.0
        %2494 = vmatprep.subr.mxu0 0.0
        %2495 = vmatpush2.msra.mxu0 0.0
        %2496 = vmatprep.subr.mxu0 0.0
        %2497 = vmatpush2.msra.mxu0 0.0
        %2498 = vmatprep.subr.mxu0 0.0
        %2499 = vmatpush2.msra.mxu0 0.0
        %2500 = vmatprep.subr.mxu0 0.0
        %2501 = vmatpush2.msra.mxu0 0.0
        %2502 = vmatprep.subr.mxu0 0.0
        %2503 = vmatpush2.msra.mxu0 0.0
        %2504 = vmatprep.subr.mxu0 0.0
        %2505 = vmatpush2.msra.mxu0 0.0
        %2506 = vmatprep.subr.mxu0 0.0
        %2507 = vmatpush2.msra.mxu0 0.0
        %2508 = vmatprep.subr.mxu0 0.0
        %2509 = vmatpush2.msra.mxu0 0.0
        %2510 = vmatprep.subr.mxu0 0.0
        %2511 = vmatpush2.msra.mxu0 0.0
        %2512 = vmatprep.subr.mxu0 0.0
        %2513 = vmatpush2.msra.mxu0 0.0
        %2514 = vmatprep.subr.mxu0 0.0
        %2515 = vmatpush2.msra.mxu0 0.0
        %2516 = vmatprep.subr.mxu0 0.0
        %2517 = vmatpush2.msra.mxu0 0.0
        %2518 = vmatprep.subr.mxu0 0.0
        %2519 = vmatpush2.msra.mxu0 0.0
        %2520 = vmatprep.mubr.f32.mxu0 0.0
        %2521 = vmatmul.mubr.f32.gmra.mxu0 %v2454
        %v2522 = vpop.f32.mrf.mxu0
        %v2523 = vadd.f32 %v1005, %v2522
        %v2524 = vpop.f32.mrf.mxu0
        %2525 = vdwg.mxu0
        %v2526 = vld [vmem:[%s562] sm:$0xff]
        %v2527 = vmul.f32 %v587, %v2523
        %v2528 = vadd.f32 %v2526, %v2527
        %2529 = vst.msk [vmem:[%s567] sm:$0xff] %vm1085, %v2528
        %s2530 = scalar_lea.vmem [#allocation2], 32
        %v2531 = vld [vmem:[%s2530] sm:$0xff]
        %s2532 = scalar_lea.vmem [#allocation4], 32
        %v2533 = vld [vmem:[%s2532] sm:$0xff]
        %v2536 = vsel %vm591, %v2531, 0
        %2538 = vmatprep.subr.mxu0 0.0
        %2539 = vmatpush1.msra.mxu0 0.0
        %2540 = vmatprep.subr.mxu0 0.0
        %2541 = vmatpush1.msra.mxu0 0.0
        %2542 = vmatprep.subr.mxu0 0.0
        %2543 = vmatpush1.msra.mxu0 0.0
        %2544 = vmatprep.subr.mxu0 0.0
        %2545 = vmatpush1.msra.mxu0 0.0
        %2546 = vmatprep.subr.mxu0 0.0
        %2547 = vmatpush1.msra.mxu0 0.0
        %2548 = vmatprep.subr.mxu0 0.0
        %2549 = vmatpush1.msra.mxu0 0.0
        %2550 = vmatprep.subr.mxu0 0.0
        %2551 = vmatpush1.msra.mxu0 0.0
        %2552 = vmatprep.subr.mxu0 0.0
        %2553 = vmatpush1.msra.mxu0 0.0
        %2554 = vmatprep.subr.mxu0 0.0
        %2555 = vmatpush1.msra.mxu0 0.0
        %2556 = vmatprep.subr.mxu0 0.0
        %2557 = vmatpush1.msra.mxu0 0.0
        %2558 = vmatprep.subr.mxu0 0.0
        %2559 = vmatpush1.msra.mxu0 0.0
        %2560 = vmatprep.subr.mxu0 0.0
        %2561 = vmatpush1.msra.mxu0 0.0
        %2562 = vmatprep.subr.mxu0 0.0
        %2563 = vmatpush1.msra.mxu0 0.0
        %2564 = vmatprep.subr.mxu0 0.0
        %2565 = vmatpush1.msra.mxu0 0.0
        %2566 = vmatprep.subr.mxu0 0.0
        %2567 = vmatpush1.msra.mxu0 0.0
        %2568 = vmatprep.subr.mxu0 0.0
        %2569 = vmatpush1.msra.mxu0 %v2453
        %2570 = vmatprep.subr.mxu0 0.0
        %2571 = vmatpush2.msra.mxu0 0.0
        %2572 = vmatprep.subr.mxu0 0.0
        %2573 = vmatpush2.msra.mxu0 0.0
        %2574 = vmatprep.subr.mxu0 0.0
        %2575 = vmatpush2.msra.mxu0 0.0
        %2576 = vmatprep.subr.mxu0 0.0
        %2577 = vmatpush2.msra.mxu0 0.0
        %2578 = vmatprep.subr.mxu0 0.0
        %2579 = vmatpush2.msra.mxu0 0.0
        %2580 = vmatprep.subr.mxu0 0.0
        %2581 = vmatpush2.msra.mxu0 0.0
        %2582 = vmatprep.subr.mxu0 0.0
        %2583 = vmatpush2.msra.mxu0 0.0
        %2584 = vmatprep.subr.mxu0 0.0
        %2585 = vmatpush2.msra.mxu0 0.0
        %2586 = vmatprep.subr.mxu0 0.0
        %2587 = vmatpush2.msra.mxu0 0.0
        %2588 = vmatprep.subr.mxu0 0.0
        %2589 = vmatpush2.msra.mxu0 0.0
        %2590 = vmatprep.subr.mxu0 0.0
        %2591 = vmatpush2.msra.mxu0 0.0
        %2592 = vmatprep.subr.mxu0 0.0
        %2593 = vmatpush2.msra.mxu0 0.0
        %2594 = vmatprep.subr.mxu0 0.0
        %2595 = vmatpush2.msra.mxu0 0.0
        %2596 = vmatprep.subr.mxu0 0.0
        %2597 = vmatpush2.msra.mxu0 0.0
        %2598 = vmatprep.subr.mxu0 0.0
        %2599 = vmatpush2.msra.mxu0 0.0
        %2600 = vmatprep.subr.mxu0 0.0
        %2601 = vmatpush2.msra.mxu0 0.0
        %2602 = vmatprep.mubr.f32.mxu0 0.0
        %2603 = vmatmul.mubr.f32.gmra.mxu0 %v2536
        %v2604 = vpop.f32.mrf.mxu0
        %v2605 = vadd.f32 0.0, %v2604
        %v2606 = vpop.f32.mrf.mxu0
        %2607 = vdwg.mxu0
        %v2609 = vsel %vm591, %v2533, 0
        %2611 = vmatprep.subr.mxu0 0.0
        %2612 = vmatpush1.msra.mxu0 0.0
        %2613 = vmatprep.subr.mxu0 0.0
        %2614 = vmatpush1.msra.mxu0 0.0
        %2615 = vmatprep.subr.mxu0 0.0
        %2616 = vmatpush1.msra.mxu0 0.0
        %2617 = vmatprep.subr.mxu0 0.0
        %2618 = vmatpush1.msra.mxu0 0.0
        %2619 = vmatprep.subr.mxu0 0.0
        %2620 = vmatpush1.msra.mxu0 0.0
        %2621 = vmatprep.subr.mxu0 0.0
        %2622 = vmatpush1.msra.mxu0 0.0
        %2623 = vmatprep.subr.mxu0 0.0
        %2624 = vmatpush1.msra.mxu0 0.0
        %2625 = vmatprep.subr.mxu0 0.0
        %2626 = vmatpush1.msra.mxu0 0.0
        %2627 = vmatprep.subr.mxu0 0.0
        %2628 = vmatpush1.msra.mxu0 0.0
        %2629 = vmatprep.subr.mxu0 0.0
        %2630 = vmatpush1.msra.mxu0 0.0
        %2631 = vmatprep.subr.mxu0 0.0
        %2632 = vmatpush1.msra.mxu0 0.0
        %2633 = vmatprep.subr.mxu0 0.0
        %2634 = vmatpush1.msra.mxu0 0.0
        %2635 = vmatprep.subr.mxu0 0.0
        %2636 = vmatpush1.msra.mxu0 0.0
        %2637 = vmatprep.subr.mxu0 0.0
        %2638 = vmatpush1.msra.mxu0 0.0
        %2639 = vmatprep.subr.mxu0 0.0
        %2640 = vmatpush1.msra.mxu0 0.0
        %2641 = vmatprep.subr.mxu0 0.0
        %2642 = vmatpush1.msra.mxu0 %v2453
        %2643 = vmatprep.subr.mxu0 0.0
        %2644 = vmatpush2.msra.mxu0 0.0
        %2645 = vmatprep.subr.mxu0 0.0
        %2646 = vmatpush2.msra.mxu0 0.0
        %2647 = vmatprep.subr.mxu0 0.0
        %2648 = vmatpush2.msra.mxu0 0.0
        %2649 = vmatprep.subr.mxu0 0.0
        %2650 = vmatpush2.msra.mxu0 0.0
        %2651 = vmatprep.subr.mxu0 0.0
        %2652 = vmatpush2.msra.mxu0 0.0
        %2653 = vmatprep.subr.mxu0 0.0
        %2654 = vmatpush2.msra.mxu0 0.0
        %2655 = vmatprep.subr.mxu0 0.0
        %2656 = vmatpush2.msra.mxu0 0.0
        %2657 = vmatprep.subr.mxu0 0.0
        %2658 = vmatpush2.msra.mxu0 0.0
        %2659 = vmatprep.subr.mxu0 0.0
        %2660 = vmatpush2.msra.mxu0 0.0
        %2661 = vmatprep.subr.mxu0 0.0
        %2662 = vmatpush2.msra.mxu0 0.0
        %2663 = vmatprep.subr.mxu0 0.0
        %2664 = vmatpush2.msra.mxu0 0.0
        %2665 = vmatprep.subr.mxu0 0.0
        %2666 = vmatpush2.msra.mxu0 0.0
        %2667 = vmatprep.subr.mxu0 0.0
        %2668 = vmatpush2.msra.mxu0 0.0
        %2669 = vmatprep.subr.mxu0 0.0
        %2670 = vmatpush2.msra.mxu0 0.0
        %2671 = vmatprep.subr.mxu0 0.0
        %2672 = vmatpush2.msra.mxu0 0.0
        %2673 = vmatprep.subr.mxu0 0.0
        %2674 = vmatpush2.msra.mxu0 0.0
        %2675 = vmatprep.mubr.f32.mxu0 0.0
        %2676 = vmatmul.mubr.f32.gmra.mxu0 %v2609
        %v2677 = vpop.f32.mrf.mxu0
        %v2678 = vadd.f32 0.0, %v2677
        %v2679 = vpop.f32.mrf.mxu0
        %2680 = vdwg.mxu0
        %v2682 = vsel %vm738, %v2678, 0
        %2684 = vmatprep.subr.mxu0 0.0
        %2685 = vmatpush1.msra.mxu0 0.0
        %2686 = vmatprep.subr.mxu0 0.0
        %2687 = vmatpush1.msra.mxu0 0.0
        %2688 = vmatprep.subr.mxu0 0.0
        %2689 = vmatpush1.msra.mxu0 0.0
        %2690 = vmatprep.subr.mxu0 0.0
        %2691 = vmatpush1.msra.mxu0 0.0
        %2692 = vmatprep.subr.mxu0 0.0
        %2693 = vmatpush1.msra.mxu0 0.0
        %2694 = vmatprep.subr.mxu0 0.0
        %2695 = vmatpush1.msra.mxu0 0.0
        %2696 = vmatprep.subr.mxu0 0.0
        %2697 = vmatpush1.msra.mxu0 0.0
        %2698 = vmatprep.subr.mxu0 0.0
        %2699 = vmatpush1.msra.mxu0 0.0
        %2700 = vmatprep.subr.mxu0 0.0
        %2701 = vmatpush1.msra.mxu0 0.0
        %2702 = vmatprep.subr.mxu0 0.0
        %2703 = vmatpush1.msra.mxu0 0.0
        %2704 = vmatprep.subr.mxu0 0.0
        %2705 = vmatpush1.msra.mxu0 0.0
        %2706 = vmatprep.subr.mxu0 0.0
        %2707 = vmatpush1.msra.mxu0 0.0
        %2708 = vmatprep.subr.mxu0 0.0
        %2709 = vmatpush1.msra.mxu0 %v575
        %2710 = vmatprep.subr.mxu0 0.0
        %2711 = vmatpush1.msra.mxu0 %v574
        %2712 = vmatprep.subr.mxu0 0.0
        %2713 = vmatpush1.msra.mxu0 %v573
        %2714 = vmatprep.subr.mxu0 0.0
        %2715 = vmatpush1.msra.mxu0 %v572
        %2716 = vmatprep.subr.mxu0 0.0
        %2717 = vmatpush2.msra.mxu0 0.0
        %2718 = vmatprep.subr.mxu0 0.0
        %2719 = vmatpush2.msra.mxu0 0.0
        %2720 = vmatprep.subr.mxu0 0.0
        %2721 = vmatpush2.msra.mxu0 0.0
        %2722 = vmatprep.subr.mxu0 0.0
        %2723 = vmatpush2.msra.mxu0 0.0
        %2724 = vmatprep.subr.mxu0 0.0
        %2725 = vmatpush2.msra.mxu0 0.0
        %2726 = vmatprep.subr.mxu0 0.0
        %2727 = vmatpush2.msra.mxu0 0.0
        %2728 = vmatprep.subr.mxu0 0.0
        %2729 = vmatpush2.msra.mxu0 0.0
        %2730 = vmatprep.subr.mxu0 0.0
        %2731 = vmatpush2.msra.mxu0 0.0
        %2732 = vmatprep.subr.mxu0 0.0
        %2733 = vmatpush2.msra.mxu0 0.0
        %2734 = vmatprep.subr.mxu0 0.0
        %2735 = vmatpush2.msra.mxu0 0.0
        %2736 = vmatprep.subr.mxu0 0.0
        %2737 = vmatpush2.msra.mxu0 0.0
        %2738 = vmatprep.subr.mxu0 0.0
        %2739 = vmatpush2.msra.mxu0 0.0
        %2740 = vmatprep.subr.mxu0 0.0
        %2741 = vmatpush2.msra.mxu0 0.0
        %2742 = vmatprep.subr.mxu0 0.0
        %2743 = vmatpush2.msra.mxu0 0.0
        %2744 = vmatprep.subr.mxu0 0.0
        %2745 = vmatpush2.msra.mxu0 0.0
        %2746 = vmatprep.subr.mxu0 0.0
        %2747 = vmatpush2.msra.mxu0 0.0
        %2748 = vmatprep.mubr.f32.mxu0 0.0
        %2749 = vmatmul.mubr.f32.gmra.mxu0 %v2682
        %v2750 = vpop.f32.mrf.mxu0
        %v2751 = vadd.f32 0.0, %v2750
        %v2752 = vpop.f32.mrf.mxu0
        %2753 = vdwg.mxu0
        %v2755 = vsel %vm738, %v2605, 0
        %2757 = vmatprep.subr.mxu0 0.0
        %2758 = vmatpush1.msra.mxu0 0.0
        %2759 = vmatprep.subr.mxu0 0.0
        %2760 = vmatpush1.msra.mxu0 0.0
        %2761 = vmatprep.subr.mxu0 0.0
        %2762 = vmatpush1.msra.mxu0 0.0
        %2763 = vmatprep.subr.mxu0 0.0
        %2764 = vmatpush1.msra.mxu0 0.0
        %2765 = vmatprep.subr.mxu0 0.0
        %2766 = vmatpush1.msra.mxu0 0.0
        %2767 = vmatprep.subr.mxu0 0.0
        %2768 = vmatpush1.msra.mxu0 0.0
        %2769 = vmatprep.subr.mxu0 0.0
        %2770 = vmatpush1.msra.mxu0 0.0
        %2771 = vmatprep.subr.mxu0 0.0
        %2772 = vmatpush1.msra.mxu0 0.0
        %2773 = vmatprep.subr.mxu0 0.0
        %2774 = vmatpush1.msra.mxu0 0.0
        %2775 = vmatprep.subr.mxu0 0.0
        %2776 = vmatpush1.msra.mxu0 0.0
        %2777 = vmatprep.subr.mxu0 0.0
        %2778 = vmatpush1.msra.mxu0 0.0
        %2779 = vmatprep.subr.mxu0 0.0
        %2780 = vmatpush1.msra.mxu0 0.0
        %2781 = vmatprep.subr.mxu0 0.0
        %2782 = vmatpush1.msra.mxu0 %v571
        %2783 = vmatprep.subr.mxu0 0.0
        %2784 = vmatpush1.msra.mxu0 %v570
        %2785 = vmatprep.subr.mxu0 0.0
        %2786 = vmatpush1.msra.mxu0 %v569
        %2787 = vmatprep.subr.mxu0 0.0
        %2788 = vmatpush1.msra.mxu0 %v568
        %2789 = vmatprep.subr.mxu0 0.0
        %2790 = vmatpush2.msra.mxu0 0.0
        %2791 = vmatprep.subr.mxu0 0.0
        %2792 = vmatpush2.msra.mxu0 0.0
        %2793 = vmatprep.subr.mxu0 0.0
        %2794 = vmatpush2.msra.mxu0 0.0
        %2795 = vmatprep.subr.mxu0 0.0
        %2796 = vmatpush2.msra.mxu0 0.0
        %2797 = vmatprep.subr.mxu0 0.0
        %2798 = vmatpush2.msra.mxu0 0.0
        %2799 = vmatprep.subr.mxu0 0.0
        %2800 = vmatpush2.msra.mxu0 0.0
        %2801 = vmatprep.subr.mxu0 0.0
        %2802 = vmatpush2.msra.mxu0 0.0
        %2803 = vmatprep.subr.mxu0 0.0
        %2804 = vmatpush2.msra.mxu0 0.0
        %2805 = vmatprep.subr.mxu0 0.0
        %2806 = vmatpush2.msra.mxu0 0.0
        %2807 = vmatprep.subr.mxu0 0.0
        %2808 = vmatpush2.msra.mxu0 0.0
        %2809 = vmatprep.subr.mxu0 0.0
        %2810 = vmatpush2.msra.mxu0 0.0
        %2811 = vmatprep.subr.mxu0 0.0
        %2812 = vmatpush2.msra.mxu0 0.0
        %2813 = vmatprep.subr.mxu0 0.0
        %2814 = vmatpush2.msra.mxu0 0.0
        %2815 = vmatprep.subr.mxu0 0.0
        %2816 = vmatpush2.msra.mxu0 0.0
        %2817 = vmatprep.subr.mxu0 0.0
        %2818 = vmatpush2.msra.mxu0 0.0
        %2819 = vmatprep.subr.mxu0 0.0
        %2820 = vmatpush2.msra.mxu0 0.0
        %2821 = vmatprep.mubr.f32.mxu0 0.0
        %2822 = vmatmul.mubr.f32.gmra.mxu0 %v2755
        %v2823 = vpop.f32.mrf.mxu0
        %v2824 = vadd.f32 %v2751, %v2823
        %v2825 = vpop.f32.mrf.mxu0
        %2826 = vdwg.mxu0
        %v2827 = vadd.f32 %v2824, %v889
        %v2829 = vsel %vm738, %v2827, 0
        %2831 = vmatprep.subr.mxu0 0.0
        %2832 = vmatpush1.msra.mxu0 0.0
        %2833 = vmatprep.subr.mxu0 0.0
        %2834 = vmatpush1.msra.mxu0 0.0
        %2835 = vmatprep.subr.mxu0 0.0
        %2836 = vmatpush1.msra.mxu0 0.0
        %2837 = vmatprep.subr.mxu0 0.0
        %2838 = vmatpush1.msra.mxu0 0.0
        %2839 = vmatprep.subr.mxu0 0.0
        %2840 = vmatpush1.msra.mxu0 0.0
        %2841 = vmatprep.subr.mxu0 0.0
        %2842 = vmatpush1.msra.mxu0 0.0
        %2843 = vmatprep.subr.mxu0 0.0
        %2844 = vmatpush1.msra.mxu0 0.0
        %2845 = vmatprep.subr.mxu0 0.0
        %2846 = vmatpush1.msra.mxu0 0.0
        %2847 = vmatprep.subr.mxu0 0.0
        %2848 = vmatpush1.msra.mxu0 0.0
        %2849 = vmatprep.subr.mxu0 0.0
        %2850 = vmatpush1.msra.mxu0 0.0
        %2851 = vmatprep.subr.mxu0 0.0
        %2852 = vmatpush1.msra.mxu0 0.0
        %2853 = vmatprep.subr.mxu0 0.0
        %2854 = vmatpush1.msra.mxu0 0.0
        %2855 = vmatprep.subr.mxu0 0.0
        %2856 = vmatpush1.msra.mxu0 %v580
        %2857 = vmatprep.subr.mxu0 0.0
        %2858 = vmatpush1.msra.mxu0 %v579
        %2859 = vmatprep.subr.mxu0 0.0
        %2860 = vmatpush1.msra.mxu0 %v578
        %2861 = vmatprep.subr.mxu0 0.0
        %2862 = vmatpush1.msra.mxu0 %v577
        %2863 = vmatprep.subr.mxu0 0.0
        %2864 = vmatpush2.msra.mxu0 0.0
        %2865 = vmatprep.subr.mxu0 0.0
        %2866 = vmatpush2.msra.mxu0 0.0
        %2867 = vmatprep.subr.mxu0 0.0
        %2868 = vmatpush2.msra.mxu0 0.0
        %2869 = vmatprep.subr.mxu0 0.0
        %2870 = vmatpush2.msra.mxu0 0.0
        %2871 = vmatprep.subr.mxu0 0.0
        %2872 = vmatpush2.msra.mxu0 0.0
        %2873 = vmatprep.subr.mxu0 0.0
        %2874 = vmatpush2.msra.mxu0 0.0
        %2875 = vmatprep.subr.mxu0 0.0
        %2876 = vmatpush2.msra.mxu0 0.0
        %2877 = vmatprep.subr.mxu0 0.0
        %2878 = vmatpush2.msra.mxu0 0.0
        %2879 = vmatprep.subr.mxu0 0.0
        %2880 = vmatpush2.msra.mxu0 0.0
        %2881 = vmatprep.subr.mxu0 0.0
        %2882 = vmatpush2.msra.mxu0 0.0
        %2883 = vmatprep.subr.mxu0 0.0
        %2884 = vmatpush2.msra.mxu0 0.0
        %2885 = vmatprep.subr.mxu0 0.0
        %2886 = vmatpush2.msra.mxu0 0.0
        %2887 = vmatprep.subr.mxu0 0.0
        %2888 = vmatpush2.msra.mxu0 0.0
        %2889 = vmatprep.subr.mxu0 0.0
        %2890 = vmatpush2.msra.mxu0 0.0
        %2891 = vmatprep.subr.mxu0 0.0
        %2892 = vmatpush2.msra.mxu0 0.0
        %2893 = vmatprep.subr.mxu0 0.0
        %2894 = vmatpush2.msra.mxu0 0.0
        %2895 = vmatprep.mubr.f32.mxu0 0.0
        %2896 = vmatmul.mubr.f32.gmra.mxu0 %v2829
        %v2897 = vpop.f32.mrf.mxu0
        %v2898 = vadd.f32 %v896, %v2897
        %v2899 = vpop.f32.mrf.mxu0
        %2900 = vdwg.mxu0
        %s2901 = scalar_lea.vmem %s557, 32
        %v2902 = vld [vmem:[%s2901] sm:$0xff]
        %v2903 = vadd.f32 %v2902, %v2898
        %v2904 = vxor.u32 %v2903, 2147483648
        %v2905 = vmul.f32 %v2904, 1.442695
        %v2906 = vpow.pop %v2905
        %v2907 = vadd.f32 %v2906, 1.0
        %v2908 = vrcp.pop %v2907
        %v2909 = vmul.f32 1.0, %v2908
        %2911 = vrot.lane.b32.xlu0 %v2898, 64
        %v2912 = vpop.permute.xlu0 %2911
        %v2914 = vmul.f32 %v2909, %v2912
        %2916 = vrot.lane.b32.xlu0 %v2914, 64
        %v2917 = vpop.permute.xlu0 %2916
        %v2919 = vadd.f32 %v2902, %v2917
        %v2920 = vtanh.pop %v2919
        %v2921 = vsub.f32 1.0, %v2909
        %2923 = vrot.lane.b32.xlu0 %v2920, 96
        %v2924 = vpop.permute.xlu0 %2923
        %v2926 = vmul.f32 %v2921, %v2924
        %2927 = vrot.lane.b32.xlu0 %v2827, 32
        %v2928 = vpop.permute.xlu0 %2927
        %v2930 = vmul.f32 %v2909, %v2928
        %v2931 = vadd.f32 %v2926, %v2930
        %2933 = vrot.lane.b32.xlu0 %v2931, 96
        %v2934 = vpop.permute.xlu0 %2933
        %v2935 = vsel %vm738, %v2934, 0
        %2937 = vmatprep.subr.mxu0 0.0
        %2938 = vmatpush1.msra.mxu0 0.0
        %2939 = vmatprep.subr.mxu0 0.0
        %2940 = vmatpush1.msra.mxu0 0.0
        %2941 = vmatprep.subr.mxu0 0.0
        %2942 = vmatpush1.msra.mxu0 0.0
        %2943 = vmatprep.subr.mxu0 0.0
        %2944 = vmatpush1.msra.mxu0 0.0
        %2945 = vmatprep.subr.mxu0 0.0
        %2946 = vmatpush1.msra.mxu0 0.0
        %2947 = vmatprep.subr.mxu0 0.0
        %2948 = vmatpush1.msra.mxu0 0.0
        %2949 = vmatprep.subr.mxu0 0.0
        %2950 = vmatpush1.msra.mxu0 0.0
        %2951 = vmatprep.subr.mxu0 0.0
        %2952 = vmatpush1.msra.mxu0 0.0
        %2953 = vmatprep.subr.mxu0 0.0
        %2954 = vmatpush1.msra.mxu0 0.0
        %2955 = vmatprep.subr.mxu0 0.0
        %2956 = vmatpush1.msra.mxu0 0.0
        %2957 = vmatprep.subr.mxu0 0.0
        %2958 = vmatpush1.msra.mxu0 0.0
        %2959 = vmatprep.subr.mxu0 0.0
        %2960 = vmatpush1.msra.mxu0 0.0
        %2961 = vmatprep.subr.mxu0 0.0
        %2962 = vmatpush1.msra.mxu0 %v585
        %2963 = vmatprep.subr.mxu0 0.0
        %2964 = vmatpush1.msra.mxu0 %v584
        %2965 = vmatprep.subr.mxu0 0.0
        %2966 = vmatpush1.msra.mxu0 %v583
        %2967 = vmatprep.subr.mxu0 0.0
        %2968 = vmatpush1.msra.mxu0 %v582
        %2969 = vmatprep.subr.mxu0 0.0
        %2970 = vmatpush2.msra.mxu0 0.0
        %2971 = vmatprep.subr.mxu0 0.0
        %2972 = vmatpush2.msra.mxu0 0.0
        %2973 = vmatprep.subr.mxu0 0.0
        %2974 = vmatpush2.msra.mxu0 0.0
        %2975 = vmatprep.subr.mxu0 0.0
        %2976 = vmatpush2.msra.mxu0 0.0
        %2977 = vmatprep.subr.mxu0 0.0
        %2978 = vmatpush2.msra.mxu0 0.0
        %2979 = vmatprep.subr.mxu0 0.0
        %2980 = vmatpush2.msra.mxu0 0.0
        %2981 = vmatprep.subr.mxu0 0.0
        %2982 = vmatpush2.msra.mxu0 0.0
        %2983 = vmatprep.subr.mxu0 0.0
        %2984 = vmatpush2.msra.mxu0 0.0
        %2985 = vmatprep.subr.mxu0 0.0
        %2986 = vmatpush2.msra.mxu0 0.0
        %2987 = vmatprep.subr.mxu0 0.0
        %2988 = vmatpush2.msra.mxu0 0.0
        %2989 = vmatprep.subr.mxu0 0.0
        %2990 = vmatpush2.msra.mxu0 0.0
        %2991 = vmatprep.subr.mxu0 0.0
        %2992 = vmatpush2.msra.mxu0 0.0
        %2993 = vmatprep.subr.mxu0 0.0
        %2994 = vmatpush2.msra.mxu0 0.0
        %2995 = vmatprep.subr.mxu0 0.0
        %2996 = vmatpush2.msra.mxu0 0.0
        %2997 = vmatprep.subr.mxu0 0.0
        %2998 = vmatpush2.msra.mxu0 0.0
        %2999 = vmatprep.subr.mxu0 0.0
        %3000 = vmatpush2.msra.mxu0 0.0
        %3001 = vmatprep.mubr.f32.mxu0 0.0
        %3002 = vmatmul.mubr.f32.gmra.mxu0 %v2935
        %v3003 = vpop.f32.mrf.mxu0
        %v3004 = vadd.f32 %v1005, %v3003
        %v3005 = vpop.f32.mrf.mxu0
        %3006 = vdwg.mxu0
        %v3007 = vld [vmem:[%s562] sm:$0xff]
        %v3008 = vmul.f32 %v587, %v3004
        %v3009 = vadd.f32 %v3007, %v3008
        %3010 = vst.msk [vmem:[%s567] sm:$0xff] %vm1085, %v3009
        %s3011 = scalar_lea.vmem [#allocation2], 40
        %v3012 = vld [vmem:[%s3011] sm:$0xff]
        %s3013 = scalar_lea.vmem [#allocation4], 40
        %v3014 = vld [vmem:[%s3013] sm:$0xff]
        %v3017 = vsel %vm591, %v3012, 0
        %3019 = vmatprep.subr.mxu0 0.0
        %3020 = vmatpush1.msra.mxu0 0.0
        %3021 = vmatprep.subr.mxu0 0.0
        %3022 = vmatpush1.msra.mxu0 0.0
        %3023 = vmatprep.subr.mxu0 0.0
        %3024 = vmatpush1.msra.mxu0 0.0
        %3025 = vmatprep.subr.mxu0 0.0
        %3026 = vmatpush1.msra.mxu0 0.0
        %3027 = vmatprep.subr.mxu0 0.0
        %3028 = vmatpush1.msra.mxu0 0.0
        %3029 = vmatprep.subr.mxu0 0.0
        %3030 = vmatpush1.msra.mxu0 0.0
        %3031 = vmatprep.subr.mxu0 0.0
        %3032 = vmatpush1.msra.mxu0 0.0
        %3033 = vmatprep.subr.mxu0 0.0
        %3034 = vmatpush1.msra.mxu0 0.0
        %3035 = vmatprep.subr.mxu0 0.0
        %3036 = vmatpush1.msra.mxu0 0.0
        %3037 = vmatprep.subr.mxu0 0.0
        %3038 = vmatpush1.msra.mxu0 0.0
        %3039 = vmatprep.subr.mxu0 0.0
        %3040 = vmatpush1.msra.mxu0 0.0
        %3041 = vmatprep.subr.mxu0 0.0
        %3042 = vmatpush1.msra.mxu0 0.0
        %3043 = vmatprep.subr.mxu0 0.0
        %3044 = vmatpush1.msra.mxu0 0.0
        %3045 = vmatprep.subr.mxu0 0.0
        %3046 = vmatpush1.msra.mxu0 0.0
        %3047 = vmatprep.subr.mxu0 0.0
        %3048 = vmatpush1.msra.mxu0 0.0
        %3049 = vmatprep.subr.mxu0 0.0
        %3050 = vmatpush1.msra.mxu0 %v2934
        %3051 = vmatprep.subr.mxu0 0.0
        %3052 = vmatpush2.msra.mxu0 0.0
        %3053 = vmatprep.subr.mxu0 0.0
        %3054 = vmatpush2.msra.mxu0 0.0
        %3055 = vmatprep.subr.mxu0 0.0
        %3056 = vmatpush2.msra.mxu0 0.0
        %3057 = vmatprep.subr.mxu0 0.0
        %3058 = vmatpush2.msra.mxu0 0.0
        %3059 = vmatprep.subr.mxu0 0.0
        %3060 = vmatpush2.msra.mxu0 0.0
        %3061 = vmatprep.subr.mxu0 0.0
        %3062 = vmatpush2.msra.mxu0 0.0
        %3063 = vmatprep.subr.mxu0 0.0
        %3064 = vmatpush2.msra.mxu0 0.0
        %3065 = vmatprep.subr.mxu0 0.0
        %3066 = vmatpush2.msra.mxu0 0.0
        %3067 = vmatprep.subr.mxu0 0.0
        %3068 = vmatpush2.msra.mxu0 0.0
        %3069 = vmatprep.subr.mxu0 0.0
        %3070 = vmatpush2.msra.mxu0 0.0
        %3071 = vmatprep.subr.mxu0 0.0
        %3072 = vmatpush2.msra.mxu0 0.0
        %3073 = vmatprep.subr.mxu0 0.0
        %3074 = vmatpush2.msra.mxu0 0.0
        %3075 = vmatprep.subr.mxu0 0.0
        %3076 = vmatpush2.msra.mxu0 0.0
        %3077 = vmatprep.subr.mxu0 0.0
        %3078 = vmatpush2.msra.mxu0 0.0
        %3079 = vmatprep.subr.mxu0 0.0
        %3080 = vmatpush2.msra.mxu0 0.0
        %3081 = vmatprep.subr.mxu0 0.0
        %3082 = vmatpush2.msra.mxu0 0.0
        %3083 = vmatprep.mubr.f32.mxu0 0.0
        %3084 = vmatmul.mubr.f32.gmra.mxu0 %v3017
        %v3085 = vpop.f32.mrf.mxu0
        %v3086 = vadd.f32 0.0, %v3085
        %v3087 = vpop.f32.mrf.mxu0
        %3088 = vdwg.mxu0
        %v3090 = vsel %vm591, %v3014, 0
        %3092 = vmatprep.subr.mxu0 0.0
        %3093 = vmatpush1.msra.mxu0 0.0
        %3094 = vmatprep.subr.mxu0 0.0
        %3095 = vmatpush1.msra.mxu0 0.0
        %3096 = vmatprep.subr.mxu0 0.0
        %3097 = vmatpush1.msra.mxu0 0.0
        %3098 = vmatprep.subr.mxu0 0.0
        %3099 = vmatpush1.msra.mxu0 0.0
        %3100 = vmatprep.subr.mxu0 0.0
        %3101 = vmatpush1.msra.mxu0 0.0
        %3102 = vmatprep.subr.mxu0 0.0
        %3103 = vmatpush1.msra.mxu0 0.0
        %3104 = vmatprep.subr.mxu0 0.0
        %3105 = vmatpush1.msra.mxu0 0.0
        %3106 = vmatprep.subr.mxu0 0.0
        %3107 = vmatpush1.msra.mxu0 0.0
        %3108 = vmatprep.subr.mxu0 0.0
        %3109 = vmatpush1.msra.mxu0 0.0
        %3110 = vmatprep.subr.mxu0 0.0
        %3111 = vmatpush1.msra.mxu0 0.0
        %3112 = vmatprep.subr.mxu0 0.0
        %3113 = vmatpush1.msra.mxu0 0.0
        %3114 = vmatprep.subr.mxu0 0.0
        %3115 = vmatpush1.msra.mxu0 0.0
        %3116 = vmatprep.subr.mxu0 0.0
        %3117 = vmatpush1.msra.mxu0 0.0
        %3118 = vmatprep.subr.mxu0 0.0
        %3119 = vmatpush1.msra.mxu0 0.0
        %3120 = vmatprep.subr.mxu0 0.0
        %3121 = vmatpush1.msra.mxu0 0.0
        %3122 = vmatprep.subr.mxu0 0.0
        %3123 = vmatpush1.msra.mxu0 %v2934
        %3124 = vmatprep.subr.mxu0 0.0
        %3125 = vmatpush2.msra.mxu0 0.0
        %3126 = vmatprep.subr.mxu0 0.0
        %3127 = vmatpush2.msra.mxu0 0.0
        %3128 = vmatprep.subr.mxu0 0.0
        %3129 = vmatpush2.msra.mxu0 0.0
        %3130 = vmatprep.subr.mxu0 0.0
        %3131 = vmatpush2.msra.mxu0 0.0
        %3132 = vmatprep.subr.mxu0 0.0
        %3133 = vmatpush2.msra.mxu0 0.0
        %3134 = vmatprep.subr.mxu0 0.0
        %3135 = vmatpush2.msra.mxu0 0.0
        %3136 = vmatprep.subr.mxu0 0.0
        %3137 = vmatpush2.msra.mxu0 0.0
        %3138 = vmatprep.subr.mxu0 0.0
        %3139 = vmatpush2.msra.mxu0 0.0
        %3140 = vmatprep.subr.mxu0 0.0
        %3141 = vmatpush2.msra.mxu0 0.0
        %3142 = vmatprep.subr.mxu0 0.0
        %3143 = vmatpush2.msra.mxu0 0.0
        %3144 = vmatprep.subr.mxu0 0.0
        %3145 = vmatpush2.msra.mxu0 0.0
        %3146 = vmatprep.subr.mxu0 0.0
        %3147 = vmatpush2.msra.mxu0 0.0
        %3148 = vmatprep.subr.mxu0 0.0
        %3149 = vmatpush2.msra.mxu0 0.0
        %3150 = vmatprep.subr.mxu0 0.0
        %3151 = vmatpush2.msra.mxu0 0.0
        %3152 = vmatprep.subr.mxu0 0.0
        %3153 = vmatpush2.msra.mxu0 0.0
        %3154 = vmatprep.subr.mxu0 0.0
        %3155 = vmatpush2.msra.mxu0 0.0
        %3156 = vmatprep.mubr.f32.mxu0 0.0
        %3157 = vmatmul.mubr.f32.gmra.mxu0 %v3090
        %v3158 = vpop.f32.mrf.mxu0
        %v3159 = vadd.f32 0.0, %v3158
        %v3160 = vpop.f32.mrf.mxu0
        %3161 = vdwg.mxu0
        %v3163 = vsel %vm738, %v3159, 0
        %3165 = vmatprep.subr.mxu0 0.0
        %3166 = vmatpush1.msra.mxu0 0.0
        %3167 = vmatprep.subr.mxu0 0.0
        %3168 = vmatpush1.msra.mxu0 0.0
        %3169 = vmatprep.subr.mxu0 0.0
        %3170 = vmatpush1.msra.mxu0 0.0
        %3171 = vmatprep.subr.mxu0 0.0
        %3172 = vmatpush1.msra.mxu0 0.0
        %3173 = vmatprep.subr.mxu0 0.0
        %3174 = vmatpush1.msra.mxu0 0.0
        %3175 = vmatprep.subr.mxu0 0.0
        %3176 = vmatpush1.msra.mxu0 0.0
        %3177 = vmatprep.subr.mxu0 0.0
        %3178 = vmatpush1.msra.mxu0 0.0
        %3179 = vmatprep.subr.mxu0 0.0
        %3180 = vmatpush1.msra.mxu0 0.0
        %3181 = vmatprep.subr.mxu0 0.0
        %3182 = vmatpush1.msra.mxu0 0.0
        %3183 = vmatprep.subr.mxu0 0.0
        %3184 = vmatpush1.msra.mxu0 0.0
        %3185 = vmatprep.subr.mxu0 0.0
        %3186 = vmatpush1.msra.mxu0 0.0
        %3187 = vmatprep.subr.mxu0 0.0
        %3188 = vmatpush1.msra.mxu0 0.0
        %3189 = vmatprep.subr.mxu0 0.0
        %3190 = vmatpush1.msra.mxu0 %v575
        %3191 = vmatprep.subr.mxu0 0.0
        %3192 = vmatpush1.msra.mxu0 %v574
        %3193 = vmatprep.subr.mxu0 0.0
        %3194 = vmatpush1.msra.mxu0 %v573
        %3195 = vmatprep.subr.mxu0 0.0
        %3196 = vmatpush1.msra.mxu0 %v572
        %3197 = vmatprep.subr.mxu0 0.0
        %3198 = vmatpush2.msra.mxu0 0.0
        %3199 = vmatprep.subr.mxu0 0.0
        %3200 = vmatpush2.msra.mxu0 0.0
        %3201 = vmatprep.subr.mxu0 0.0
        %3202 = vmatpush2.msra.mxu0 0.0
        %3203 = vmatprep.subr.mxu0 0.0
        %3204 = vmatpush2.msra.mxu0 0.0
        %3205 = vmatprep.subr.mxu0 0.0
        %3206 = vmatpush2.msra.mxu0 0.0
        %3207 = vmatprep.subr.mxu0 0.0
        %3208 = vmatpush2.msra.mxu0 0.0
        %3209 = vmatprep.subr.mxu0 0.0
        %3210 = vmatpush2.msra.mxu0 0.0
        %3211 = vmatprep.subr.mxu0 0.0
        %3212 = vmatpush2.msra.mxu0 0.0
        %3213 = vmatprep.subr.mxu0 0.0
        %3214 = vmatpush2.msra.mxu0 0.0
        %3215 = vmatprep.subr.mxu0 0.0
        %3216 = vmatpush2.msra.mxu0 0.0
        %3217 = vmatprep.subr.mxu0 0.0
        %3218 = vmatpush2.msra.mxu0 0.0
        %3219 = vmatprep.subr.mxu0 0.0
        %3220 = vmatpush2.msra.mxu0 0.0
        %3221 = vmatprep.subr.mxu0 0.0
        %3222 = vmatpush2.msra.mxu0 0.0
        %3223 = vmatprep.subr.mxu0 0.0
        %3224 = vmatpush2.msra.mxu0 0.0
        %3225 = vmatprep.subr.mxu0 0.0
        %3226 = vmatpush2.msra.mxu0 0.0
        %3227 = vmatprep.subr.mxu0 0.0
        %3228 = vmatpush2.msra.mxu0 0.0
        %3229 = vmatprep.mubr.f32.mxu0 0.0
        %3230 = vmatmul.mubr.f32.gmra.mxu0 %v3163
        %v3231 = vpop.f32.mrf.mxu0
        %v3232 = vadd.f32 0.0, %v3231
        %v3233 = vpop.f32.mrf.mxu0
        %3234 = vdwg.mxu0
        %v3236 = vsel %vm738, %v3086, 0
        %3238 = vmatprep.subr.mxu0 0.0
        %3239 = vmatpush1.msra.mxu0 0.0
        %3240 = vmatprep.subr.mxu0 0.0
        %3241 = vmatpush1.msra.mxu0 0.0
        %3242 = vmatprep.subr.mxu0 0.0
        %3243 = vmatpush1.msra.mxu0 0.0
        %3244 = vmatprep.subr.mxu0 0.0
        %3245 = vmatpush1.msra.mxu0 0.0
        %3246 = vmatprep.subr.mxu0 0.0
        %3247 = vmatpush1.msra.mxu0 0.0
        %3248 = vmatprep.subr.mxu0 0.0
        %3249 = vmatpush1.msra.mxu0 0.0
        %3250 = vmatprep.subr.mxu0 0.0
        %3251 = vmatpush1.msra.mxu0 0.0
        %3252 = vmatprep.subr.mxu0 0.0
        %3253 = vmatpush1.msra.mxu0 0.0
        %3254 = vmatprep.subr.mxu0 0.0
        %3255 = vmatpush1.msra.mxu0 0.0
        %3256 = vmatprep.subr.mxu0 0.0
        %3257 = vmatpush1.msra.mxu0 0.0
        %3258 = vmatprep.subr.mxu0 0.0
        %3259 = vmatpush1.msra.mxu0 0.0
        %3260 = vmatprep.subr.mxu0 0.0
        %3261 = vmatpush1.msra.mxu0 0.0
        %3262 = vmatprep.subr.mxu0 0.0
        %3263 = vmatpush1.msra.mxu0 %v571
        %3264 = vmatprep.subr.mxu0 0.0
        %3265 = vmatpush1.msra.mxu0 %v570
        %3266 = vmatprep.subr.mxu0 0.0
        %3267 = vmatpush1.msra.mxu0 %v569
        %3268 = vmatprep.subr.mxu0 0.0
        %3269 = vmatpush1.msra.mxu0 %v568
        %3270 = vmatprep.subr.mxu0 0.0
        %3271 = vmatpush2.msra.mxu0 0.0
        %3272 = vmatprep.subr.mxu0 0.0
        %3273 = vmatpush2.msra.mxu0 0.0
        %3274 = vmatprep.subr.mxu0 0.0
        %3275 = vmatpush2.msra.mxu0 0.0
        %3276 = vmatprep.subr.mxu0 0.0
        %3277 = vmatpush2.msra.mxu0 0.0
        %3278 = vmatprep.subr.mxu0 0.0
        %3279 = vmatpush2.msra.mxu0 0.0
        %3280 = vmatprep.subr.mxu0 0.0
        %3281 = vmatpush2.msra.mxu0 0.0
        %3282 = vmatprep.subr.mxu0 0.0
        %3283 = vmatpush2.msra.mxu0 0.0
        %3284 = vmatprep.subr.mxu0 0.0
        %3285 = vmatpush2.msra.mxu0 0.0
        %3286 = vmatprep.subr.mxu0 0.0
        %3287 = vmatpush2.msra.mxu0 0.0
        %3288 = vmatprep.subr.mxu0 0.0
        %3289 = vmatpush2.msra.mxu0 0.0
        %3290 = vmatprep.subr.mxu0 0.0
        %3291 = vmatpush2.msra.mxu0 0.0
        %3292 = vmatprep.subr.mxu0 0.0
        %3293 = vmatpush2.msra.mxu0 0.0
        %3294 = vmatprep.subr.mxu0 0.0
        %3295 = vmatpush2.msra.mxu0 0.0
        %3296 = vmatprep.subr.mxu0 0.0
        %3297 = vmatpush2.msra.mxu0 0.0
        %3298 = vmatprep.subr.mxu0 0.0
        %3299 = vmatpush2.msra.mxu0 0.0
        %3300 = vmatprep.subr.mxu0 0.0
        %3301 = vmatpush2.msra.mxu0 0.0
        %3302 = vmatprep.mubr.f32.mxu0 0.0
        %3303 = vmatmul.mubr.f32.gmra.mxu0 %v3236
        %v3304 = vpop.f32.mrf.mxu0
        %v3305 = vadd.f32 %v3232, %v3304
        %v3306 = vpop.f32.mrf.mxu0
        %3307 = vdwg.mxu0
        %v3308 = vadd.f32 %v3305, %v889
        %v3310 = vsel %vm738, %v3308, 0
        %3312 = vmatprep.subr.mxu0 0.0
        %3313 = vmatpush1.msra.mxu0 0.0
        %3314 = vmatprep.subr.mxu0 0.0
        %3315 = vmatpush1.msra.mxu0 0.0
        %3316 = vmatprep.subr.mxu0 0.0
        %3317 = vmatpush1.msra.mxu0 0.0
        %3318 = vmatprep.subr.mxu0 0.0
        %3319 = vmatpush1.msra.mxu0 0.0
        %3320 = vmatprep.subr.mxu0 0.0
        %3321 = vmatpush1.msra.mxu0 0.0
        %3322 = vmatprep.subr.mxu0 0.0
        %3323 = vmatpush1.msra.mxu0 0.0
        %3324 = vmatprep.subr.mxu0 0.0
        %3325 = vmatpush1.msra.mxu0 0.0
        %3326 = vmatprep.subr.mxu0 0.0
        %3327 = vmatpush1.msra.mxu0 0.0
        %3328 = vmatprep.subr.mxu0 0.0
        %3329 = vmatpush1.msra.mxu0 0.0
        %3330 = vmatprep.subr.mxu0 0.0
        %3331 = vmatpush1.msra.mxu0 0.0
        %3332 = vmatprep.subr.mxu0 0.0
        %3333 = vmatpush1.msra.mxu0 0.0
        %3334 = vmatprep.subr.mxu0 0.0
        %3335 = vmatpush1.msra.mxu0 0.0
        %3336 = vmatprep.subr.mxu0 0.0
        %3337 = vmatpush1.msra.mxu0 %v580
        %3338 = vmatprep.subr.mxu0 0.0
        %3339 = vmatpush1.msra.mxu0 %v579
        %3340 = vmatprep.subr.mxu0 0.0
        %3341 = vmatpush1.msra.mxu0 %v578
        %3342 = vmatprep.subr.mxu0 0.0
        %3343 = vmatpush1.msra.mxu0 %v577
        %3344 = vmatprep.subr.mxu0 0.0
        %3345 = vmatpush2.msra.mxu0 0.0
        %3346 = vmatprep.subr.mxu0 0.0
        %3347 = vmatpush2.msra.mxu0 0.0
        %3348 = vmatprep.subr.mxu0 0.0
        %3349 = vmatpush2.msra.mxu0 0.0
        %3350 = vmatprep.subr.mxu0 0.0
        %3351 = vmatpush2.msra.mxu0 0.0
        %3352 = vmatprep.subr.mxu0 0.0
        %3353 = vmatpush2.msra.mxu0 0.0
        %3354 = vmatprep.subr.mxu0 0.0
        %3355 = vmatpush2.msra.mxu0 0.0
        %3356 = vmatprep.subr.mxu0 0.0
        %3357 = vmatpush2.msra.mxu0 0.0
        %3358 = vmatprep.subr.mxu0 0.0
        %3359 = vmatpush2.msra.mxu0 0.0
        %3360 = vmatprep.subr.mxu0 0.0
        %3361 = vmatpush2.msra.mxu0 0.0
        %3362 = vmatprep.subr.mxu0 0.0
        %3363 = vmatpush2.msra.mxu0 0.0
        %3364 = vmatprep.subr.mxu0 0.0
        %3365 = vmatpush2.msra.mxu0 0.0
        %3366 = vmatprep.subr.mxu0 0.0
        %3367 = vmatpush2.msra.mxu0 0.0
        %3368 = vmatprep.subr.mxu0 0.0
        %3369 = vmatpush2.msra.mxu0 0.0
        %3370 = vmatprep.subr.mxu0 0.0
        %3371 = vmatpush2.msra.mxu0 0.0
        %3372 = vmatprep.subr.mxu0 0.0
        %3373 = vmatpush2.msra.mxu0 0.0
        %3374 = vmatprep.subr.mxu0 0.0
        %3375 = vmatpush2.msra.mxu0 0.0
        %3376 = vmatprep.mubr.f32.mxu0 0.0
        %3377 = vmatmul.mubr.f32.gmra.mxu0 %v3310
        %v3378 = vpop.f32.mrf.mxu0
        %v3379 = vadd.f32 %v896, %v3378
        %v3380 = vpop.f32.mrf.mxu0
        %3381 = vdwg.mxu0
        %s3382 = scalar_lea.vmem %s557, 40
        %v3383 = vld [vmem:[%s3382] sm:$0xff]
        %v3384 = vadd.f32 %v3383, %v3379
        %v3385 = vxor.u32 %v3384, 2147483648
        %v3386 = vmul.f32 %v3385, 1.442695
        %v3387 = vpow.pop %v3386
        %v3388 = vadd.f32 %v3387, 1.0
        %v3389 = vrcp.pop %v3388
        %v3390 = vmul.f32 1.0, %v3389
        %3392 = vrot.lane.b32.xlu0 %v3379, 64
        %v3393 = vpop.permute.xlu0 %3392
        %v3395 = vmul.f32 %v3390, %v3393
        %3397 = vrot.lane.b32.xlu0 %v3395, 64
        %v3398 = vpop.permute.xlu0 %3397
        %v3400 = vadd.f32 %v3383, %v3398
        %v3401 = vtanh.pop %v3400
        %v3402 = vsub.f32 1.0, %v3390
        %3404 = vrot.lane.b32.xlu0 %v3401, 96
        %v3405 = vpop.permute.xlu0 %3404
        %v3407 = vmul.f32 %v3402, %v3405
        %3408 = vrot.lane.b32.xlu0 %v3308, 32
        %v3409 = vpop.permute.xlu0 %3408
        %v3411 = vmul.f32 %v3390, %v3409
        %v3412 = vadd.f32 %v3407, %v3411
        %3414 = vrot.lane.b32.xlu0 %v3412, 96
        %v3415 = vpop.permute.xlu0 %3414
        %v3416 = vsel %vm738, %v3415, 0
        %3418 = vmatprep.subr.mxu0 0.0
        %3419 = vmatpush1.msra.mxu0 0.0
        %3420 = vmatprep.subr.mxu0 0.0
        %3421 = vmatpush1.msra.mxu0 0.0
        %3422 = vmatprep.subr.mxu0 0.0
        %3423 = vmatpush1.msra.mxu0 0.0
        %3424 = vmatprep.subr.mxu0 0.0
        %3425 = vmatpush1.msra.mxu0 0.0
        %3426 = vmatprep.subr.mxu0 0.0
        %3427 = vmatpush1.msra.mxu0 0.0
        %3428 = vmatprep.subr.mxu0 0.0
        %3429 = vmatpush1.msra.mxu0 0.0
        %3430 = vmatprep.subr.mxu0 0.0
        %3431 = vmatpush1.msra.mxu0 0.0
        %3432 = vmatprep.subr.mxu0 0.0
        %3433 = vmatpush1.msra.mxu0 0.0
        %3434 = vmatprep.subr.mxu0 0.0
        %3435 = vmatpush1.msra.mxu0 0.0
        %3436 = vmatprep.subr.mxu0 0.0
        %3437 = vmatpush1.msra.mxu0 0.0
        %3438 = vmatprep.subr.mxu0 0.0
        %3439 = vmatpush1.msra.mxu0 0.0
        %3440 = vmatprep.subr.mxu0 0.0
        %3441 = vmatpush1.msra.mxu0 0.0
        %3442 = vmatprep.subr.mxu0 0.0
        %3443 = vmatpush1.msra.mxu0 %v585
        %3444 = vmatprep.subr.mxu0 0.0
        %3445 = vmatpush1.msra.mxu0 %v584
        %3446 = vmatprep.subr.mxu0 0.0
        %3447 = vmatpush1.msra.mxu0 %v583
        %3448 = vmatprep.subr.mxu0 0.0
        %3449 = vmatpush1.msra.mxu0 %v582
        %3450 = vmatprep.subr.mxu0 0.0
        %3451 = vmatpush2.msra.mxu0 0.0
        %3452 = vmatprep.subr.mxu0 0.0
        %3453 = vmatpush2.msra.mxu0 0.0
        %3454 = vmatprep.subr.mxu0 0.0
        %3455 = vmatpush2.msra.mxu0 0.0
        %3456 = vmatprep.subr.mxu0 0.0
        %3457 = vmatpush2.msra.mxu0 0.0
        %3458 = vmatprep.subr.mxu0 0.0
        %3459 = vmatpush2.msra.mxu0 0.0
        %3460 = vmatprep.subr.mxu0 0.0
        %3461 = vmatpush2.msra.mxu0 0.0
        %3462 = vmatprep.subr.mxu0 0.0
        %3463 = vmatpush2.msra.mxu0 0.0
        %3464 = vmatprep.subr.mxu0 0.0
        %3465 = vmatpush2.msra.mxu0 0.0
        %3466 = vmatprep.subr.mxu0 0.0
        %3467 = vmatpush2.msra.mxu0 0.0
        %3468 = vmatprep.subr.mxu0 0.0
        %3469 = vmatpush2.msra.mxu0 0.0
        %3470 = vmatprep.subr.mxu0 0.0
        %3471 = vmatpush2.msra.mxu0 0.0
        %3472 = vmatprep.subr.mxu0 0.0
        %3473 = vmatpush2.msra.mxu0 0.0
        %3474 = vmatprep.subr.mxu0 0.0
        %3475 = vmatpush2.msra.mxu0 0.0
        %3476 = vmatprep.subr.mxu0 0.0
        %3477 = vmatpush2.msra.mxu0 0.0
        %3478 = vmatprep.subr.mxu0 0.0
        %3479 = vmatpush2.msra.mxu0 0.0
        %3480 = vmatprep.subr.mxu0 0.0
        %3481 = vmatpush2.msra.mxu0 0.0
        %3482 = vmatprep.mubr.f32.mxu0 0.0
        %3483 = vmatmul.mubr.f32.gmra.mxu0 %v3416
        %v3484 = vpop.f32.mrf.mxu0
        %v3485 = vadd.f32 %v1005, %v3484
        %v3486 = vpop.f32.mrf.mxu0
        %3487 = vdwg.mxu0
        %s3488 = scalar_lea.vmem %s562, 8
        %v3489 = vld [vmem:[%s3488] sm:$0xff]
        %v3490 = vmul.f32 %v587, %v3485
        %v3491 = vadd.f32 %v3489, %v3490
        %s3492 = scalar_lea.vmem %s567, 8
        %3493 = vst.msk [vmem:[%s3492] sm:$0xff] %vm1085, %v3491
        %s3494 = scalar_lea.vmem [#allocation2], 48
        %v3495 = vld [vmem:[%s3494] sm:$0xff]
        %s3496 = scalar_lea.vmem [#allocation4], 48
        %v3497 = vld [vmem:[%s3496] sm:$0xff]
        %v3500 = vsel %vm591, %v3495, 0
        %3502 = vmatprep.subr.mxu0 0.0
        %3503 = vmatpush1.msra.mxu0 0.0
        %3504 = vmatprep.subr.mxu0 0.0
        %3505 = vmatpush1.msra.mxu0 0.0
        %3506 = vmatprep.subr.mxu0 0.0
        %3507 = vmatpush1.msra.mxu0 0.0
        %3508 = vmatprep.subr.mxu0 0.0
        %3509 = vmatpush1.msra.mxu0 0.0
        %3510 = vmatprep.subr.mxu0 0.0
        %3511 = vmatpush1.msra.mxu0 0.0
        %3512 = vmatprep.subr.mxu0 0.0
        %3513 = vmatpush1.msra.mxu0 0.0
        %3514 = vmatprep.subr.mxu0 0.0
        %3515 = vmatpush1.msra.mxu0 0.0
        %3516 = vmatprep.subr.mxu0 0.0
        %3517 = vmatpush1.msra.mxu0 0.0
        %3518 = vmatprep.subr.mxu0 0.0
        %3519 = vmatpush1.msra.mxu0 0.0
        %3520 = vmatprep.subr.mxu0 0.0
        %3521 = vmatpush1.msra.mxu0 0.0
        %3522 = vmatprep.subr.mxu0 0.0
        %3523 = vmatpush1.msra.mxu0 0.0
        %3524 = vmatprep.subr.mxu0 0.0
        %3525 = vmatpush1.msra.mxu0 0.0
        %3526 = vmatprep.subr.mxu0 0.0
        %3527 = vmatpush1.msra.mxu0 0.0
        %3528 = vmatprep.subr.mxu0 0.0
        %3529 = vmatpush1.msra.mxu0 0.0
        %3530 = vmatprep.subr.mxu0 0.0
        %3531 = vmatpush1.msra.mxu0 0.0
        %3532 = vmatprep.subr.mxu0 0.0
        %3533 = vmatpush1.msra.mxu0 %v3415
        %3534 = vmatprep.subr.mxu0 0.0
        %3535 = vmatpush2.msra.mxu0 0.0
        %3536 = vmatprep.subr.mxu0 0.0
        %3537 = vmatpush2.msra.mxu0 0.0
        %3538 = vmatprep.subr.mxu0 0.0
        %3539 = vmatpush2.msra.mxu0 0.0
        %3540 = vmatprep.subr.mxu0 0.0
        %3541 = vmatpush2.msra.mxu0 0.0
        %3542 = vmatprep.subr.mxu0 0.0
        %3543 = vmatpush2.msra.mxu0 0.0
        %3544 = vmatprep.subr.mxu0 0.0
        %3545 = vmatpush2.msra.mxu0 0.0
        %3546 = vmatprep.subr.mxu0 0.0
        %3547 = vmatpush2.msra.mxu0 0.0
        %3548 = vmatprep.subr.mxu0 0.0
        %3549 = vmatpush2.msra.mxu0 0.0
        %3550 = vmatprep.subr.mxu0 0.0
        %3551 = vmatpush2.msra.mxu0 0.0
        %3552 = vmatprep.subr.mxu0 0.0
        %3553 = vmatpush2.msra.mxu0 0.0
        %3554 = vmatprep.subr.mxu0 0.0
        %3555 = vmatpush2.msra.mxu0 0.0
        %3556 = vmatprep.subr.mxu0 0.0
        %3557 = vmatpush2.msra.mxu0 0.0
        %3558 = vmatprep.subr.mxu0 0.0
        %3559 = vmatpush2.msra.mxu0 0.0
        %3560 = vmatprep.subr.mxu0 0.0
        %3561 = vmatpush2.msra.mxu0 0.0
        %3562 = vmatprep.subr.mxu0 0.0
        %3563 = vmatpush2.msra.mxu0 0.0
        %3564 = vmatprep.subr.mxu0 0.0
        %3565 = vmatpush2.msra.mxu0 0.0
        %3566 = vmatprep.mubr.f32.mxu0 0.0
        %3567 = vmatmul.mubr.f32.gmra.mxu0 %v3500
        %v3568 = vpop.f32.mrf.mxu0
        %v3569 = vadd.f32 0.0, %v3568
        %v3570 = vpop.f32.mrf.mxu0
        %3571 = vdwg.mxu0
        %v3573 = vsel %vm591, %v3497, 0
        %3575 = vmatprep.subr.mxu0 0.0
        %3576 = vmatpush1.msra.mxu0 0.0
        %3577 = vmatprep.subr.mxu0 0.0
        %3578 = vmatpush1.msra.mxu0 0.0
        %3579 = vmatprep.subr.mxu0 0.0
        %3580 = vmatpush1.msra.mxu0 0.0
        %3581 = vmatprep.subr.mxu0 0.0
        %3582 = vmatpush1.msra.mxu0 0.0
        %3583 = vmatprep.subr.mxu0 0.0
        %3584 = vmatpush1.msra.mxu0 0.0
        %3585 = vmatprep.subr.mxu0 0.0
        %3586 = vmatpush1.msra.mxu0 0.0
        %3587 = vmatprep.subr.mxu0 0.0
        %3588 = vmatpush1.msra.mxu0 0.0
        %3589 = vmatprep.subr.mxu0 0.0
        %3590 = vmatpush1.msra.mxu0 0.0
        %3591 = vmatprep.subr.mxu0 0.0
        %3592 = vmatpush1.msra.mxu0 0.0
        %3593 = vmatprep.subr.mxu0 0.0
        %3594 = vmatpush1.msra.mxu0 0.0
        %3595 = vmatprep.subr.mxu0 0.0
        %3596 = vmatpush1.msra.mxu0 0.0
        %3597 = vmatprep.subr.mxu0 0.0
        %3598 = vmatpush1.msra.mxu0 0.0
        %3599 = vmatprep.subr.mxu0 0.0
        %3600 = vmatpush1.msra.mxu0 0.0
        %3601 = vmatprep.subr.mxu0 0.0
        %3602 = vmatpush1.msra.mxu0 0.0
        %3603 = vmatprep.subr.mxu0 0.0
        %3604 = vmatpush1.msra.mxu0 0.0
        %3605 = vmatprep.subr.mxu0 0.0
        %3606 = vmatpush1.msra.mxu0 %v3415
        %3607 = vmatprep.subr.mxu0 0.0
        %3608 = vmatpush2.msra.mxu0 0.0
        %3609 = vmatprep.subr.mxu0 0.0
        %3610 = vmatpush2.msra.mxu0 0.0
        %3611 = vmatprep.subr.mxu0 0.0
        %3612 = vmatpush2.msra.mxu0 0.0
        %3613 = vmatprep.subr.mxu0 0.0
        %3614 = vmatpush2.msra.mxu0 0.0
        %3615 = vmatprep.subr.mxu0 0.0
        %3616 = vmatpush2.msra.mxu0 0.0
        %3617 = vmatprep.subr.mxu0 0.0
        %3618 = vmatpush2.msra.mxu0 0.0
        %3619 = vmatprep.subr.mxu0 0.0
        %3620 = vmatpush2.msra.mxu0 0.0
        %3621 = vmatprep.subr.mxu0 0.0
        %3622 = vmatpush2.msra.mxu0 0.0
        %3623 = vmatprep.subr.mxu0 0.0
        %3624 = vmatpush2.msra.mxu0 0.0
        %3625 = vmatprep.subr.mxu0 0.0
        %3626 = vmatpush2.msra.mxu0 0.0
        %3627 = vmatprep.subr.mxu0 0.0
        %3628 = vmatpush2.msra.mxu0 0.0
        %3629 = vmatprep.subr.mxu0 0.0
        %3630 = vmatpush2.msra.mxu0 0.0
        %3631 = vmatprep.subr.mxu0 0.0
        %3632 = vmatpush2.msra.mxu0 0.0
        %3633 = vmatprep.subr.mxu0 0.0
        %3634 = vmatpush2.msra.mxu0 0.0
        %3635 = vmatprep.subr.mxu0 0.0
        %3636 = vmatpush2.msra.mxu0 0.0
        %3637 = vmatprep.subr.mxu0 0.0
        %3638 = vmatpush2.msra.mxu0 0.0
        %3639 = vmatprep.mubr.f32.mxu0 0.0
        %3640 = vmatmul.mubr.f32.gmra.mxu0 %v3573
        %v3641 = vpop.f32.mrf.mxu0
        %v3642 = vadd.f32 0.0, %v3641
        %v3643 = vpop.f32.mrf.mxu0
        %3644 = vdwg.mxu0
        %v3646 = vsel %vm738, %v3642, 0
        %3648 = vmatprep.subr.mxu0 0.0
        %3649 = vmatpush1.msra.mxu0 0.0
        %3650 = vmatprep.subr.mxu0 0.0
        %3651 = vmatpush1.msra.mxu0 0.0
        %3652 = vmatprep.subr.mxu0 0.0
        %3653 = vmatpush1.msra.mxu0 0.0
        %3654 = vmatprep.subr.mxu0 0.0
        %3655 = vmatpush1.msra.mxu0 0.0
        %3656 = vmatprep.subr.mxu0 0.0
        %3657 = vmatpush1.msra.mxu0 0.0
        %3658 = vmatprep.subr.mxu0 0.0
        %3659 = vmatpush1.msra.mxu0 0.0
        %3660 = vmatprep.subr.mxu0 0.0
        %3661 = vmatpush1.msra.mxu0 0.0
        %3662 = vmatprep.subr.mxu0 0.0
        %3663 = vmatpush1.msra.mxu0 0.0
        %3664 = vmatprep.subr.mxu0 0.0
        %3665 = vmatpush1.msra.mxu0 0.0
        %3666 = vmatprep.subr.mxu0 0.0
        %3667 = vmatpush1.msra.mxu0 0.0
        %3668 = vmatprep.subr.mxu0 0.0
        %3669 = vmatpush1.msra.mxu0 0.0
        %3670 = vmatprep.subr.mxu0 0.0
        %3671 = vmatpush1.msra.mxu0 0.0
        %3672 = vmatprep.subr.mxu0 0.0
        %3673 = vmatpush1.msra.mxu0 %v575
        %3674 = vmatprep.subr.mxu0 0.0
        %3675 = vmatpush1.msra.mxu0 %v574
        %3676 = vmatprep.subr.mxu0 0.0
        %3677 = vmatpush1.msra.mxu0 %v573
        %3678 = vmatprep.subr.mxu0 0.0
        %3679 = vmatpush1.msra.mxu0 %v572
        %3680 = vmatprep.subr.mxu0 0.0
        %3681 = vmatpush2.msra.mxu0 0.0
        %3682 = vmatprep.subr.mxu0 0.0
        %3683 = vmatpush2.msra.mxu0 0.0
        %3684 = vmatprep.subr.mxu0 0.0
        %3685 = vmatpush2.msra.mxu0 0.0
        %3686 = vmatprep.subr.mxu0 0.0
        %3687 = vmatpush2.msra.mxu0 0.0
        %3688 = vmatprep.subr.mxu0 0.0
        %3689 = vmatpush2.msra.mxu0 0.0
        %3690 = vmatprep.subr.mxu0 0.0
        %3691 = vmatpush2.msra.mxu0 0.0
        %3692 = vmatprep.subr.mxu0 0.0
        %3693 = vmatpush2.msra.mxu0 0.0
        %3694 = vmatprep.subr.mxu0 0.0
        %3695 = vmatpush2.msra.mxu0 0.0
        %3696 = vmatprep.subr.mxu0 0.0
        %3697 = vmatpush2.msra.mxu0 0.0
        %3698 = vmatprep.subr.mxu0 0.0
        %3699 = vmatpush2.msra.mxu0 0.0
        %3700 = vmatprep.subr.mxu0 0.0
        %3701 = vmatpush2.msra.mxu0 0.0
        %3702 = vmatprep.subr.mxu0 0.0
        %3703 = vmatpush2.msra.mxu0 0.0
        %3704 = vmatprep.subr.mxu0 0.0
        %3705 = vmatpush2.msra.mxu0 0.0
        %3706 = vmatprep.subr.mxu0 0.0
        %3707 = vmatpush2.msra.mxu0 0.0
        %3708 = vmatprep.subr.mxu0 0.0
        %3709 = vmatpush2.msra.mxu0 0.0
        %3710 = vmatprep.subr.mxu0 0.0
        %3711 = vmatpush2.msra.mxu0 0.0
        %3712 = vmatprep.mubr.f32.mxu0 0.0
        %3713 = vmatmul.mubr.f32.gmra.mxu0 %v3646
        %v3714 = vpop.f32.mrf.mxu0
        %v3715 = vadd.f32 0.0, %v3714
        %v3716 = vpop.f32.mrf.mxu0
        %3717 = vdwg.mxu0
        %v3719 = vsel %vm738, %v3569, 0
        %3721 = vmatprep.subr.mxu0 0.0
        %3722 = vmatpush1.msra.mxu0 0.0
        %3723 = vmatprep.subr.mxu0 0.0
        %3724 = vmatpush1.msra.mxu0 0.0
        %3725 = vmatprep.subr.mxu0 0.0
        %3726 = vmatpush1.msra.mxu0 0.0
        %3727 = vmatprep.subr.mxu0 0.0
        %3728 = vmatpush1.msra.mxu0 0.0
        %3729 = vmatprep.subr.mxu0 0.0
        %3730 = vmatpush1.msra.mxu0 0.0
        %3731 = vmatprep.subr.mxu0 0.0
        %3732 = vmatpush1.msra.mxu0 0.0
        %3733 = vmatprep.subr.mxu0 0.0
        %3734 = vmatpush1.msra.mxu0 0.0
        %3735 = vmatprep.subr.mxu0 0.0
        %3736 = vmatpush1.msra.mxu0 0.0
        %3737 = vmatprep.subr.mxu0 0.0
        %3738 = vmatpush1.msra.mxu0 0.0
        %3739 = vmatprep.subr.mxu0 0.0
        %3740 = vmatpush1.msra.mxu0 0.0
        %3741 = vmatprep.subr.mxu0 0.0
        %3742 = vmatpush1.msra.mxu0 0.0
        %3743 = vmatprep.subr.mxu0 0.0
        %3744 = vmatpush1.msra.mxu0 0.0
        %3745 = vmatprep.subr.mxu0 0.0
        %3746 = vmatpush1.msra.mxu0 %v571
        %3747 = vmatprep.subr.mxu0 0.0
        %3748 = vmatpush1.msra.mxu0 %v570
        %3749 = vmatprep.subr.mxu0 0.0
        %3750 = vmatpush1.msra.mxu0 %v569
        %3751 = vmatprep.subr.mxu0 0.0
        %3752 = vmatpush1.msra.mxu0 %v568
        %3753 = vmatprep.subr.mxu0 0.0
        %3754 = vmatpush2.msra.mxu0 0.0
        %3755 = vmatprep.subr.mxu0 0.0
        %3756 = vmatpush2.msra.mxu0 0.0
        %3757 = vmatprep.subr.mxu0 0.0
        %3758 = vmatpush2.msra.mxu0 0.0
        %3759 = vmatprep.subr.mxu0 0.0
        %3760 = vmatpush2.msra.mxu0 0.0
        %3761 = vmatprep.subr.mxu0 0.0
        %3762 = vmatpush2.msra.mxu0 0.0
        %3763 = vmatprep.subr.mxu0 0.0
        %3764 = vmatpush2.msra.mxu0 0.0
        %3765 = vmatprep.subr.mxu0 0.0
        %3766 = vmatpush2.msra.mxu0 0.0
        %3767 = vmatprep.subr.mxu0 0.0
        %3768 = vmatpush2.msra.mxu0 0.0
        %3769 = vmatprep.subr.mxu0 0.0
        %3770 = vmatpush2.msra.mxu0 0.0
        %3771 = vmatprep.subr.mxu0 0.0
        %3772 = vmatpush2.msra.mxu0 0.0
        %3773 = vmatprep.subr.mxu0 0.0
        %3774 = vmatpush2.msra.mxu0 0.0
        %3775 = vmatprep.subr.mxu0 0.0
        %3776 = vmatpush2.msra.mxu0 0.0
        %3777 = vmatprep.subr.mxu0 0.0
        %3778 = vmatpush2.msra.mxu0 0.0
        %3779 = vmatprep.subr.mxu0 0.0
        %3780 = vmatpush2.msra.mxu0 0.0
        %3781 = vmatprep.subr.mxu0 0.0
        %3782 = vmatpush2.msra.mxu0 0.0
        %3783 = vmatprep.subr.mxu0 0.0
        %3784 = vmatpush2.msra.mxu0 0.0
        %3785 = vmatprep.mubr.f32.mxu0 0.0
        %3786 = vmatmul.mubr.f32.gmra.mxu0 %v3719
        %v3787 = vpop.f32.mrf.mxu0
        %v3788 = vadd.f32 %v3715, %v3787
        %v3789 = vpop.f32.mrf.mxu0
        %3790 = vdwg.mxu0
        %v3791 = vadd.f32 %v3788, %v889
        %v3793 = vsel %vm738, %v3791, 0
        %3795 = vmatprep.subr.mxu0 0.0
        %3796 = vmatpush1.msra.mxu0 0.0
        %3797 = vmatprep.subr.mxu0 0.0
        %3798 = vmatpush1.msra.mxu0 0.0
        %3799 = vmatprep.subr.mxu0 0.0
        %3800 = vmatpush1.msra.mxu0 0.0
        %3801 = vmatprep.subr.mxu0 0.0
        %3802 = vmatpush1.msra.mxu0 0.0
        %3803 = vmatprep.subr.mxu0 0.0
        %3804 = vmatpush1.msra.mxu0 0.0
        %3805 = vmatprep.subr.mxu0 0.0
        %3806 = vmatpush1.msra.mxu0 0.0
        %3807 = vmatprep.subr.mxu0 0.0
        %3808 = vmatpush1.msra.mxu0 0.0
        %3809 = vmatprep.subr.mxu0 0.0
        %3810 = vmatpush1.msra.mxu0 0.0
        %3811 = vmatprep.subr.mxu0 0.0
        %3812 = vmatpush1.msra.mxu0 0.0
        %3813 = vmatprep.subr.mxu0 0.0
        %3814 = vmatpush1.msra.mxu0 0.0
        %3815 = vmatprep.subr.mxu0 0.0
        %3816 = vmatpush1.msra.mxu0 0.0
        %3817 = vmatprep.subr.mxu0 0.0
        %3818 = vmatpush1.msra.mxu0 0.0
        %3819 = vmatprep.subr.mxu0 0.0
        %3820 = vmatpush1.msra.mxu0 %v580
        %3821 = vmatprep.subr.mxu0 0.0
        %3822 = vmatpush1.msra.mxu0 %v579
        %3823 = vmatprep.subr.mxu0 0.0
        %3824 = vmatpush1.msra.mxu0 %v578
        %3825 = vmatprep.subr.mxu0 0.0
        %3826 = vmatpush1.msra.mxu0 %v577
        %3827 = vmatprep.subr.mxu0 0.0
        %3828 = vmatpush2.msra.mxu0 0.0
        %3829 = vmatprep.subr.mxu0 0.0
        %3830 = vmatpush2.msra.mxu0 0.0
        %3831 = vmatprep.subr.mxu0 0.0
        %3832 = vmatpush2.msra.mxu0 0.0
        %3833 = vmatprep.subr.mxu0 0.0
        %3834 = vmatpush2.msra.mxu0 0.0
        %3835 = vmatprep.subr.mxu0 0.0
        %3836 = vmatpush2.msra.mxu0 0.0
        %3837 = vmatprep.subr.mxu0 0.0
        %3838 = vmatpush2.msra.mxu0 0.0
        %3839 = vmatprep.subr.mxu0 0.0
        %3840 = vmatpush2.msra.mxu0 0.0
        %3841 = vmatprep.subr.mxu0 0.0
        %3842 = vmatpush2.msra.mxu0 0.0
        %3843 = vmatprep.subr.mxu0 0.0
        %3844 = vmatpush2.msra.mxu0 0.0
        %3845 = vmatprep.subr.mxu0 0.0
        %3846 = vmatpush2.msra.mxu0 0.0
        %3847 = vmatprep.subr.mxu0 0.0
        %3848 = vmatpush2.msra.mxu0 0.0
        %3849 = vmatprep.subr.mxu0 0.0
        %3850 = vmatpush2.msra.mxu0 0.0
        %3851 = vmatprep.subr.mxu0 0.0
        %3852 = vmatpush2.msra.mxu0 0.0
        %3853 = vmatprep.subr.mxu0 0.0
        %3854 = vmatpush2.msra.mxu0 0.0
        %3855 = vmatprep.subr.mxu0 0.0
        %3856 = vmatpush2.msra.mxu0 0.0
        %3857 = vmatprep.subr.mxu0 0.0
        %3858 = vmatpush2.msra.mxu0 0.0
        %3859 = vmatprep.mubr.f32.mxu0 0.0
        %3860 = vmatmul.mubr.f32.gmra.mxu0 %v3793
        %v3861 = vpop.f32.mrf.mxu0
        %v3862 = vadd.f32 %v896, %v3861
        %v3863 = vpop.f32.mrf.mxu0
        %3864 = vdwg.mxu0
        %s3865 = scalar_lea.vmem %s557, 48
        %v3866 = vld [vmem:[%s3865] sm:$0xff]
        %v3867 = vadd.f32 %v3866, %v3862
        %v3868 = vxor.u32 %v3867, 2147483648
        %v3869 = vmul.f32 %v3868, 1.442695
        %v3870 = vpow.pop %v3869
        %v3871 = vadd.f32 %v3870, 1.0
        %v3872 = vrcp.pop %v3871
        %v3873 = vmul.f32 1.0, %v3872
        %3875 = vrot.lane.b32.xlu0 %v3862, 64
        %v3876 = vpop.permute.xlu0 %3875
        %v3878 = vmul.f32 %v3873, %v3876
        %3880 = vrot.lane.b32.xlu0 %v3878, 64
        %v3881 = vpop.permute.xlu0 %3880
        %v3883 = vadd.f32 %v3866, %v3881
        %v3884 = vtanh.pop %v3883
        %v3885 = vsub.f32 1.0, %v3873
        %3887 = vrot.lane.b32.xlu0 %v3884, 96
        %v3888 = vpop.permute.xlu0 %3887
        %v3890 = vmul.f32 %v3885, %v3888
        %3891 = vrot.lane.b32.xlu0 %v3791, 32
        %v3892 = vpop.permute.xlu0 %3891
        %v3894 = vmul.f32 %v3873, %v3892
        %v3895 = vadd.f32 %v3890, %v3894
        %3897 = vrot.lane.b32.xlu0 %v3895, 96
        %v3898 = vpop.permute.xlu0 %3897
        %v3899 = vsel %vm738, %v3898, 0
        %3901 = vmatprep.subr.mxu0 0.0
        %3902 = vmatpush1.msra.mxu0 0.0
        %3903 = vmatprep.subr.mxu0 0.0
        %3904 = vmatpush1.msra.mxu0 0.0
        %3905 = vmatprep.subr.mxu0 0.0
        %3906 = vmatpush1.msra.mxu0 0.0
        %3907 = vmatprep.subr.mxu0 0.0
        %3908 = vmatpush1.msra.mxu0 0.0
        %3909 = vmatprep.subr.mxu0 0.0
        %3910 = vmatpush1.msra.mxu0 0.0
        %3911 = vmatprep.subr.mxu0 0.0
        %3912 = vmatpush1.msra.mxu0 0.0
        %3913 = vmatprep.subr.mxu0 0.0
        %3914 = vmatpush1.msra.mxu0 0.0
        %3915 = vmatprep.subr.mxu0 0.0
        %3916 = vmatpush1.msra.mxu0 0.0
        %3917 = vmatprep.subr.mxu0 0.0
        %3918 = vmatpush1.msra.mxu0 0.0
        %3919 = vmatprep.subr.mxu0 0.0
        %3920 = vmatpush1.msra.mxu0 0.0
        %3921 = vmatprep.subr.mxu0 0.0
        %3922 = vmatpush1.msra.mxu0 0.0
        %3923 = vmatprep.subr.mxu0 0.0
        %3924 = vmatpush1.msra.mxu0 0.0
        %3925 = vmatprep.subr.mxu0 0.0
        %3926 = vmatpush1.msra.mxu0 %v585
        %3927 = vmatprep.subr.mxu0 0.0
        %3928 = vmatpush1.msra.mxu0 %v584
        %3929 = vmatprep.subr.mxu0 0.0
        %3930 = vmatpush1.msra.mxu0 %v583
        %3931 = vmatprep.subr.mxu0 0.0
        %3932 = vmatpush1.msra.mxu0 %v582
        %3933 = vmatprep.subr.mxu0 0.0
        %3934 = vmatpush2.msra.mxu0 0.0
        %3935 = vmatprep.subr.mxu0 0.0
        %3936 = vmatpush2.msra.mxu0 0.0
        %3937 = vmatprep.subr.mxu0 0.0
        %3938 = vmatpush2.msra.mxu0 0.0
        %3939 = vmatprep.subr.mxu0 0.0
        %3940 = vmatpush2.msra.mxu0 0.0
        %3941 = vmatprep.subr.mxu0 0.0
        %3942 = vmatpush2.msra.mxu0 0.0
        %3943 = vmatprep.subr.mxu0 0.0
        %3944 = vmatpush2.msra.mxu0 0.0
        %3945 = vmatprep.subr.mxu0 0.0
        %3946 = vmatpush2.msra.mxu0 0.0
        %3947 = vmatprep.subr.mxu0 0.0
        %3948 = vmatpush2.msra.mxu0 0.0
        %3949 = vmatprep.subr.mxu0 0.0
        %3950 = vmatpush2.msra.mxu0 0.0
        %3951 = vmatprep.subr.mxu0 0.0
        %3952 = vmatpush2.msra.mxu0 0.0
        %3953 = vmatprep.subr.mxu0 0.0
        %3954 = vmatpush2.msra.mxu0 0.0
        %3955 = vmatprep.subr.mxu0 0.0
        %3956 = vmatpush2.msra.mxu0 0.0
        %3957 = vmatprep.subr.mxu0 0.0
        %3958 = vmatpush2.msra.mxu0 0.0
        %3959 = vmatprep.subr.mxu0 0.0
        %3960 = vmatpush2.msra.mxu0 0.0
        %3961 = vmatprep.subr.mxu0 0.0
        %3962 = vmatpush2.msra.mxu0 0.0
        %3963 = vmatprep.subr.mxu0 0.0
        %3964 = vmatpush2.msra.mxu0 0.0
        %3965 = vmatprep.mubr.f32.mxu0 0.0
        %3966 = vmatmul.mubr.f32.gmra.mxu0 %v3899
        %v3967 = vpop.f32.mrf.mxu0
        %v3968 = vadd.f32 %v1005, %v3967
        %v3969 = vpop.f32.mrf.mxu0
        %3970 = vdwg.mxu0
        %s3971 = scalar_lea.vmem %s562, 16
        %v3972 = vld [vmem:[%s3971] sm:$0xff]
        %v3973 = vmul.f32 %v587, %v3968
        %v3974 = vadd.f32 %v3972, %v3973
        %s3975 = scalar_lea.vmem %s567, 16
        %3976 = vst.msk [vmem:[%s3975] sm:$0xff] %vm1085, %v3974
        %p3977 = scmp.lt.s32.totalorder %s27, 1
        %s3978 = scalar_select %p3977, %s27, 1
        %s3979 = smul.addr %s3978, 3
        %s3980 = smul.addr %s3979, 8
        %s3981 = scalar_lea.vmem %s13, %s3980
        // Predicated region
        $region97: #{tpu_custom_call.1} parent=71 // pred_check
          %p3982 = pneg %p333
        $region98: #{tpu_custom_call.1} parent=71 // pred_check_branch
          %3984 = sbr.rel (%p3982) target = $region100
        $region99: #{tpu_custom_call.1} parent=71 // pred_region
          _
        $region100: #{tpu_custom_call.1} parent=71 // pred_fallthru
          _
      $region72: #{tpu_custom_call.1} parent=5 // pred_fallthru
        _
      %p3985 = scmp.le.s32.totalorder 2, %s22
      // Predicated region
      $region101: #{tpu_custom_call.1} parent=5 // pred_check
        %p3986 = pneg %p3985
      $region102: #{tpu_custom_call.1} parent=5 // pred_check_branch
        %3988 = sbr.rel (%p3986) target = $region104
      $region103: #{tpu_custom_call.1} parent=5 // pred_region
        %s3989 = ssub.s32 %s22, 2
        // Predicated region
        $region105: #{tpu_custom_call.1} parent=103 // pred_check
          %p3990 = pneg %p339
        $region106: #{tpu_custom_call.1} parent=103 // pred_check_branch
          %3992 = sbr.rel (%p3990) target = $region108
        $region107: #{tpu_custom_call.1} parent=103 // pred_region
          %p3993 = scmp.lt.s32.totalorder %s28, 1
          %s3994 = scalar_select %p3993, %s28, 1
          %s3995 = smul.addr %s3994, 3
          %s3996 = smul.addr %s3995, 8
          %s3997 = scalar_lea.vmem %s13, %s3996
        $region108: #{tpu_custom_call.1} parent=103 // pred_fallthru
          _
      $region104: #{tpu_custom_call.1} parent=5 // pred_fallthru
        _
    $region6: #{tpu_custom_call.1} parent=1 // loop_footer
      %s26 = sadd.s32 1, %s22
    $region7: #{tpu_custom_call.1} parent=1 // loop_footer_branch
      %21 = sbr.rel target = $region3
    $region8: #{tpu_custom_call.1} parent=1 // loop_exit
      _
    %3998 = vsyncpa [#allocation3], 1
    %s3999 = scalar_lea.sflag [#allocation3], 1
    %4000 = vsyncpa %s3999, 1
    %4001 = vsyncpa [#allocation5], 1
    %4002 = vsyncpa [#allocation9], 1

</llo_original>
